<compile_context>
chip_gen: v7x
topology: tpu7x:2x2x1
jax: 0.10.0
libtpu: 0.0.40
codegen_flags: <defaults>
</compile_context>

<pallas_src>
import functools

import jax
import jax.numpy as jnp
from jax import lax
from jax.experimental import pallas as pl
from jax.experimental.pallas import tpu as pltpu

NOISE_DIM = 5 * (3 * 3 + 2)        # 55
XP_DIM = 15 + 13 + 1 + 2 + 1 + 5   # 37 recalculated features
SIGMA_DIM = 45
HALF_PI = 1.5707963267948966
QUARTER_PI = 0.7853981633974483


def _pad_to(n, m):
    return ((n + m - 1) // m) * m


def _pick_tile(n):
    if n <= 256:
        return 128
    if n <= 2048:
        return 256
    return 512


# ---------------------------------------------------------------------------------------------------------
# channel permutations (applied to the WEIGHTS in the wrapper so the kernel sees contiguous channel groups)
# ---------------------------------------------------------------------------------------------------------
def _chan_perm(num_features):
    # kernel input rows: [x hits 0..4, y hits 0..4, z hits 0..4, remaining original channels 15..F-1]
    perm = []
    for c in range(3):
        perm += [3 * h + c for h in range(5)]
    perm += list(range(15, num_features))
    return perm


def _noise_perm():
    # kernel noise row 5*(3i+j)+h <- original channel 9h+3i+j (U[h,i,j])
    # kernel noise row 45+h      <- original channel 45+2h   (a0[h])
    # kernel noise row 50+h      <- original channel 46+2h   (a1[h])
    perm = [0] * NOISE_DIM
    for i in range(3):
        for j in range(3):
            for h in range(5):
                perm[5 * (3 * i + j) + h] = 9 * h + 3 * i + j
    for h in range(5):
        perm[45 + h] = 45 + 2 * h
        perm[50 + h] = 45 + 2 * h + 1
    return perm


def _xp_row_perm():
    # kernel Xp row -> reference Xp channel
    perm = []
    for c in range(3):
        perm += [3 * h + c for h in range(5)]
    perm += list(range(15, XP_DIM))
    return perm


# ---------------------------------------------------------------------------------------------------------
# float32 inverse-trig helpers built only from VPU/EUP-supported ops (mul/add/div/sqrt/select)
# ---------------------------------------------------------------------------------------------------------
def _atan_f32(y):
    """Cephes-style float32 arctan (abs error ~1e-7)."""
    t = jnp.abs(y)
    c2 = t > 2.414213562373095
    c1 = t > 0.4142135623730951
    x = jnp.where(c2, -1.0 / t, jnp.where(c1, (t - 1.0) / (t + 1.0), t))
    base = jnp.where(c2, jnp.float32(HALF_PI), jnp.where(c1, jnp.float32(QUARTER_PI), jnp.float32(0.0)))
    z = x * x
    p = (((8.05374449538e-2 * z - 1.38776856032e-1) * z + 1.99777106478e-1) * z
         - 3.33329491539e-1) * z * x + x
    a = base + p
    return jnp.where(y < 0.0, -a, a)


def _acos_f32(x):
    """arccos for |x| <= 1 - 1e-6 via acos(x) = pi/2 - atan(x / sqrt(1 - x^2))."""
    s = jnp.sqrt(jnp.maximum(1.0 - x * x, 1e-12))
    return jnp.float32(HALF_PI) - _atan_f32(x / s)


# ---------------------------------------------------------------------------------------------------------
# Fused kernel: embedding stand-in + noiser MLP + sigma_v / e_v + recalculate_geometric_features + epilogue
# layout: (channels, tracks); tracks on the lane axis.
# ---------------------------------------------------------------------------------------------------------
def _fused_kernel(x_ref, m_ref, s0_ref, s1_ref,
                  weT_ref, beT_ref, w1T_ref, b1T_ref,
                  w2T_ref, b2T_ref, w3T_ref, b3T_ref,
                  xp_ref, sigma_ref, gh_ref):
    f32 = jnp.float32
    x = x_ref[...]                                   # (F, Tn): rows [x*5, y*5, z*5, rest]
    m = m_ref[...]                                   # (1, Tn)
    nf = x.shape[0]
    tn = x.shape[1]

    # ---- noiser MLP in (C, N) layout (weights pre-transposed / permuted in the wrapper) ----
    # TODO(synk): tanh(We @ x + be) stands in for interpreter.generate_embedding (source not provided).
    emb = jnp.tanh(jnp.dot(weT_ref[...], x, preferred_element_type=f32) + beT_ref[...])
    h1 = jnp.tanh(jnp.dot(w1T_ref[...], emb, preferred_element_type=f32) + b1T_ref[...])
    h2 = jnp.tanh(jnp.dot(w2T_ref[...], h1, preferred_element_type=f32) + b2T_ref[...])
    noise = (jnp.dot(w3T_ref[...], h2, preferred_element_type=f32) + b3T_ref[...]) * m   # (55, Tn)

    def softplus(z):
        return jnp.maximum(z, 0.0) + jnp.log(1.0 + jnp.exp(-jnp.abs(z)))

    # contiguous channel groups (thanks to the wrapper-side weight permutation)
    U = [[noise[5 * (3 * i + j):5 * (3 * i + j) + 5, :] for j in range(3)] for i in range(3)]  # (5,Tn) each
    a0 = jnp.clip(softplus(noise[45:50, :]), 1e-6, 1e6)                                        # (5, Tn)
    a1 = jnp.clip(softplus(noise[50:55, :]), 1e-6, 1e6)
    sq0, sq1 = jnp.sqrt(a0), jnp.sqrt(a1)

    # ---- sigma_v = a0 * U U^T + a1 * I : grouped (5, Tn) stores, (i,j)-major rows ----
    for i in range(3):
        for j in range(i, 3):
            uut = U[i][0] * U[j][0] + U[i][1] * U[j][1] + U[i][2] * U[j][2]
            sij = a0 * uut
            if i == j:
                sij = sij + a1
            sigma_ref[5 * (3 * i + j):5 * (3 * i + j) + 5, :] = sij
            if i != j:
                sigma_ref[5 * (3 * j + i):5 * (3 * j + i) + 5, :] = sij

    # ---- e_v = sqrt(a0) U s0 + sqrt(a1) s1 (non-cholesky branch) ----
    s0 = [s0_ref[5 * j:5 * j + 5, :] for j in range(3)]
    s1 = [s1_ref[5 * i:5 * i + 5, :] for i in range(3)]
    ev = [sq0 * (U[i][0] * s0[0] + U[i][1] * s0[1] + U[i][2] * s0[2]) + sq1 * s1[i]
          for i in range(3)]

    # ---- perturbed, good-hit-masked hits ----
    X0, Y0, Z0 = x[0:5, :], x[5:10, :], x[10:15, :]
    G = jnp.logical_or(jnp.logical_or(X0 != 0.0, Y0 != 0.0), Z0 != 0.0).astype(f32)   # (5, Tn)
    PX = (X0 + ev[0]) * G
    PY = (Y0 + ev[1]) * G
    PZ = (Z0 + ev[2]) * G
    gh_ref[...] = G
    xp_ref[0:5, :] = PX * m
    xp_ref[5:10, :] = PY * m
    xp_ref[10:15, :] = PZ * m

    zero1 = jnp.zeros_like(m)

    # ---- geo[0:4]: consecutive hit distances, geo[4]=0 (never written in ref), geo[5]=|hit4-hit0| ----
    dxc = PX[1:5, :] - PX[0:4, :]
    dyc = PY[1:5, :] - PY[0:4, :]
    dzc = PZ[1:5, :] - PZ[0:4, :]
    dcons = jnp.sqrt(dxc * dxc + dyc * dyc + dzc * dzc)                                  # (4, Tn)
    d40 = jnp.sqrt((PX[4:5, :] - PX[0:1, :]) ** 2 + (PY[4:5, :] - PY[0:1, :]) ** 2
                   + (PZ[4:5, :] - PZ[0:1, :]) ** 2)                                     # (1, Tn)
    xp_ref[15:21, :] = jnp.concatenate([dcons, zero1, d40], axis=0) * m

    # ---- geo[6:10]: phi diffs, reproducing the reference's `hits[...,0] + hits[...,0] == 0` precedence bug
    xb = PX == 0.0            # x argument of atan2 is the BOOLEAN (x + x == 0) cast to float {0,1}
    phi = jnp.where(xb, _atan_f32(PY),
                    jnp.where(PY > 0.0, jnp.float32(HALF_PI),
                              jnp.where(PY < 0.0, jnp.float32(-HALF_PI), jnp.float32(0.0))))
    xp_ref[21:25, :] = (phi[1:5, :] - phi[0:4, :]) * m
    # ---- geo[10:13] = 0 ----
    xp_ref[25:28, :] = jnp.zeros((3, tn), f32)

    # ---- weighted (Kasa) circle fit == the reference's per-n_hit least squares ----
    n_hits = jnp.sum(G, axis=0, keepdims=True)                         # (1, Tn)
    Sxx = jnp.sum(PX * PX, axis=0, keepdims=True)
    Sxy = jnp.sum(PX * PY, axis=0, keepdims=True)
    Syy = jnp.sum(PY * PY, axis=0, keepdims=True)
    Sx = jnp.sum(PX, axis=0, keepdims=True)
    Sy = jnp.sum(PY, axis=0, keepdims=True)
    S1 = n_hits
    T5 = PX * PX + PY * PY
    bx = -jnp.sum(PX * T5, axis=0, keepdims=True)
    by = -jnp.sum(PY * T5, axis=0, keepdims=True)
    b1 = -jnp.sum(T5, axis=0, keepdims=True)

    det = (Sxx * (Syy * S1 - Sy * Sy)
           - Sxy * (Sxy * S1 - Sy * Sx)
           + Sx * (Sxy * Sy - Syy * Sx))
    valid = jnp.logical_and(n_hits >= 3.0, jnp.abs(det) > 1e-12)   # guard singular normal equations
    vf = valid.astype(f32)
    det_safe = jnp.where(valid, det, 1.0)
    inv_det = 1.0 / det_safe
    i00 = Syy * S1 - Sy * Sy
    i01 = Sx * Sy - Sxy * S1
    i02 = Sxy * Sy - Sx * Syy
    i11 = Sxx * S1 - Sx * Sx
    i12 = Sx * Sxy - Sxx * Sy
    i22 = Sxx * Syy - Sxy * Sxy
    c0 = vf * (i00 * bx + i01 * by + i02 * b1) * inv_det
    c1 = vf * (i01 * bx + i11 * by + i12 * b1) * inv_det
    c2 = vf * (i02 * bx + i12 * by + i22 * b1) * inv_det
    # exact lstsq gives c0^2+c1^2-4c2 = 4R^2 >= 0; clamp against f32 round-off going negative (no NaN)
    r = jnp.sqrt(jnp.maximum(c0 * c0 + c1 * c1 - 4.0 * c2, 0.0)) / 200.0        # use_log=False

    # ---- track endpoints + get_predicted_pz ----
    fx, fy, fz = PX[0:1, :], PY[0:1, :], PZ[0:1, :]
    for h in range(4, -1, -1):
        sel = G[h:h + 1, :] > 0.0
        fx = jnp.where(sel, PX[h:h + 1, :], fx)
        fy = jnp.where(sel, PY[h:h + 1, :], fy)
        fz = jnp.where(sel, PZ[h:h + 1, :], fz)
    lx, ly, lz = PX[4:5, :], PY[4:5, :], PZ[4:5, :]
    for h in range(5):
        sel = G[h:h + 1, :] > 0.0
        lx = jnp.where(sel, PX[h:h + 1, :], lx)
        ly = jnp.where(sel, PY[h:h + 1, :], ly)
        lz = jnp.where(sel, PZ[h:h + 1, :], lz)

    dz = (lz - fz) / 100.0
    chord2 = ((lx - fx) ** 2 + (ly - fy) ** 2) / 10000.0
    two_r2 = 2.0 * r * r
    inner = (two_r2 - chord2) / (two_r2 + 1e-8)
    inner = jnp.clip(inner, -1.0 + 1e-6, 1.0 - 1e-6)
    dtheta = _acos_f32(inner)          # > 0 after the clamp, so theta = dtheta (ref: (dtheta==0)*1 + dtheta)
    pred_pz = dz / dtheta

    # ---- radius / center / pred_pz rows 28..31 (one grouped store) ----
    xp_ref[28:32, :] = jnp.concatenate([r, -c0 / 2.0, -c1 / 2.0, pred_pz], axis=0) * m

    # ---- n_hits_per_layer = X[..., -5:] ----
    xp_ref[32:37, :] = x[nf - 5:nf, :] * m


def fused_forward(wts, xc, mc, s0c, s1c, tile_n):
    nf, n_pad = xc.shape

    def col_spec(rows):
        return pl.BlockSpec((rows, tile_n), lambda i: (0, i))

    def full_spec(shape):
        return pl.BlockSpec(shape, lambda i: (0, 0))

    return pl.pallas_call(
        _fused_kernel,
        out_shape=(
            jax.ShapeDtypeStruct((XP_DIM, n_pad), jnp.float32),     # Xp (already * mask)
            jax.ShapeDtypeStruct((SIGMA_DIM, n_pad), jnp.float32),  # sigma_v ((i,j)-major rows)
            jax.ShapeDtypeStruct((5, n_pad), jnp.float32),          # good_hits_mask
        ),
        grid=(n_pad // tile_n,),
        in_specs=[
            col_spec(nf), col_spec(1), col_spec(15), col_spec(15),
            full_spec(wts["WeT"].shape), full_spec(wts["beT"].shape),
            full_spec(wts["W1T"].shape), full_spec(wts["b1T"].shape),
            full_spec(wts["W2T"].shape), full_spec(wts["b2T"].shape),
            full_spec(wts["W3T"].shape), full_spec(wts["b3T"].shape),
        ],
        out_specs=(col_spec(XP_DIM), col_spec(SIGMA_DIM), col_spec(5)),
        compiler_params=pltpu.CompilerParams(dimension_semantics=("parallel",)),
    )(xc, mc, s0c, s1c,
      wts["WeT"], wts["beT"], wts["W1T"], wts["b1T"],
      wts["W2T"], wts["b2T"], wts["W3T"], wts["b3T"])


# ---------------------------------------------------------------------------------------------------------
# Head kernel: stand-in classifier (masked mean pool per event + linear), tiled accumulator over tracks.
# The segment one-hot is built in-kernel from a 2-D iota -> no HBM seg matrix, no scatter.
# ---------------------------------------------------------------------------------------------------------
def _head_kernel(xp_ref, m_ref, wcT_ref, bcT_ref, out_ref, acc_ref, *, tokens_per_event, n_real):
    # TODO(synk): stand-in for the BA classifier (final_pooling=True); real source not provided.
    i = pl.program_id(0)
    tn = xp_ref.shape[1]
    bp = acc_ref.shape[1]

    @pl.when(i == 0)
    def _():
        acc_ref[...] = jnp.zeros_like(acc_ref)

    trk = lax.broadcasted_iota(jnp.int32, (tn, bp), 0) + i * tn
    col_start = lax.broadcasted_iota(jnp.int32, (tn, bp), 1) * tokens_per_event
    seg = jnp.logical_and(
        jnp.logical_and(trk >= col_start, trk < col_start + tokens_per_event),
        trk < n_real).astype(jnp.float32)                                       # (tn, bp)

    xm = jnp.concatenate([xp_ref[...], m_ref[...]], axis=0)                     # (38, tn): features + count
    acc_ref[...] += jnp.dot(xm, seg, preferred_element_type=jnp.float32)        # (38, bp)

    @pl.when(i == pl.num_programs(0) - 1)
    def _():
        pooled = acc_ref[0:XP_DIM, :] / (acc_ref[XP_DIM:XP_DIM + 1, :] + 1e-8)
        out_ref[...] = jnp.dot(wcT_ref[...], pooled, preferred_element_type=jnp.float32) + bcT_ref[...]


def head_forward(wts, xp_c, mc, batch, tokens_per_event, n_real, tile_n):
    ncls = wts["WcT"].shape[0]
    n_pad = xp_c.shape[1]
    bp = _pad_to(max(batch, 1), 128)
    kern = functools.partial(_head_kernel, tokens_per_event=tokens_per_event, n_real=n_real)
    out = pl.pallas_call(
        kern,
        out_shape=jax.ShapeDtypeStruct((ncls, bp), jnp.float32),
        grid=(n_pad // tile_n,),
        in_specs=[
            pl.BlockSpec((XP_DIM, tile_n), lambda i: (0, i)),
            pl.BlockSpec((1, tile_n), lambda i: (0, i)),
            pl.BlockSpec(wts["WcT"].shape, lambda i: (0, 0)),
            pl.BlockSpec(wts["bcT"].shape, lambda i: (0, 0)),
        ],
        out_specs=pl.BlockSpec((ncls, bp), lambda i: (0, 0)),
        scratch_shapes=[pltpu.VMEM((XP_DIM + 1, bp), jnp.float32)],
        compiler_params=pltpu.CompilerParams(dimension_semantics=("arbitrary",)),
    )(xp_c, mc, wts["WcT"], wts["bcT"])
    return out[:, :batch].T


# ---------------------------------------------------------------------------------------------------------
# Full forward (finetune_epoch=True, force=True, use_cholesky=False, normalize_features=False,
#               add_geo/radius/center/pz/n_hits=True)
# ---------------------------------------------------------------------------------------------------------
@jax.jit
def bipartite_attention_forward(params, X, mask, sample_key):
    B, T, F = X.shape
    N = B * T
    tile_n = _pick_tile(N)
    n_pad = _pad_to(N, tile_n)

    chan_perm = jnp.asarray(_chan_perm(F), jnp.int32)
    noise_perm = jnp.asarray(_noise_perm(), jnp.int32)
    xp_perm = jnp.asarray(_xp_row_perm(), jnp.int32)

    # single small (N, F) -> (F, N) transpose; everything downstream stays in (C, N) layout
    xflat = X.reshape(N, F).astype(jnp.float32)
    xc = jnp.zeros((F, n_pad), jnp.float32).at[:, :N].set(jnp.take(xflat, chan_perm, axis=1).T)
    mc = jnp.zeros((1, n_pad), jnp.float32).at[:, :N].set(mask.reshape(1, N).astype(jnp.float32))

    # gaussian samples for e_v (non-cholesky branch); generated directly in (C, N) layout
    s = jax.random.normal(sample_key, (2, 15, n_pad), dtype=jnp.float32)
    s0c, s1c = s[0], s[1]

    # pre-transpose + permute weights so the kernel sees contiguous channel groups (done once, tiny arrays)
    wts = {
        "WeT": jnp.take(params["We"], chan_perm, axis=0).T,
        "beT": params["be"].T,
        "W1T": params["W1"].T, "b1T": params["b1"].T,
        "W2T": params["W2"].T, "b2T": params["b2"].T,
        "W3T": jnp.take(params["W3"], noise_perm, axis=1).T,
        "b3T": jnp.take(params["b3"], noise_perm, axis=1).T,
        "WcT": jnp.take(params["Wc"], xp_perm, axis=0).T,
        "bcT": params["bc"].T,
    }

    xp_c, sigma_c, gh_c = fused_forward(wts, xc, mc, s0c, s1c, tile_n)
    pred = head_forward(wts, xp_c, mc, B, T, N, tile_n)

    # sigma_c row 5*(3i+j)+h <-> sigma_v[..., h, i, j]
    sigma_v = jnp.transpose(sigma_c[:, :N].reshape(3, 3, 5, N), (3, 2, 0, 1)).reshape(B, T, 5, 3, 3)
    good_hits_mask = gh_c[:, :N].T.reshape(B, T, 5) > 0.5
    return pred, sigma_v, good_hits_mask


# ---------------------------------------------------------------------------------------------------------
# Deterministic parameter init (shapes from the module's __init__, ln=False, hidden=64)
# ---------------------------------------------------------------------------------------------------------
def init_params(key, num_features=20, num_classes=2, hidden=64):
    ks = jax.random.split(key, 5)
    return {
        "We": 0.1 * jax.random.normal(ks[0], (num_features, hidden), jnp.float32),
        "be": jnp.zeros((1, hidden), jnp.float32),
        "W1": 0.1 * jax.random.normal(ks[1], (hidden, hidden), jnp.float32),
        "b1": jnp.zeros((1, hidden), jnp.float32),
        "W2": 0.1 * jax.random.normal(ks[2], (hidden, hidden), jnp.float32),
        "b2": jnp.zeros((1, hidden), jnp.float32),
        "W3": 0.1 * jax.random.normal(ks[3], (hidden, NOISE_DIM), jnp.float32),
        "b3": jnp.zeros((1, NOISE_DIM), jnp.float32),
        "Wc": 0.1 * jax.random.normal(ks[4], (XP_DIM, num_classes), jnp.float32),
        "bc": jnp.zeros((1, num_classes), jnp.float32),
    }


if __name__ == "__main__":
    key = jax.random.PRNGKey(0)
    kp, kx, kk, kh, ks = jax.random.split(key, 5)

    B, T, F = 2, 8, 20        # 15 hit coords (5 layers x 3) + 5 n_hits_per_layer
    params = init_params(kp, num_features=F, num_classes=2, hidden=64)

    hits = jax.random.uniform(kx, (B, T, 5, 3), jnp.float32, -50.0, 50.0)
    keep = (jax.random.uniform(kk, (B, T, 5)) > 0.25).astype(jnp.float32)   # some missing hits
    hits = hits * keep[..., None]
    n_hits_per_layer = jax.random.randint(kh, (B, T, 5), 0, 4).astype(jnp.float32)
    X = jnp.concatenate([hits.reshape(B, T, 15), n_hits_per_layer], axis=-1)
    mask = jnp.concatenate([jnp.ones((B, T - 2)), jnp.zeros((B, 2))], axis=-1).astype(jnp.float32)
    X = X * mask[..., None]

    pred, sigma_v, good_hits_mask = bipartite_attention_forward(params, X, mask, ks)
    jax.block_until_ready((pred, sigma_v, good_hits_mask))
    assert pred.shape == (B, 2)
    assert sigma_v.shape == (B, T, 5, 3, 3)
    assert good_hits_mask.shape == (B, T, 5)
    print("KERNEL_OK")
</pallas_src>

<mosaic_0001>
module attributes {stable_mosaic.version = 11 : i64} {
  func.func @_fused_kernel(%arg0: i32, %arg1: memref<20x128xf32, #tpu.memory_space<vmem>>, %arg2: memref<1x128xf32, #tpu.memory_space<vmem>>, %arg3: memref<15x128xf32, #tpu.memory_space<vmem>>, %arg4: memref<15x128xf32, #tpu.memory_space<vmem>>, %arg5: memref<64x20xf32, #tpu.memory_space<vmem>>, %arg6: memref<64x1xf32, #tpu.memory_space<vmem>>, %arg7: memref<64x64xf32, #tpu.memory_space<vmem>>, %arg8: memref<64x1xf32, #tpu.memory_space<vmem>>, %arg9: memref<64x64xf32, #tpu.memory_space<vmem>>, %arg10: memref<64x1xf32, #tpu.memory_space<vmem>>, %arg11: memref<55x64xf32, #tpu.memory_space<vmem>>, %arg12: memref<55x1xf32, #tpu.memory_space<vmem>>, %arg13: memref<37x128xf32, #tpu.memory_space<vmem>>, %arg14: memref<45x128xf32, #tpu.memory_space<vmem>>, %arg15: memref<5x128xf32, #tpu.memory_space<vmem>>) attributes {dimension_semantics = [#tpu.dimension_semantics<parallel>], iteration_bounds = array<i64: 1>, scalar_prefetch = 0 : i64, scratch_operands = 0 : i64, tpu.core_type = #tpu.core_type<tc>, window_params = [{transform_indices = @transform_0, window_bounds = array<i64: 20, 128>}, {transform_indices = @transform_1, window_bounds = array<i64: 1, 128>}, {transform_indices = @transform_2, window_bounds = array<i64: 15, 128>}, {transform_indices = @transform_3, window_bounds = array<i64: 15, 128>}, {pipeline_mode = #tpu.pipeline_mode<synchronous>, transform_indices = @transform_4, window_bounds = array<i64: 64, 20>}, {pipeline_mode = #tpu.pipeline_mode<synchronous>, transform_indices = @transform_5, window_bounds = array<i64: 64, 1>}, {pipeline_mode = #tpu.pipeline_mode<synchronous>, transform_indices = @transform_6, window_bounds = array<i64: 64, 64>}, {pipeline_mode = #tpu.pipeline_mode<synchronous>, transform_indices = @transform_7, window_bounds = array<i64: 64, 1>}, {pipeline_mode = #tpu.pipeline_mode<synchronous>, transform_indices = @transform_8, window_bounds = array<i64: 64, 64>}, {pipeline_mode = #tpu.pipeline_mode<synchronous>, transform_indices = @transform_9, window_bounds = array<i64: 64, 1>}, {pipeline_mode = #tpu.pipeline_mode<synchronous>, transform_indices = @transform_10, window_bounds = array<i64: 55, 64>}, {pipeline_mode = #tpu.pipeline_mode<synchronous>, transform_indices = @transform_11, window_bounds = array<i64: 55, 1>}, {transform_indices = @transform_12, window_bounds = array<i64: 37, 128>}, {transform_indices = @transform_13, window_bounds = array<i64: 45, 128>}, {transform_indices = @transform_14, window_bounds = array<i64: 5, 128>}]} {
    %c0 = arith.constant 0 : index
    %c0_0 = arith.constant 0 : index
    %0 = vector.load %arg1[%c0, %c0_0] : memref<20x128xf32, #tpu.memory_space<vmem>>, vector<20x128xf32>
    %c0_1 = arith.constant 0 : index
    %c0_2 = arith.constant 0 : index
    %1 = vector.load %arg2[%c0_1, %c0_2] : memref<1x128xf32, #tpu.memory_space<vmem>>, vector<1x128xf32>
    %c0_3 = arith.constant 0 : index
    %c0_4 = arith.constant 0 : index
    %2 = vector.load %arg5[%c0_3, %c0_4] : memref<64x20xf32, #tpu.memory_space<vmem>>, vector<64x20xf32>
    %cst = arith.constant dense<0.000000e+00> : vector<64x128xf32>
    %3 = tpu.matmul %2, %0, %cst {dimension_numbers = #tpu.dot_dimension_numbers<[1], [0], [0], [1], [0, 0, 1, 1], [], []>} : vector<64x20xf32>, vector<20x128xf32>, vector<64x128xf32> -> vector<64x128xf32>
    %c0_5 = arith.constant 0 : index
    %c0_6 = arith.constant 0 : index
    %4 = vector.load %arg6[%c0_5, %c0_6] : memref<64x1xf32, #tpu.memory_space<vmem>>, vector<64x1xf32>
    %5 = vector.broadcast %4 : vector<64x1xf32> to vector<64x128xf32>
    %6 = arith.addf %3, %5 : vector<64x128xf32>
    %7 = math.tanh %6 : vector<64x128xf32>
    %c0_7 = arith.constant 0 : index
    %c0_8 = arith.constant 0 : index
    %8 = vector.load %arg7[%c0_7, %c0_8] : memref<64x64xf32, #tpu.memory_space<vmem>>, vector<64x64xf32>
    %cst_9 = arith.constant dense<0.000000e+00> : vector<64x128xf32>
    %9 = tpu.matmul %8, %7, %cst_9 {dimension_numbers = #tpu.dot_dimension_numbers<[1], [0], [0], [1], [0, 0, 1, 1], [], []>} : vector<64x64xf32>, vector<64x128xf32>, vector<64x128xf32> -> vector<64x128xf32>
    %c0_10 = arith.constant 0 : index
    %c0_11 = arith.constant 0 : index
    %10 = vector.load %arg8[%c0_10, %c0_11] : memref<64x1xf32, #tpu.memory_space<vmem>>, vector<64x1xf32>
    %11 = vector.broadcast %10 : vector<64x1xf32> to vector<64x128xf32>
    %12 = arith.addf %9, %11 : vector<64x128xf32>
    %13 = math.tanh %12 : vector<64x128xf32>
    %c0_12 = arith.constant 0 : index
    %c0_13 = arith.constant 0 : index
    %14 = vector.load %arg9[%c0_12, %c0_13] : memref<64x64xf32, #tpu.memory_space<vmem>>, vector<64x64xf32>
    %cst_14 = arith.constant dense<0.000000e+00> : vector<64x128xf32>
    %15 = tpu.matmul %14, %13, %cst_14 {dimension_numbers = #tpu.dot_dimension_numbers<[1], [0], [0], [1], [0, 0, 1, 1], [], []>} : vector<64x64xf32>, vector<64x128xf32>, vector<64x128xf32> -> vector<64x128xf32>
    %c0_15 = arith.constant 0 : index
    %c0_16 = arith.constant 0 : index
    %16 = vector.load %arg10[%c0_15, %c0_16] : memref<64x1xf32, #tpu.memory_space<vmem>>, vector<64x1xf32>
    %17 = vector.broadcast %16 : vector<64x1xf32> to vector<64x128xf32>
    %18 = arith.addf %15, %17 : vector<64x128xf32>
    %19 = math.tanh %18 : vector<64x128xf32>
    %c0_17 = arith.constant 0 : index
    %c0_18 = arith.constant 0 : index
    %20 = vector.load %arg11[%c0_17, %c0_18] : memref<55x64xf32, #tpu.memory_space<vmem>>, vector<55x64xf32>
    %cst_19 = arith.constant dense<0.000000e+00> : vector<55x128xf32>
    %21 = tpu.matmul %20, %19, %cst_19 {dimension_numbers = #tpu.dot_dimension_numbers<[1], [0], [0], [1], [0, 0, 1, 1], [], []>} : vector<55x64xf32>, vector<64x128xf32>, vector<55x128xf32> -> vector<55x128xf32>
    %c0_20 = arith.constant 0 : index
    %c0_21 = arith.constant 0 : index
    %22 = vector.load %arg12[%c0_20, %c0_21] : memref<55x1xf32, #tpu.memory_space<vmem>>, vector<55x1xf32>
    %23 = vector.broadcast %22 : vector<55x1xf32> to vector<55x128xf32>
    %24 = arith.addf %21, %23 : vector<55x128xf32>
    %25 = vector.broadcast %1 : vector<1x128xf32> to vector<55x128xf32>
    %26 = arith.mulf %24, %25 : vector<55x128xf32>
    %27 = vector.extract_strided_slice %26 {offsets = [0, 0], sizes = [5, 128], strides = [1, 1]} : vector<55x128xf32> to vector<5x128xf32>
    %28 = vector.extract_strided_slice %26 {offsets = [5, 0], sizes = [5, 128], strides = [1, 1]} : vector<55x128xf32> to vector<5x128xf32>
    %29 = vector.extract_strided_slice %26 {offsets = [10, 0], sizes = [5, 128], strides = [1, 1]} : vector<55x128xf32> to vector<5x128xf32>
    %30 = vector.extract_strided_slice %26 {offsets = [15, 0], sizes = [5, 128], strides = [1, 1]} : vector<55x128xf32> to vector<5x128xf32>
    %31 = vector.extract_strided_slice %26 {offsets = [20, 0], sizes = [5, 128], strides = [1, 1]} : vector<55x128xf32> to vector<5x128xf32>
    %32 = vector.extract_strided_slice %26 {offsets = [25, 0], sizes = [5, 128], strides = [1, 1]} : vector<55x128xf32> to vector<5x128xf32>
    %33 = vector.extract_strided_slice %26 {offsets = [30, 0], sizes = [5, 128], strides = [1, 1]} : vector<55x128xf32> to vector<5x128xf32>
    %34 = vector.extract_strided_slice %26 {offsets = [35, 0], sizes = [5, 128], strides = [1, 1]} : vector<55x128xf32> to vector<5x128xf32>
    %35 = vector.extract_strided_slice %26 {offsets = [40, 0], sizes = [5, 128], strides = [1, 1]} : vector<55x128xf32> to vector<5x128xf32>
    %36 = vector.extract_strided_slice %26 {offsets = [45, 0], sizes = [5, 128], strides = [1, 1]} : vector<55x128xf32> to vector<5x128xf32>
    %cst_22 = arith.constant 0.000000e+00 : f32
    %37 = vector.broadcast %cst_22 : f32 to vector<5x128xf32>
    %38 = arith.maximumf %36, %37 : vector<5x128xf32>
    %39 = math.absf %36 : vector<5x128xf32>
    %cst_23 = arith.constant 0.000000e+00 : f32
    %40 = vector.broadcast %cst_23 : f32 to vector<5x128xf32>
    %41 = arith.subf %40, %39 : vector<5x128xf32>
    %42 = math.exp %41 : vector<5x128xf32>
    %cst_24 = arith.constant 1.000000e+00 : f32
    %43 = vector.broadcast %cst_24 : f32 to vector<5x128xf32>
    %44 = arith.addf %43, %42 : vector<5x128xf32>
    %45 = math.log %44 : vector<5x128xf32>
    %46 = arith.addf %38, %45 : vector<5x128xf32>
    %cst_25 = arith.constant 9.99999997E-7 : f32
    %cst_26 = arith.constant 1.000000e+06 : f32
    %47 = vector.broadcast %cst_25 : f32 to vector<5x128xf32>
    %48 = arith.maximumf %47, %46 : vector<5x128xf32>
    %49 = vector.broadcast %cst_26 : f32 to vector<5x128xf32>
    %50 = arith.minimumf %49, %48 : vector<5x128xf32>
    %51 = vector.extract_strided_slice %26 {offsets = [50, 0], sizes = [5, 128], strides = [1, 1]} : vector<55x128xf32> to vector<5x128xf32>
    %cst_27 = arith.constant 0.000000e+00 : f32
    %52 = vector.broadcast %cst_27 : f32 to vector<5x128xf32>
    %53 = arith.maximumf %51, %52 : vector<5x128xf32>
    %54 = math.absf %51 : vector<5x128xf32>
    %cst_28 = arith.constant 0.000000e+00 : f32
    %55 = vector.broadcast %cst_28 : f32 to vector<5x128xf32>
    %56 = arith.subf %55, %54 : vector<5x128xf32>
    %57 = math.exp %56 : vector<5x128xf32>
    %cst_29 = arith.constant 1.000000e+00 : f32
    %58 = vector.broadcast %cst_29 : f32 to vector<5x128xf32>
    %59 = arith.addf %58, %57 : vector<5x128xf32>
    %60 = math.log %59 : vector<5x128xf32>
    %61 = arith.addf %53, %60 : vector<5x128xf32>
    %cst_30 = arith.constant 9.99999997E-7 : f32
    %cst_31 = arith.constant 1.000000e+06 : f32
    %62 = vector.broadcast %cst_30 : f32 to vector<5x128xf32>
    %63 = arith.maximumf %62, %61 : vector<5x128xf32>
    %64 = vector.broadcast %cst_31 : f32 to vector<5x128xf32>
    %65 = arith.minimumf %64, %63 : vector<5x128xf32>
    %66 = math.sqrt %50 : vector<5x128xf32>
    %67 = math.sqrt %65 : vector<5x128xf32>
    %68 = arith.mulf %27, %27 : vector<5x128xf32>
    %69 = arith.mulf %28, %28 : vector<5x128xf32>
    %70 = arith.addf %68, %69 : vector<5x128xf32>
    %71 = arith.mulf %29, %29 : vector<5x128xf32>
    %72 = arith.addf %70, %71 : vector<5x128xf32>
    %73 = arith.mulf %50, %72 : vector<5x128xf32>
    %74 = arith.addf %73, %65 : vector<5x128xf32>
    %c0_32 = arith.constant 0 : index
    %c0_33 = arith.constant 0 : index
    %75 = vector.load %arg14[%c0_32, %c0_33] : memref<45x128xf32, #tpu.memory_space<vmem>>, vector<5x128xf32>
    tpu.vector_store %arg14[%c0_32, %c0_33], %74 {strides = array<i32>} : memref<45x128xf32, #tpu.memory_space<vmem>>, vector<5x128xf32>,
    %76 = arith.mulf %27, %30 : vector<5x128xf32>
    %77 = arith.mulf %28, %31 : vector<5x128xf32>
    %78 = arith.addf %76, %77 : vector<5x128xf32>
    %79 = arith.mulf %29, %32 : vector<5x128xf32>
    %80 = arith.addf %78, %79 : vector<5x128xf32>
    %81 = arith.mulf %50, %80 : vector<5x128xf32>
    %c5 = arith.constant 5 : index
    %c0_34 = arith.constant 0 : index
    %82 = vector.load %arg14[%c5, %c0_34] : memref<45x128xf32, #tpu.memory_space<vmem>>, vector<5x128xf32>
    tpu.vector_store %arg14[%c5, %c0_34], %81 {strides = array<i32>} : memref<45x128xf32, #tpu.memory_space<vmem>>, vector<5x128xf32>,
    %c15 = arith.constant 15 : index
    %c0_35 = arith.constant 0 : index
    %83 = vector.load %arg14[%c15, %c0_35] : memref<45x128xf32, #tpu.memory_space<vmem>>, vector<5x128xf32>
    tpu.vector_store %arg14[%c15, %c0_35], %81 {strides = array<i32>} : memref<45x128xf32, #tpu.memory_space<vmem>>, vector<5x128xf32>,
    %84 = arith.mulf %27, %33 : vector<5x128xf32>
    %85 = arith.mulf %28, %34 : vector<5x128xf32>
    %86 = arith.addf %84, %85 : vector<5x128xf32>
    %87 = arith.mulf %29, %35 : vector<5x128xf32>
    %88 = arith.addf %86, %87 : vector<5x128xf32>
    %89 = arith.mulf %50, %88 : vector<5x128xf32>
    %c10 = arith.constant 10 : index
    %c0_36 = arith.constant 0 : index
    %90 = vector.load %arg14[%c10, %c0_36] : memref<45x128xf32, #tpu.memory_space<vmem>>, vector<5x128xf32>
    tpu.vector_store %arg14[%c10, %c0_36], %89 {strides = array<i32>} : memref<45x128xf32, #tpu.memory_space<vmem>>, vector<5x128xf32>,
    %c30 = arith.constant 30 : index
    %c0_37 = arith.constant 0 : index
    %91 = vector.load %arg14[%c30, %c0_37] : memref<45x128xf32, #tpu.memory_space<vmem>>, vector<5x128xf32>
    tpu.vector_store %arg14[%c30, %c0_37], %89 {strides = array<i32>} : memref<45x128xf32, #tpu.memory_space<vmem>>, vector<5x128xf32>,
    %92 = arith.mulf %30, %30 : vector<5x128xf32>
    %93 = arith.mulf %31, %31 : vector<5x128xf32>
    %94 = arith.addf %92, %93 : vector<5x128xf32>
    %95 = arith.mulf %32, %32 : vector<5x128xf32>
    %96 = arith.addf %94, %95 : vector<5x128xf32>
    %97 = arith.mulf %50, %96 : vector<5x128xf32>
    %98 = arith.addf %97, %65 : vector<5x128xf32>
    %c20 = arith.constant 20 : index
    %c0_38 = arith.constant 0 : index
    %99 = vector.load %arg14[%c20, %c0_38] : memref<45x128xf32, #tpu.memory_space<vmem>>, vector<5x128xf32>
    tpu.vector_store %arg14[%c20, %c0_38], %98 {strides = array<i32>} : memref<45x128xf32, #tpu.memory_space<vmem>>, vector<5x128xf32>,
    %100 = arith.mulf %30, %33 : vector<5x128xf32>
    %101 = arith.mulf %31, %34 : vector<5x128xf32>
    %102 = arith.addf %100, %101 : vector<5x128xf32>
    %103 = arith.mulf %32, %35 : vector<5x128xf32>
    %104 = arith.addf %102, %103 : vector<5x128xf32>
    %105 = arith.mulf %50, %104 : vector<5x128xf32>
    %c25 = arith.constant 25 : index
    %c0_39 = arith.constant 0 : index
    %106 = vector.load %arg14[%c25, %c0_39] : memref<45x128xf32, #tpu.memory_space<vmem>>, vector<5x128xf32>
    tpu.vector_store %arg14[%c25, %c0_39], %105 {strides = array<i32>} : memref<45x128xf32, #tpu.memory_space<vmem>>, vector<5x128xf32>,
    %c35 = arith.constant 35 : index
    %c0_40 = arith.constant 0 : index
    %107 = vector.load %arg14[%c35, %c0_40] : memref<45x128xf32, #tpu.memory_space<vmem>>, vector<5x128xf32>
    tpu.vector_store %arg14[%c35, %c0_40], %105 {strides = array<i32>} : memref<45x128xf32, #tpu.memory_space<vmem>>, vector<5x128xf32>,
    %108 = arith.mulf %33, %33 : vector<5x128xf32>
    %109 = arith.mulf %34, %34 : vector<5x128xf32>
    %110 = arith.addf %108, %109 : vector<5x128xf32>
    %111 = arith.mulf %35, %35 : vector<5x128xf32>
    %112 = arith.addf %110, %111 : vector<5x128xf32>
    %113 = arith.mulf %50, %112 : vector<5x128xf32>
    %114 = arith.addf %113, %65 : vector<5x128xf32>
    %c40 = arith.constant 40 : index
    %c0_41 = arith.constant 0 : index
    %115 = vector.load %arg14[%c40, %c0_41] : memref<45x128xf32, #tpu.memory_space<vmem>>, vector<5x128xf32>
    tpu.vector_store %arg14[%c40, %c0_41], %114 {strides = array<i32>} : memref<45x128xf32, #tpu.memory_space<vmem>>, vector<5x128xf32>,
    %c0_42 = arith.constant 0 : index
    %c0_43 = arith.constant 0 : index
    %116 = vector.load %arg3[%c0_42, %c0_43] : memref<15x128xf32, #tpu.memory_space<vmem>>, vector<5x128xf32>
    %c5_44 = arith.constant 5 : index
    %c0_45 = arith.constant 0 : index
    %117 = vector.load %arg3[%c5_44, %c0_45] : memref<15x128xf32, #tpu.memory_space<vmem>>, vector<5x128xf32>
    %c10_46 = arith.constant 10 : index
    %c0_47 = arith.constant 0 : index
    %118 = vector.load %arg3[%c10_46, %c0_47] : memref<15x128xf32, #tpu.memory_space<vmem>>, vector<5x128xf32>
    %c0_48 = arith.constant 0 : index
    %c0_49 = arith.constant 0 : index
    %119 = vector.load %arg4[%c0_48, %c0_49] : memref<15x128xf32, #tpu.memory_space<vmem>>, vector<5x128xf32>
    %c5_50 = arith.constant 5 : index
    %c0_51 = arith.constant 0 : index
    %120 = vector.load %arg4[%c5_50, %c0_51] : memref<15x128xf32, #tpu.memory_space<vmem>>, vector<5x128xf32>
    %c10_52 = arith.constant 10 : index
    %c0_53 = arith.constant 0 : index
    %121 = vector.load %arg4[%c10_52, %c0_53] : memref<15x128xf32, #tpu.memory_space<vmem>>, vector<5x128xf32>
    %122 = arith.mulf %27, %116 : vector<5x128xf32>
    %123 = arith.mulf %28, %117 : vector<5x128xf32>
    %124 = arith.addf %122, %123 : vector<5x128xf32>
    %125 = arith.mulf %29, %118 : vector<5x128xf32>
    %126 = arith.addf %124, %125 : vector<5x128xf32>
    %127 = arith.mulf %66, %126 : vector<5x128xf32>
    %128 = arith.mulf %67, %119 : vector<5x128xf32>
    %129 = arith.addf %127, %128 : vector<5x128xf32>
    %130 = arith.mulf %30, %116 : vector<5x128xf32>
    %131 = arith.mulf %31, %117 : vector<5x128xf32>
    %132 = arith.addf %130, %131 : vector<5x128xf32>
    %133 = arith.mulf %32, %118 : vector<5x128xf32>
    %134 = arith.addf %132, %133 : vector<5x128xf32>
    %135 = arith.mulf %66, %134 : vector<5x128xf32>
    %136 = arith.mulf %67, %120 : vector<5x128xf32>
    %137 = arith.addf %135, %136 : vector<5x128xf32>
    %138 = arith.mulf %33, %116 : vector<5x128xf32>
    %139 = arith.mulf %34, %117 : vector<5x128xf32>
    %140 = arith.addf %138, %139 : vector<5x128xf32>
    %141 = arith.mulf %35, %118 : vector<5x128xf32>
    %142 = arith.addf %140, %141 : vector<5x128xf32>
    %143 = arith.mulf %66, %142 : vector<5x128xf32>
    %144 = arith.mulf %67, %121 : vector<5x128xf32>
    %145 = arith.addf %143, %144 : vector<5x128xf32>
    %146 = vector.extract_strided_slice %0 {offsets = [0, 0], sizes = [5, 128], strides = [1, 1]} : vector<20x128xf32> to vector<5x128xf32>
    %147 = vector.extract_strided_slice %0 {offsets = [5, 0], sizes = [5, 128], strides = [1, 1]} : vector<20x128xf32> to vector<5x128xf32>
    %148 = vector.extract_strided_slice %0 {offsets = [10, 0], sizes = [5, 128], strides = [1, 1]} : vector<20x128xf32> to vector<5x128xf32>
    %cst_54 = arith.constant 0.000000e+00 : f32
    %149 = vector.broadcast %cst_54 : f32 to vector<5x128xf32>
    %150 = arith.cmpf one, %146, %149 : vector<5x128xf32>
    %cst_55 = arith.constant 0.000000e+00 : f32
    %151 = vector.broadcast %cst_55 : f32 to vector<5x128xf32>
    %152 = arith.cmpf one, %147, %151 : vector<5x128xf32>
    %153 = arith.ori %150, %152 : vector<5x128xi1>
    %cst_56 = arith.constant 0.000000e+00 : f32
    %154 = vector.broadcast %cst_56 : f32 to vector<5x128xf32>
    %155 = arith.cmpf one, %148, %154 : vector<5x128xf32>
    %156 = arith.ori %153, %155 : vector<5x128xi1>
    %157 = arith.extui %156 : vector<5x128xi1> to vector<5x128xi32>
    %158 = arith.sitofp %157 : vector<5x128xi32> to vector<5x128xf32>
    %159 = arith.addf %146, %129 : vector<5x128xf32>
    %160 = arith.mulf %159, %158 : vector<5x128xf32>
    %161 = arith.addf %147, %137 : vector<5x128xf32>
    %162 = arith.mulf %161, %158 : vector<5x128xf32>
    %163 = arith.addf %148, %145 : vector<5x128xf32>
    %164 = arith.mulf %163, %158 : vector<5x128xf32>
    %c0_57 = arith.constant 0 : index
    %c0_58 = arith.constant 0 : index
    %165 = vector.load %arg15[%c0_57, %c0_58] : memref<5x128xf32, #tpu.memory_space<vmem>>, vector<5x128xf32>
    tpu.vector_store %arg15[%c0_57, %c0_58], %158 {strides = array<i32>} : memref<5x128xf32, #tpu.memory_space<vmem>>, vector<5x128xf32>,
    %166 = vector.broadcast %1 : vector<1x128xf32> to vector<5x128xf32>
    %167 = arith.mulf %160, %166 : vector<5x128xf32>
    %c0_59 = arith.constant 0 : index
    %c0_60 = arith.constant 0 : index
    %168 = vector.load %arg13[%c0_59, %c0_60] : memref<37x128xf32, #tpu.memory_space<vmem>>, vector<5x128xf32>
    tpu.vector_store %arg13[%c0_59, %c0_60], %167 {strides = array<i32>} : memref<37x128xf32, #tpu.memory_space<vmem>>, vector<5x128xf32>,
    %169 = vector.broadcast %1 : vector<1x128xf32> to vector<5x128xf32>
    %170 = arith.mulf %162, %169 : vector<5x128xf32>
    %c5_61 = arith.constant 5 : index
    %c0_62 = arith.constant 0 : index
    %171 = vector.load %arg13[%c5_61, %c0_62] : memref<37x128xf32, #tpu.memory_space<vmem>>, vector<5x128xf32>
    tpu.vector_store %arg13[%c5_61, %c0_62], %170 {strides = array<i32>} : memref<37x128xf32, #tpu.memory_space<vmem>>, vector<5x128xf32>,
    %172 = vector.broadcast %1 : vector<1x128xf32> to vector<5x128xf32>
    %173 = arith.mulf %164, %172 : vector<5x128xf32>
    %c10_63 = arith.constant 10 : index
    %c0_64 = arith.constant 0 : index
    %174 = vector.load %arg13[%c10_63, %c0_64] : memref<37x128xf32, #tpu.memory_space<vmem>>, vector<5x128xf32>
    tpu.vector_store %arg13[%c10_63, %c0_64], %173 {strides = array<i32>} : memref<37x128xf32, #tpu.memory_space<vmem>>, vector<5x128xf32>,
    %cst_65 = arith.constant 0.000000e+00 : f32
    %175 = vector.broadcast %cst_65 : f32 to vector<1x128xf32>
    %176 = vector.extract_strided_slice %160 {offsets = [1, 0], sizes = [4, 128], strides = [1, 1]} : vector<5x128xf32> to vector<4x128xf32>
    %177 = vector.extract_strided_slice %160 {offsets = [0, 0], sizes = [4, 128], strides = [1, 1]} : vector<5x128xf32> to vector<4x128xf32>
    %178 = arith.subf %176, %177 : vector<4x128xf32>
    %179 = vector.extract_strided_slice %162 {offsets = [1, 0], sizes = [4, 128], strides = [1, 1]} : vector<5x128xf32> to vector<4x128xf32>
    %180 = vector.extract_strided_slice %162 {offsets = [0, 0], sizes = [4, 128], strides = [1, 1]} : vector<5x128xf32> to vector<4x128xf32>
    %181 = arith.subf %179, %180 : vector<4x128xf32>
    %182 = vector.extract_strided_slice %164 {offsets = [1, 0], sizes = [4, 128], strides = [1, 1]} : vector<5x128xf32> to vector<4x128xf32>
    %183 = vector.extract_strided_slice %164 {offsets = [0, 0], sizes = [4, 128], strides = [1, 1]} : vector<5x128xf32> to vector<4x128xf32>
    %184 = arith.subf %182, %183 : vector<4x128xf32>
    %185 = arith.mulf %178, %178 : vector<4x128xf32>
    %186 = arith.mulf %181, %181 : vector<4x128xf32>
    %187 = arith.addf %185, %186 : vector<4x128xf32>
    %188 = arith.mulf %184, %184 : vector<4x128xf32>
    %189 = arith.addf %187, %188 : vector<4x128xf32>
    %190 = math.sqrt %189 : vector<4x128xf32>
    %191 = vector.extract_strided_slice %160 {offsets = [4, 0], sizes = [1, 128], strides = [1, 1]} : vector<5x128xf32> to vector<1x128xf32>
    %192 = vector.extract_strided_slice %160 {offsets = [0, 0], sizes = [1, 128], strides = [1, 1]} : vector<5x128xf32> to vector<1x128xf32>
    %193 = arith.subf %191, %192 : vector<1x128xf32>
    %194 = arith.mulf %193, %193 : vector<1x128xf32>
    %195 = vector.extract_strided_slice %162 {offsets = [4, 0], sizes = [1, 128], strides = [1, 1]} : vector<5x128xf32> to vector<1x128xf32>
    %196 = vector.extract_strided_slice %162 {offsets = [0, 0], sizes = [1, 128], strides = [1, 1]} : vector<5x128xf32> to vector<1x128xf32>
    %197 = arith.subf %195, %196 : vector<1x128xf32>
    %198 = arith.mulf %197, %197 : vector<1x128xf32>
    %199 = arith.addf %194, %198 : vector<1x128xf32>
    %200 = vector.extract_strided_slice %164 {offsets = [4, 0], sizes = [1, 128], strides = [1, 1]} : vector<5x128xf32> to vector<1x128xf32>
    %201 = vector.extract_strided_slice %164 {offsets = [0, 0], sizes = [1, 128], strides = [1, 1]} : vector<5x128xf32> to vector<1x128xf32>
    %202 = arith.subf %200, %201 : vector<1x128xf32>
    %203 = arith.mulf %202, %202 : vector<1x128xf32>
    %204 = arith.addf %199, %203 : vector<1x128xf32>
    %205 = math.sqrt %204 : vector<1x128xf32>
    %206 = tpu.concatenate %190, %175, %205 in 0 : vector<4x128xf32>, vector<1x128xf32>, vector<1x128xf32> -> vector<6x128xf32>
    %207 = vector.broadcast %1 : vector<1x128xf32> to vector<6x128xf32>
    %208 = arith.mulf %206, %207 : vector<6x128xf32>
    %c15_66 = arith.constant 15 : index
    %c0_67 = arith.constant 0 : index
    %209 = vector.load %arg13[%c15_66, %c0_67] : memref<37x128xf32, #tpu.memory_space<vmem>>, vector<6x128xf32>
    tpu.vector_store %arg13[%c15_66, %c0_67], %208 {strides = array<i32>} : memref<37x128xf32, #tpu.memory_space<vmem>>, vector<6x128xf32>,
    %cst_68 = arith.constant 0.000000e+00 : f32
    %210 = vector.broadcast %cst_68 : f32 to vector<5x128xf32>
    %211 = arith.cmpf oeq, %160, %210 : vector<5x128xf32>
    %212 = math.absf %162 : vector<5x128xf32>
    %cst_69 = arith.constant 2.41421366 : f32
    %213 = vector.broadcast %cst_69 : f32 to vector<5x128xf32>
    %214 = arith.cmpf ogt, %212, %213 : vector<5x128xf32>
    %cst_70 = arith.constant 0.414213568 : f32
    %215 = vector.broadcast %cst_70 : f32 to vector<5x128xf32>
    %216 = arith.cmpf ogt, %212, %215 : vector<5x128xf32>
    %cst_71 = arith.constant -1.000000e+00 : f32
    %217 = vector.broadcast %cst_71 : f32 to vector<5x128xf32>
    %218 = arith.divf %217, %212 : vector<5x128xf32>
    %cst_72 = arith.constant 1.000000e+00 : f32
    %219 = vector.broadcast %cst_72 : f32 to vector<5x128xf32>
    %220 = arith.subf %212, %219 : vector<5x128xf32>
    %cst_73 = arith.constant 1.000000e+00 : f32
    %221 = vector.broadcast %cst_73 : f32 to vector<5x128xf32>
    %222 = arith.addf %212, %221 : vector<5x128xf32>
    %223 = arith.divf %220, %222 : vector<5x128xf32>
    %224 = arith.select %216, %223, %212 : vector<5x128xi1>, vector<5x128xf32>
    %225 = arith.select %214, %218, %224 : vector<5x128xi1>, vector<5x128xf32>
    %cst_74 = arith.constant 0.785398185 : f32
    %cst_75 = arith.constant 0.000000e+00 : f32
    %226 = vector.broadcast %cst_74 : f32 to vector<5x128xf32>
    %227 = vector.broadcast %cst_75 : f32 to vector<5x128xf32>
    %228 = arith.select %216, %226, %227 : vector<5x128xi1>, vector<5x128xf32>
    %cst_76 = arith.constant 1.57079637 : f32
    %229 = vector.broadcast %cst_76 : f32 to vector<5x128xf32>
    %230 = arith.select %214, %229, %228 : vector<5x128xi1>, vector<5x128xf32>
    %231 = arith.mulf %225, %225 : vector<5x128xf32>
    %cst_77 = arith.constant 0.0805374458 : f32
    %232 = vector.broadcast %cst_77 : f32 to vector<5x128xf32>
    %233 = arith.mulf %232, %231 : vector<5x128xf32>
    %cst_78 = arith.constant 0.138776854 : f32
    %234 = vector.broadcast %cst_78 : f32 to vector<5x128xf32>
    %235 = arith.subf %233, %234 : vector<5x128xf32>
    %236 = arith.mulf %235, %231 : vector<5x128xf32>
    %cst_79 = arith.constant 0.199777111 : f32
    %237 = vector.broadcast %cst_79 : f32 to vector<5x128xf32>
    %238 = arith.addf %236, %237 : vector<5x128xf32>
    %239 = arith.mulf %238, %231 : vector<5x128xf32>
    %cst_80 = arith.constant 0.333329499 : f32
    %240 = vector.broadcast %cst_80 : f32 to vector<5x128xf32>
    %241 = arith.subf %239, %240 : vector<5x128xf32>
    %242 = arith.mulf %241, %231 : vector<5x128xf32>
    %243 = arith.mulf %242, %225 : vector<5x128xf32>
    %244 = arith.addf %243, %225 : vector<5x128xf32>
    %245 = arith.addf %230, %244 : vector<5x128xf32>
    %cst_81 = arith.constant 0.000000e+00 : f32
    %246 = vector.broadcast %cst_81 : f32 to vector<5x128xf32>
    %247 = arith.cmpf olt, %162, %246 : vector<5x128xf32>
    %cst_82 = arith.constant 0.000000e+00 : f32
    %248 = vector.broadcast %cst_82 : f32 to vector<5x128xf32>
    %249 = arith.subf %248, %245 : vector<5x128xf32>
    %250 = arith.select %247, %249, %245 : vector<5x128xi1>, vector<5x128xf32>
    %cst_83 = arith.constant 0.000000e+00 : f32
    %251 = vector.broadcast %cst_83 : f32 to vector<5x128xf32>
    %252 = arith.cmpf ogt, %162, %251 : vector<5x128xf32>
    %cst_84 = arith.constant 0.000000e+00 : f32
    %253 = vector.broadcast %cst_84 : f32 to vector<5x128xf32>
    %254 = arith.cmpf olt, %162, %253 : vector<5x128xf32>
    %cst_85 = arith.constant -1.57079637 : f32
    %cst_86 = arith.constant 0.000000e+00 : f32
    %255 = vector.broadcast %cst_85 : f32 to vector<5x128xf32>
    %256 = vector.broadcast %cst_86 : f32 to vector<5x128xf32>
    %257 = arith.select %254, %255, %256 : vector<5x128xi1>, vector<5x128xf32>
    %cst_87 = arith.constant 1.57079637 : f32
    %258 = vector.broadcast %cst_87 : f32 to vector<5x128xf32>
    %259 = arith.select %252, %258, %257 : vector<5x128xi1>, vector<5x128xf32>
    %260 = arith.select %211, %250, %259 : vector<5x128xi1>, vector<5x128xf32>
    %261 = vector.extract_strided_slice %260 {offsets = [1, 0], sizes = [4, 128], strides = [1, 1]} : vector<5x128xf32> to vector<4x128xf32>
    %262 = vector.extract_strided_slice %260 {offsets = [0, 0], sizes = [4, 128], strides = [1, 1]} : vector<5x128xf32> to vector<4x128xf32>
    %263 = arith.subf %261, %262 : vector<4x128xf32>
    %264 = vector.broadcast %1 : vector<1x128xf32> to vector<4x128xf32>
    %265 = arith.mulf %263, %264 : vector<4x128xf32>
    %c21 = arith.constant 21 : index
    %c0_88 = arith.constant 0 : index
    %266 = vector.load %arg13[%c21, %c0_88] : memref<37x128xf32, #tpu.memory_space<vmem>>, vector<4x128xf32>
    tpu.vector_store %arg13[%c21, %c0_88], %265 {strides = array<i32>} : memref<37x128xf32, #tpu.memory_space<vmem>>, vector<4x128xf32>,
    %cst_89 = arith.constant 0.000000e+00 : f32
    %267 = vector.broadcast %cst_89 : f32 to vector<3x128xf32>
    %c25_90 = arith.constant 25 : index
    %c0_91 = arith.constant 0 : index
    %268 = vector.load %arg13[%c25_90, %c0_91] : memref<37x128xf32, #tpu.memory_space<vmem>>, vector<3x128xf32>
    tpu.vector_store %arg13[%c25_90, %c0_91], %267 {strides = array<i32>} : memref<37x128xf32, #tpu.memory_space<vmem>>, vector<3x128xf32>,
    %cst_92 = arith.constant dense<0.000000e+00> : vector<128xf32>
    %269 = vector.multi_reduction <add>, %158, %cst_92 [0] : vector<5x128xf32> to vector<128xf32>
    %270 = vector.shape_cast %269 : vector<128xf32> to vector<1x128xf32>
    %271 = arith.mulf %160, %160 : vector<5x128xf32>
    %cst_93 = arith.constant dense<0.000000e+00> : vector<128xf32>
    %272 = vector.multi_reduction <add>, %271, %cst_93 [0] : vector<5x128xf32> to vector<128xf32>
    %273 = vector.shape_cast %272 : vector<128xf32> to vector<1x128xf32>
    %274 = arith.mulf %160, %162 : vector<5x128xf32>
    %cst_94 = arith.constant dense<0.000000e+00> : vector<128xf32>
    %275 = vector.multi_reduction <add>, %274, %cst_94 [0] : vector<5x128xf32> to vector<128xf32>
    %276 = vector.shape_cast %275 : vector<128xf32> to vector<1x128xf32>
    %277 = arith.mulf %162, %162 : vector<5x128xf32>
    %cst_95 = arith.constant dense<0.000000e+00> : vector<128xf32>
    %278 = vector.multi_reduction <add>, %277, %cst_95 [0] : vector<5x128xf32> to vector<128xf32>
    %279 = vector.shape_cast %278 : vector<128xf32> to vector<1x128xf32>
    %cst_96 = arith.constant dense<0.000000e+00> : vector<128xf32>
    %280 = vector.multi_reduction <add>, %160, %cst_96 [0] : vector<5x128xf32> to vector<128xf32>
    %281 = vector.shape_cast %280 : vector<128xf32> to vector<1x128xf32>
    %cst_97 = arith.constant dense<0.000000e+00> : vector<128xf32>
    %282 = vector.multi_reduction <add>, %162, %cst_97 [0] : vector<5x128xf32> to vector<128xf32>
    %283 = vector.shape_cast %282 : vector<128xf32> to vector<1x128xf32>
    %284 = arith.mulf %160, %160 : vector<5x128xf32>
    %285 = arith.mulf %162, %162 : vector<5x128xf32>
    %286 = arith.addf %284, %285 : vector<5x128xf32>
    %287 = arith.mulf %160, %286 : vector<5x128xf32>
    %cst_98 = arith.constant dense<0.000000e+00> : vector<128xf32>
    %288 = vector.multi_reduction <add>, %287, %cst_98 [0] : vector<5x128xf32> to vector<128xf32>
    %289 = vector.shape_cast %288 : vector<128xf32> to vector<1x128xf32>
    %cst_99 = arith.constant 0.000000e+00 : f32
    %290 = vector.broadcast %cst_99 : f32 to vector<1x128xf32>
    %291 = arith.subf %290, %289 : vector<1x128xf32>
    %292 = arith.mulf %162, %286 : vector<5x128xf32>
    %cst_100 = arith.constant dense<0.000000e+00> : vector<128xf32>
    %293 = vector.multi_reduction <add>, %292, %cst_100 [0] : vector<5x128xf32> to vector<128xf32>
    %294 = vector.shape_cast %293 : vector<128xf32> to vector<1x128xf32>
    %cst_101 = arith.constant 0.000000e+00 : f32
    %295 = vector.broadcast %cst_101 : f32 to vector<1x128xf32>
    %296 = arith.subf %295, %294 : vector<1x128xf32>
    %cst_102 = arith.constant dense<0.000000e+00> : vector<128xf32>
    %297 = vector.multi_reduction <add>, %286, %cst_102 [0] : vector<5x128xf32> to vector<128xf32>
    %298 = vector.shape_cast %297 : vector<128xf32> to vector<1x128xf32>
    %cst_103 = arith.constant 0.000000e+00 : f32
    %299 = vector.broadcast %cst_103 : f32 to vector<1x128xf32>
    %300 = arith.subf %299, %298 : vector<1x128xf32>
    %301 = arith.mulf %279, %270 : vector<1x128xf32>
    %302 = arith.mulf %283, %283 : vector<1x128xf32>
    %303 = arith.subf %301, %302 : vector<1x128xf32>
    %304 = arith.mulf %273, %303 : vector<1x128xf32>
    %305 = arith.mulf %276, %270 : vector<1x128xf32>
    %306 = arith.mulf %283, %281 : vector<1x128xf32>
    %307 = arith.subf %305, %306 : vector<1x128xf32>
    %308 = arith.mulf %276, %307 : vector<1x128xf32>
    %309 = arith.subf %304, %308 : vector<1x128xf32>
    %310 = arith.mulf %276, %283 : vector<1x128xf32>
    %311 = arith.mulf %279, %281 : vector<1x128xf32>
    %312 = arith.subf %310, %311 : vector<1x128xf32>
    %313 = arith.mulf %281, %312 : vector<1x128xf32>
    %314 = arith.addf %309, %313 : vector<1x128xf32>
    %cst_104 = arith.constant 3.000000e+00 : f32
    %315 = vector.broadcast %cst_104 : f32 to vector<1x128xf32>
    %316 = arith.cmpf oge, %270, %315 : vector<1x128xf32>
    %317 = math.absf %314 : vector<1x128xf32>
    %cst_105 = arith.constant 9.99999996E-13 : f32
    %318 = vector.broadcast %cst_105 : f32 to vector<1x128xf32>
    %319 = arith.cmpf ogt, %317, %318 : vector<1x128xf32>
    %320 = arith.andi %316, %319 : vector<1x128xi1>
    %321 = arith.extui %320 : vector<1x128xi1> to vector<1x128xi32>
    %322 = arith.sitofp %321 : vector<1x128xi32> to vector<1x128xf32>
    %cst_106 = arith.constant 1.000000e+00 : f32
    %323 = vector.broadcast %cst_106 : f32 to vector<1x128xf32>
    %324 = arith.select %320, %314, %323 : vector<1x128xi1>, vector<1x128xf32>
    %cst_107 = arith.constant 1.000000e+00 : f32
    %325 = vector.broadcast %cst_107 : f32 to vector<1x128xf32>
    %326 = arith.divf %325, %324 : vector<1x128xf32>
    %327 = arith.mulf %279, %270 : vector<1x128xf32>
    %328 = arith.mulf %283, %283 : vector<1x128xf32>
    %329 = arith.subf %327, %328 : vector<1x128xf32>
    %330 = arith.mulf %281, %283 : vector<1x128xf32>
    %331 = arith.mulf %276, %270 : vector<1x128xf32>
    %332 = arith.subf %330, %331 : vector<1x128xf32>
    %333 = arith.mulf %276, %283 : vector<1x128xf32>
    %334 = arith.mulf %281, %279 : vector<1x128xf32>
    %335 = arith.subf %333, %334 : vector<1x128xf32>
    %336 = arith.mulf %273, %270 : vector<1x128xf32>
    %337 = arith.mulf %281, %281 : vector<1x128xf32>
    %338 = arith.subf %336, %337 : vector<1x128xf32>
    %339 = arith.mulf %281, %276 : vector<1x128xf32>
    %340 = arith.mulf %273, %283 : vector<1x128xf32>
    %341 = arith.subf %339, %340 : vector<1x128xf32>
    %342 = arith.mulf %273, %279 : vector<1x128xf32>
    %343 = arith.mulf %276, %276 : vector<1x128xf32>
    %344 = arith.subf %342, %343 : vector<1x128xf32>
    %345 = arith.mulf %329, %291 : vector<1x128xf32>
    %346 = arith.mulf %332, %296 : vector<1x128xf32>
    %347 = arith.addf %345, %346 : vector<1x128xf32>
    %348 = arith.mulf %335, %300 : vector<1x128xf32>
    %349 = arith.addf %347, %348 : vector<1x128xf32>
    %350 = arith.mulf %322, %349 : vector<1x128xf32>
    %351 = arith.mulf %350, %326 : vector<1x128xf32>
    %352 = arith.mulf %332, %291 : vector<1x128xf32>
    %353 = arith.mulf %338, %296 : vector<1x128xf32>
    %354 = arith.addf %352, %353 : vector<1x128xf32>
    %355 = arith.mulf %341, %300 : vector<1x128xf32>
    %356 = arith.addf %354, %355 : vector<1x128xf32>
    %357 = arith.mulf %322, %356 : vector<1x128xf32>
    %358 = arith.mulf %357, %326 : vector<1x128xf32>
    %359 = arith.mulf %335, %291 : vector<1x128xf32>
    %360 = arith.mulf %341, %296 : vector<1x128xf32>
    %361 = arith.addf %359, %360 : vector<1x128xf32>
    %362 = arith.mulf %344, %300 : vector<1x128xf32>
    %363 = arith.addf %361, %362 : vector<1x128xf32>
    %364 = arith.mulf %322, %363 : vector<1x128xf32>
    %365 = arith.mulf %364, %326 : vector<1x128xf32>
    %366 = arith.mulf %351, %351 : vector<1x128xf32>
    %367 = arith.mulf %358, %358 : vector<1x128xf32>
    %368 = arith.addf %366, %367 : vector<1x128xf32>
    %cst_108 = arith.constant 4.000000e+00 : f32
    %369 = vector.broadcast %cst_108 : f32 to vector<1x128xf32>
    %370 = arith.mulf %369, %365 : vector<1x128xf32>
    %371 = arith.subf %368, %370 : vector<1x128xf32>
    %cst_109 = arith.constant 0.000000e+00 : f32
    %372 = vector.broadcast %cst_109 : f32 to vector<1x128xf32>
    %373 = arith.maximumf %371, %372 : vector<1x128xf32>
    %374 = math.sqrt %373 : vector<1x128xf32>
    %cst_110 = arith.constant 2.000000e+02 : f32
    %375 = vector.broadcast %cst_110 : f32 to vector<1x128xf32>
    %376 = arith.divf %374, %375 : vector<1x128xf32>
    %377 = vector.extract_strided_slice %160 {offsets = [0, 0], sizes = [1, 128], strides = [1, 1]} : vector<5x128xf32> to vector<1x128xf32>
    %378 = vector.extract_strided_slice %162 {offsets = [0, 0], sizes = [1, 128], strides = [1, 1]} : vector<5x128xf32> to vector<1x128xf32>
    %379 = vector.extract_strided_slice %164 {offsets = [0, 0], sizes = [1, 128], strides = [1, 1]} : vector<5x128xf32> to vector<1x128xf32>
    %380 = vector.extract_strided_slice %158 {offsets = [4, 0], sizes = [1, 128], strides = [1, 1]} : vector<5x128xf32> to vector<1x128xf32>
    %cst_111 = arith.constant 0.000000e+00 : f32
    %381 = vector.broadcast %cst_111 : f32 to vector<1x128xf32>
    %382 = arith.cmpf ogt, %380, %381 : vector<1x128xf32>
    %383 = vector.extract_strided_slice %160 {offsets = [4, 0], sizes = [1, 128], strides = [1, 1]} : vector<5x128xf32> to vector<1x128xf32>
    %384 = arith.select %382, %383, %377 : vector<1x128xi1>, vector<1x128xf32>
    %385 = vector.extract_strided_slice %162 {offsets = [4, 0], sizes = [1, 128], strides = [1, 1]} : vector<5x128xf32> to vector<1x128xf32>
    %386 = arith.select %382, %385, %378 : vector<1x128xi1>, vector<1x128xf32>
    %387 = vector.extract_strided_slice %164 {offsets = [4, 0], sizes = [1, 128], strides = [1, 1]} : vector<5x128xf32> to vector<1x128xf32>
    %388 = arith.select %382, %387, %379 : vector<1x128xi1>, vector<1x128xf32>
    %389 = vector.extract_strided_slice %158 {offsets = [3, 0], sizes = [1, 128], strides = [1, 1]} : vector<5x128xf32> to vector<1x128xf32>
    %cst_112 = arith.constant 0.000000e+00 : f32
    %390 = vector.broadcast %cst_112 : f32 to vector<1x128xf32>
    %391 = arith.cmpf ogt, %389, %390 : vector<1x128xf32>
    %392 = vector.extract_strided_slice %160 {offsets = [3, 0], sizes = [1, 128], strides = [1, 1]} : vector<5x128xf32> to vector<1x128xf32>
    %393 = arith.select %391, %392, %384 : vector<1x128xi1>, vector<1x128xf32>
    %394 = vector.extract_strided_slice %162 {offsets = [3, 0], sizes = [1, 128], strides = [1, 1]} : vector<5x128xf32> to vector<1x128xf32>
    %395 = arith.select %391, %394, %386 : vector<1x128xi1>, vector<1x128xf32>
    %396 = vector.extract_strided_slice %164 {offsets = [3, 0], sizes = [1, 128], strides = [1, 1]} : vector<5x128xf32> to vector<1x128xf32>
    %397 = arith.select %391, %396, %388 : vector<1x128xi1>, vector<1x128xf32>
    %398 = vector.extract_strided_slice %158 {offsets = [2, 0], sizes = [1, 128], strides = [1, 1]} : vector<5x128xf32> to vector<1x128xf32>
    %cst_113 = arith.constant 0.000000e+00 : f32
    %399 = vector.broadcast %cst_113 : f32 to vector<1x128xf32>
    %400 = arith.cmpf ogt, %398, %399 : vector<1x128xf32>
    %401 = vector.extract_strided_slice %160 {offsets = [2, 0], sizes = [1, 128], strides = [1, 1]} : vector<5x128xf32> to vector<1x128xf32>
    %402 = arith.select %400, %401, %393 : vector<1x128xi1>, vector<1x128xf32>
    %403 = vector.extract_strided_slice %162 {offsets = [2, 0], sizes = [1, 128], strides = [1, 1]} : vector<5x128xf32> to vector<1x128xf32>
    %404 = arith.select %400, %403, %395 : vector<1x128xi1>, vector<1x128xf32>
    %405 = vector.extract_strided_slice %164 {offsets = [2, 0], sizes = [1, 128], strides = [1, 1]} : vector<5x128xf32> to vector<1x128xf32>
    %406 = arith.select %400, %405, %397 : vector<1x128xi1>, vector<1x128xf32>
    %407 = vector.extract_strided_slice %158 {offsets = [1, 0], sizes = [1, 128], strides = [1, 1]} : vector<5x128xf32> to vector<1x128xf32>
    %cst_114 = arith.constant 0.000000e+00 : f32
    %408 = vector.broadcast %cst_114 : f32 to vector<1x128xf32>
    %409 = arith.cmpf ogt, %407, %408 : vector<1x128xf32>
    %410 = vector.extract_strided_slice %160 {offsets = [1, 0], sizes = [1, 128], strides = [1, 1]} : vector<5x128xf32> to vector<1x128xf32>
    %411 = arith.select %409, %410, %402 : vector<1x128xi1>, vector<1x128xf32>
    %412 = vector.extract_strided_slice %162 {offsets = [1, 0], sizes = [1, 128], strides = [1, 1]} : vector<5x128xf32> to vector<1x128xf32>
    %413 = arith.select %409, %412, %404 : vector<1x128xi1>, vector<1x128xf32>
    %414 = vector.extract_strided_slice %164 {offsets = [1, 0], sizes = [1, 128], strides = [1, 1]} : vector<5x128xf32> to vector<1x128xf32>
    %415 = arith.select %409, %414, %406 : vector<1x128xi1>, vector<1x128xf32>
    %416 = vector.extract_strided_slice %158 {offsets = [0, 0], sizes = [1, 128], strides = [1, 1]} : vector<5x128xf32> to vector<1x128xf32>
    %cst_115 = arith.constant 0.000000e+00 : f32
    %417 = vector.broadcast %cst_115 : f32 to vector<1x128xf32>
    %418 = arith.cmpf ogt, %416, %417 : vector<1x128xf32>
    %419 = vector.extract_strided_slice %160 {offsets = [0, 0], sizes = [1, 128], strides = [1, 1]} : vector<5x128xf32> to vector<1x128xf32>
    %420 = arith.select %418, %419, %411 : vector<1x128xi1>, vector<1x128xf32>
    %421 = vector.extract_strided_slice %162 {offsets = [0, 0], sizes = [1, 128], strides = [1, 1]} : vector<5x128xf32> to vector<1x128xf32>
    %422 = arith.select %418, %421, %413 : vector<1x128xi1>, vector<1x128xf32>
    %423 = vector.extract_strided_slice %164 {offsets = [0, 0], sizes = [1, 128], strides = [1, 1]} : vector<5x128xf32> to vector<1x128xf32>
    %424 = arith.select %418, %423, %415 : vector<1x128xi1>, vector<1x128xf32>
    %425 = vector.extract_strided_slice %160 {offsets = [4, 0], sizes = [1, 128], strides = [1, 1]} : vector<5x128xf32> to vector<1x128xf32>
    %426 = vector.extract_strided_slice %162 {offsets = [4, 0], sizes = [1, 128], strides = [1, 1]} : vector<5x128xf32> to vector<1x128xf32>
    %427 = vector.extract_strided_slice %164 {offsets = [4, 0], sizes = [1, 128], strides = [1, 1]} : vector<5x128xf32> to vector<1x128xf32>
    %428 = vector.extract_strided_slice %158 {offsets = [0, 0], sizes = [1, 128], strides = [1, 1]} : vector<5x128xf32> to vector<1x128xf32>
    %cst_116 = arith.constant 0.000000e+00 : f32
    %429 = vector.broadcast %cst_116 : f32 to vector<1x128xf32>
    %430 = arith.cmpf ogt, %428, %429 : vector<1x128xf32>
    %431 = vector.extract_strided_slice %160 {offsets = [0, 0], sizes = [1, 128], strides = [1, 1]} : vector<5x128xf32> to vector<1x128xf32>
    %432 = arith.select %430, %431, %425 : vector<1x128xi1>, vector<1x128xf32>
    %433 = vector.extract_strided_slice %162 {offsets = [0, 0], sizes = [1, 128], strides = [1, 1]} : vector<5x128xf32> to vector<1x128xf32>
    %434 = arith.select %430, %433, %426 : vector<1x128xi1>, vector<1x128xf32>
    %435 = vector.extract_strided_slice %164 {offsets = [0, 0], sizes = [1, 128], strides = [1, 1]} : vector<5x128xf32> to vector<1x128xf32>
    %436 = arith.select %430, %435, %427 : vector<1x128xi1>, vector<1x128xf32>
    %437 = vector.extract_strided_slice %158 {offsets = [1, 0], sizes = [1, 128], strides = [1, 1]} : vector<5x128xf32> to vector<1x128xf32>
    %cst_117 = arith.constant 0.000000e+00 : f32
    %438 = vector.broadcast %cst_117 : f32 to vector<1x128xf32>
    %439 = arith.cmpf ogt, %437, %438 : vector<1x128xf32>
    %440 = vector.extract_strided_slice %160 {offsets = [1, 0], sizes = [1, 128], strides = [1, 1]} : vector<5x128xf32> to vector<1x128xf32>
    %441 = arith.select %439, %440, %432 : vector<1x128xi1>, vector<1x128xf32>
    %442 = vector.extract_strided_slice %162 {offsets = [1, 0], sizes = [1, 128], strides = [1, 1]} : vector<5x128xf32> to vector<1x128xf32>
    %443 = arith.select %439, %442, %434 : vector<1x128xi1>, vector<1x128xf32>
    %444 = vector.extract_strided_slice %164 {offsets = [1, 0], sizes = [1, 128], strides = [1, 1]} : vector<5x128xf32> to vector<1x128xf32>
    %445 = arith.select %439, %444, %436 : vector<1x128xi1>, vector<1x128xf32>
    %446 = vector.extract_strided_slice %158 {offsets = [2, 0], sizes = [1, 128], strides = [1, 1]} : vector<5x128xf32> to vector<1x128xf32>
    %cst_118 = arith.constant 0.000000e+00 : f32
    %447 = vector.broadcast %cst_118 : f32 to vector<1x128xf32>
    %448 = arith.cmpf ogt, %446, %447 : vector<1x128xf32>
    %449 = vector.extract_strided_slice %160 {offsets = [2, 0], sizes = [1, 128], strides = [1, 1]} : vector<5x128xf32> to vector<1x128xf32>
    %450 = arith.select %448, %449, %441 : vector<1x128xi1>, vector<1x128xf32>
    %451 = vector.extract_strided_slice %162 {offsets = [2, 0], sizes = [1, 128], strides = [1, 1]} : vector<5x128xf32> to vector<1x128xf32>
    %452 = arith.select %448, %451, %443 : vector<1x128xi1>, vector<1x128xf32>
    %453 = vector.extract_strided_slice %164 {offsets = [2, 0], sizes = [1, 128], strides = [1, 1]} : vector<5x128xf32> to vector<1x128xf32>
    %454 = arith.select %448, %453, %445 : vector<1x128xi1>, vector<1x128xf32>
    %455 = vector.extract_strided_slice %158 {offsets = [3, 0], sizes = [1, 128], strides = [1, 1]} : vector<5x128xf32> to vector<1x128xf32>
    %cst_119 = arith.constant 0.000000e+00 : f32
    %456 = vector.broadcast %cst_119 : f32 to vector<1x128xf32>
    %457 = arith.cmpf ogt, %455, %456 : vector<1x128xf32>
    %458 = vector.extract_strided_slice %160 {offsets = [3, 0], sizes = [1, 128], strides = [1, 1]} : vector<5x128xf32> to vector<1x128xf32>
    %459 = arith.select %457, %458, %450 : vector<1x128xi1>, vector<1x128xf32>
    %460 = vector.extract_strided_slice %162 {offsets = [3, 0], sizes = [1, 128], strides = [1, 1]} : vector<5x128xf32> to vector<1x128xf32>
    %461 = arith.select %457, %460, %452 : vector<1x128xi1>, vector<1x128xf32>
    %462 = vector.extract_strided_slice %164 {offsets = [3, 0], sizes = [1, 128], strides = [1, 1]} : vector<5x128xf32> to vector<1x128xf32>
    %463 = arith.select %457, %462, %454 : vector<1x128xi1>, vector<1x128xf32>
    %464 = vector.extract_strided_slice %158 {offsets = [4, 0], sizes = [1, 128], strides = [1, 1]} : vector<5x128xf32> to vector<1x128xf32>
    %cst_120 = arith.constant 0.000000e+00 : f32
    %465 = vector.broadcast %cst_120 : f32 to vector<1x128xf32>
    %466 = arith.cmpf ogt, %464, %465 : vector<1x128xf32>
    %467 = vector.extract_strided_slice %160 {offsets = [4, 0], sizes = [1, 128], strides = [1, 1]} : vector<5x128xf32> to vector<1x128xf32>
    %468 = arith.select %466, %467, %459 : vector<1x128xi1>, vector<1x128xf32>
    %469 = vector.extract_strided_slice %162 {offsets = [4, 0], sizes = [1, 128], strides = [1, 1]} : vector<5x128xf32> to vector<1x128xf32>
    %470 = arith.select %466, %469, %461 : vector<1x128xi1>, vector<1x128xf32>
    %471 = vector.extract_strided_slice %164 {offsets = [4, 0], sizes = [1, 128], strides = [1, 1]} : vector<5x128xf32> to vector<1x128xf32>
    %472 = arith.select %466, %471, %463 : vector<1x128xi1>, vector<1x128xf32>
    %473 = arith.subf %472, %424 : vector<1x128xf32>
    %cst_121 = arith.constant 1.000000e+02 : f32
    %474 = vector.broadcast %cst_121 : f32 to vector<1x128xf32>
    %475 = arith.divf %473, %474 : vector<1x128xf32>
    %476 = arith.subf %468, %420 : vector<1x128xf32>
    %477 = arith.mulf %476, %476 : vector<1x128xf32>
    %478 = arith.subf %470, %422 : vector<1x128xf32>
    %479 = arith.mulf %478, %478 : vector<1x128xf32>
    %480 = arith.addf %477, %479 : vector<1x128xf32>
    %cst_122 = arith.constant 1.000000e+04 : f32
    %481 = vector.broadcast %cst_122 : f32 to vector<1x128xf32>
    %482 = arith.divf %480, %481 : vector<1x128xf32>
    %cst_123 = arith.constant 2.000000e+00 : f32
    %483 = vector.broadcast %cst_123 : f32 to vector<1x128xf32>
    %484 = arith.mulf %483, %376 : vector<1x128xf32>
    %485 = arith.mulf %484, %376 : vector<1x128xf32>
    %486 = arith.subf %485, %482 : vector<1x128xf32>
    %cst_124 = arith.constant 9.99999993E-9 : f32
    %487 = vector.broadcast %cst_124 : f32 to vector<1x128xf32>
    %488 = arith.addf %485, %487 : vector<1x128xf32>
    %489 = arith.divf %486, %488 : vector<1x128xf32>
    %cst_125 = arith.constant -0.999998986 : f32
    %cst_126 = arith.constant 0.999998986 : f32
    %490 = vector.broadcast %cst_125 : f32 to vector<1x128xf32>
    %491 = arith.maximumf %490, %489 : vector<1x128xf32>
    %492 = vector.broadcast %cst_126 : f32 to vector<1x128xf32>
    %493 = arith.minimumf %492, %491 : vector<1x128xf32>
    %494 = arith.mulf %493, %493 : vector<1x128xf32>
    %cst_127 = arith.constant 1.000000e+00 : f32
    %495 = vector.broadcast %cst_127 : f32 to vector<1x128xf32>
    %496 = arith.subf %495, %494 : vector<1x128xf32>
    %cst_128 = arith.constant 9.99999996E-13 : f32
    %497 = vector.broadcast %cst_128 : f32 to vector<1x128xf32>
    %498 = arith.maximumf %496, %497 : vector<1x128xf32>
    %499 = math.sqrt %498 : vector<1x128xf32>
    %500 = arith.divf %493, %499 : vector<1x128xf32>
    %501 = math.absf %500 : vector<1x128xf32>
    %cst_129 = arith.constant 2.41421366 : f32
    %502 = vector.broadcast %cst_129 : f32 to vector<1x128xf32>
    %503 = arith.cmpf ogt, %501, %502 : vector<1x128xf32>
    %cst_130 = arith.constant 0.414213568 : f32
    %504 = vector.broadcast %cst_130 : f32 to vector<1x128xf32>
    %505 = arith.cmpf ogt, %501, %504 : vector<1x128xf32>
    %cst_131 = arith.constant -1.000000e+00 : f32
    %506 = vector.broadcast %cst_131 : f32 to vector<1x128xf32>
    %507 = arith.divf %506, %501 : vector<1x128xf32>
    %cst_132 = arith.constant 1.000000e+00 : f32
    %508 = vector.broadcast %cst_132 : f32 to vector<1x128xf32>
    %509 = arith.subf %501, %508 : vector<1x128xf32>
    %cst_133 = arith.constant 1.000000e+00 : f32
    %510 = vector.broadcast %cst_133 : f32 to vector<1x128xf32>
    %511 = arith.addf %501, %510 : vector<1x128xf32>
    %512 = arith.divf %509, %511 : vector<1x128xf32>
    %513 = arith.select %505, %512, %501 : vector<1x128xi1>, vector<1x128xf32>
    %514 = arith.select %503, %507, %513 : vector<1x128xi1>, vector<1x128xf32>
    %cst_134 = arith.constant 0.785398185 : f32
    %cst_135 = arith.constant 0.000000e+00 : f32
    %515 = vector.broadcast %cst_134 : f32 to vector<1x128xf32>
    %516 = vector.broadcast %cst_135 : f32 to vector<1x128xf32>
    %517 = arith.select %505, %515, %516 : vector<1x128xi1>, vector<1x128xf32>
    %cst_136 = arith.constant 1.57079637 : f32
    %518 = vector.broadcast %cst_136 : f32 to vector<1x128xf32>
    %519 = arith.select %503, %518, %517 : vector<1x128xi1>, vector<1x128xf32>
    %520 = arith.mulf %514, %514 : vector<1x128xf32>
    %cst_137 = arith.constant 0.0805374458 : f32
    %521 = vector.broadcast %cst_137 : f32 to vector<1x128xf32>
    %522 = arith.mulf %521, %520 : vector<1x128xf32>
    %cst_138 = arith.constant 0.138776854 : f32
    %523 = vector.broadcast %cst_138 : f32 to vector<1x128xf32>
    %524 = arith.subf %522, %523 : vector<1x128xf32>
    %525 = arith.mulf %524, %520 : vector<1x128xf32>
    %cst_139 = arith.constant 0.199777111 : f32
    %526 = vector.broadcast %cst_139 : f32 to vector<1x128xf32>
    %527 = arith.addf %525, %526 : vector<1x128xf32>
    %528 = arith.mulf %527, %520 : vector<1x128xf32>
    %cst_140 = arith.constant 0.333329499 : f32
    %529 = vector.broadcast %cst_140 : f32 to vector<1x128xf32>
    %530 = arith.subf %528, %529 : vector<1x128xf32>
    %531 = arith.mulf %530, %520 : vector<1x128xf32>
    %532 = arith.mulf %531, %514 : vector<1x128xf32>
    %533 = arith.addf %532, %514 : vector<1x128xf32>
    %534 = arith.addf %519, %533 : vector<1x128xf32>
    %cst_141 = arith.constant 0.000000e+00 : f32
    %535 = vector.broadcast %cst_141 : f32 to vector<1x128xf32>
    %536 = arith.cmpf olt, %500, %535 : vector<1x128xf32>
    %cst_142 = arith.constant 0.000000e+00 : f32
    %537 = vector.broadcast %cst_142 : f32 to vector<1x128xf32>
    %538 = arith.subf %537, %534 : vector<1x128xf32>
    %539 = arith.select %536, %538, %534 : vector<1x128xi1>, vector<1x128xf32>
    %cst_143 = arith.constant 1.57079637 : f32
    %540 = vector.broadcast %cst_143 : f32 to vector<1x128xf32>
    %541 = arith.subf %540, %539 : vector<1x128xf32>
    %542 = arith.divf %475, %541 : vector<1x128xf32>
    %cst_144 = arith.constant 0.000000e+00 : f32
    %543 = vector.broadcast %cst_144 : f32 to vector<1x128xf32>
    %544 = arith.subf %543, %351 : vector<1x128xf32>
    %cst_145 = arith.constant 2.000000e+00 : f32
    %545 = vector.broadcast %cst_145 : f32 to vector<1x128xf32>
    %546 = arith.divf %544, %545 : vector<1x128xf32>
    %cst_146 = arith.constant 0.000000e+00 : f32
    %547 = vector.broadcast %cst_146 : f32 to vector<1x128xf32>
    %548 = arith.subf %547, %358 : vector<1x128xf32>
    %cst_147 = arith.constant 2.000000e+00 : f32
    %549 = vector.broadcast %cst_147 : f32 to vector<1x128xf32>
    %550 = arith.divf %548, %549 : vector<1x128xf32>
    %551 = tpu.concatenate %376, %546, %550, %542 in 0 : vector<1x128xf32>, vector<1x128xf32>, vector<1x128xf32>, vector<1x128xf32> -> vector<4x128xf32>
    %552 = vector.broadcast %1 : vector<1x128xf32> to vector<4x128xf32>
    %553 = arith.mulf %551, %552 : vector<4x128xf32>
    %c28 = arith.constant 28 : index
    %c0_148 = arith.constant 0 : index
    %554 = vector.load %arg13[%c28, %c0_148] : memref<37x128xf32, #tpu.memory_space<vmem>>, vector<4x128xf32>
    tpu.vector_store %arg13[%c28, %c0_148], %553 {strides = array<i32>} : memref<37x128xf32, #tpu.memory_space<vmem>>, vector<4x128xf32>,
    %555 = vector.extract_strided_slice %0 {offsets = [15, 0], sizes = [5, 128], strides = [1, 1]} : vector<20x128xf32> to vector<5x128xf32>
    %556 = vector.broadcast %1 : vector<1x128xf32> to vector<5x128xf32>
    %557 = arith.mulf %555, %556 : vector<5x128xf32>
    %c32 = arith.constant 32 : index
    %c0_149 = arith.constant 0 : index
    %558 = vector.load %arg13[%c32, %c0_149] : memref<37x128xf32, #tpu.memory_space<vmem>>, vector<5x128xf32>
    tpu.vector_store %arg13[%c32, %c0_149], %557 {strides = array<i32>} : memref<37x128xf32, #tpu.memory_space<vmem>>, vector<5x128xf32>,
    return
  }
  func.func @transform_0(%arg0: i32) -> (i32, i32) {
    %c0_i32 = arith.constant 0 : i32
    %c0_i32_0 = arith.constant 0 : i32
    return %c0_i32, %arg0 : i32, i32
  }
  func.func @transform_1(%arg0: i32) -> (i32, i32) {
    %c0_i32 = arith.constant 0 : i32
    %c0_i32_0 = arith.constant 0 : i32
    return %c0_i32, %arg0 : i32, i32
  }
  func.func @transform_2(%arg0: i32) -> (i32, i32) {
    %c0_i32 = arith.constant 0 : i32
    %c0_i32_0 = arith.constant 0 : i32
    return %c0_i32, %arg0 : i32, i32
  }
  func.func @transform_3(%arg0: i32) -> (i32, i32) {
    %c0_i32 = arith.constant 0 : i32
    %c0_i32_0 = arith.constant 0 : i32
    return %c0_i32, %arg0 : i32, i32
  }
  func.func @transform_4(%arg0: i32) -> (i32, i32) {
    %c0_i32 = arith.constant 0 : i32
    %c0_i32_0 = arith.constant 0 : i32
    %c0_i32_1 = arith.constant 0 : i32
    return %c0_i32, %c0_i32_0 : i32, i32
  }
  func.func @transform_5(%arg0: i32) -> (i32, i32) {
    %c0_i32 = arith.constant 0 : i32
    %c0_i32_0 = arith.constant 0 : i32
    %c0_i32_1 = arith.constant 0 : i32
    return %c0_i32, %c0_i32_0 : i32, i32
  }
  func.func @transform_6(%arg0: i32) -> (i32, i32) {
    %c0_i32 = arith.constant 0 : i32
    %c0_i32_0 = arith.constant 0 : i32
    %c0_i32_1 = arith.constant 0 : i32
    return %c0_i32, %c0_i32_0 : i32, i32
  }
  func.func @transform_7(%arg0: i32) -> (i32, i32) {
    %c0_i32 = arith.constant 0 : i32
    %c0_i32_0 = arith.constant 0 : i32
    %c0_i32_1 = arith.constant 0 : i32
    return %c0_i32, %c0_i32_0 : i32, i32
  }
  func.func @transform_8(%arg0: i32) -> (i32, i32) {
    %c0_i32 = arith.constant 0 : i32
    %c0_i32_0 = arith.constant 0 : i32
    %c0_i32_1 = arith.constant 0 : i32
    return %c0_i32, %c0_i32_0 : i32, i32
  }
  func.func @transform_9(%arg0: i32) -> (i32, i32) {
    %c0_i32 = arith.constant 0 : i32
    %c0_i32_0 = arith.constant 0 : i32
    %c0_i32_1 = arith.constant 0 : i32
    return %c0_i32, %c0_i32_0 : i32, i32
  }
  func.func @transform_10(%arg0: i32) -> (i32, i32) {
    %c0_i32 = arith.constant 0 : i32
    %c0_i32_0 = arith.constant 0 : i32
    %c0_i32_1 = arith.constant 0 : i32
    return %c0_i32, %c0_i32_0 : i32, i32
  }
  func.func @transform_11(%arg0: i32) -> (i32, i32) {
    %c0_i32 = arith.constant 0 : i32
    %c0_i32_0 = arith.constant 0 : i32
    %c0_i32_1 = arith.constant 0 : i32
    return %c0_i32, %c0_i32_0 : i32, i32
  }
  func.func @transform_12(%arg0: i32) -> (i32, i32) {
    %c0_i32 = arith.constant 0 : i32
    %c0_i32_0 = arith.constant 0 : i32
    return %c0_i32, %arg0 : i32, i32
  }
  func.func @transform_13(%arg0: i32) -> (i32, i32) {
    %c0_i32 = arith.constant 0 : i32
    %c0_i32_0 = arith.constant 0 : i32
    return %c0_i32, %arg0 : i32, i32
  }
  func.func @transform_14(%arg0: i32) -> (i32, i32) {
    %c0_i32 = arith.constant 0 : i32
    %c0_i32_0 = arith.constant 0 : i32
    return %c0_i32, %arg0 : i32, i32
  }
}

module attributes {stable_mosaic.version = 11 : i64} {
  func.func @_head_kernel(%arg0: i32, %arg1: memref<37x128xf32, #tpu.memory_space<vmem>>, %arg2: memref<1x128xf32, #tpu.memory_space<vmem>>, %arg3: memref<2x37xf32, #tpu.memory_space<vmem>>, %arg4: memref<2x1xf32, #tpu.memory_space<vmem>>, %arg5: memref<2x128xf32, #tpu.memory_space<vmem>>, %arg6: memref<38x128xf32, #tpu.memory_space<vmem>>) attributes {dimension_semantics = [#tpu.dimension_semantics<arbitrary>], iteration_bounds = array<i64: 1>, scalar_prefetch = 0 : i64, scratch_operands = 1 : i64, tpu.core_type = #tpu.core_type<tc>, window_params = [{transform_indices = @transform_0, window_bounds = array<i64: 37, 128>}, {transform_indices = @transform_1, window_bounds = array<i64: 1, 128>}, {pipeline_mode = #tpu.pipeline_mode<synchronous>, transform_indices = @transform_2, window_bounds = array<i64: 2, 37>}, {pipeline_mode = #tpu.pipeline_mode<synchronous>, transform_indices = @transform_3, window_bounds = array<i64: 2, 1>}, {pipeline_mode = #tpu.pipeline_mode<synchronous>, transform_indices = @transform_4, window_bounds = array<i64: 2, 128>}]} {
    %c0_i32 = arith.constant 0 : i32
    %0 = arith.cmpi eq, %arg0, %c0_i32 : i32
    %1 = arith.extui %0 : i1 to i32
    %c0_i32_0 = arith.constant 0 : i32
    %2 = arith.cmpi ne, %1, %c0_i32_0 : i32
    scf.if %2 {
      %cst_11 = arith.constant 0.000000e+00 : f32
      %30 = vector.broadcast %cst_11 : f32 to vector<38x128xf32>
      %c0_12 = arith.constant 0 : index
      %c0_13 = arith.constant 0 : index
      %31 = vector.load %arg6[%c0_12, %c0_13] : memref<38x128xf32, #tpu.memory_space<vmem>>, vector<38x128xf32>
      tpu.vector_store %arg6[%c0_12, %c0_13], %30 {strides = array<i32>} : memref<38x128xf32, #tpu.memory_space<vmem>>, vector<38x128xf32>,
    } else {
    }
    %3 = tpu.iota {dimensions = array<i32: 0>} : vector<128x128xi32>
    %c128_i32 = arith.constant 128 : i32
    %4 = arith.muli %arg0, %c128_i32 : i32
    %5 = vector.broadcast %4 : i32 to vector<128x128xi32>
    %6 = arith.addi %3, %5 : vector<128x128xi32>
    %7 = tpu.iota {dimensions = array<i32: 1>} : vector<128x128xi32>
    %c8_i32 = arith.constant 8 : i32
    %8 = vector.broadcast %c8_i32 : i32 to vector<128x128xi32>
    %9 = arith.muli %7, %8 : vector<128x128xi32>
    %10 = arith.cmpi sge, %6, %9 : vector<128x128xi32>
    %c8_i32_1 = arith.constant 8 : i32
    %11 = vector.broadcast %c8_i32_1 : i32 to vector<128x128xi32>
    %12 = arith.addi %9, %11 : vector<128x128xi32>
    %13 = arith.cmpi slt, %6, %12 : vector<128x128xi32>
    %14 = arith.andi %10, %13 : vector<128x128xi1>
    %c16_i32 = arith.constant 16 : i32
    %15 = vector.broadcast %c16_i32 : i32 to vector<128x128xi32>
    %16 = arith.cmpi slt, %6, %15 : vector<128x128xi32>
    %17 = arith.andi %14, %16 : vector<128x128xi1>
    %18 = arith.extui %17 : vector<128x128xi1> to vector<128x128xi32>
    %19 = arith.sitofp %18 : vector<128x128xi32> to vector<128x128xf32>
    %c0 = arith.constant 0 : index
    %c0_2 = arith.constant 0 : index
    %20 = vector.load %arg1[%c0, %c0_2] : memref<37x128xf32, #tpu.memory_space<vmem>>, vector<37x128xf32>
    %c0_3 = arith.constant 0 : index
    %c0_4 = arith.constant 0 : index
    %21 = vector.load %arg2[%c0_3, %c0_4] : memref<1x128xf32, #tpu.memory_space<vmem>>, vector<1x128xf32>
    %22 = tpu.concatenate %20, %21 in 0 : vector<37x128xf32>, vector<1x128xf32> -> vector<38x128xf32>
    %c0_5 = arith.constant 0 : index
    %c0_6 = arith.constant 0 : index
    %23 = vector.load %arg6[%c0_5, %c0_6] : memref<38x128xf32, #tpu.memory_space<vmem>>, vector<38x128xf32>
    %cst = arith.constant dense<0.000000e+00> : vector<38x128xf32>
    %24 = tpu.matmul %22, %19, %cst {dimension_numbers = #tpu.dot_dimension_numbers<[1], [0], [0], [1], [0, 0, 1, 1], [], []>} : vector<38x128xf32>, vector<128x128xf32>, vector<38x128xf32> -> vector<38x128xf32>
    %25 = arith.addf %23, %24 : vector<38x128xf32>
    %c0_7 = arith.constant 0 : index
    %c0_8 = arith.constant 0 : index
    %26 = vector.load %arg6[%c0_7, %c0_8] : memref<38x128xf32, #tpu.memory_space<vmem>>, vector<38x128xf32>
    tpu.vector_store %arg6[%c0_7, %c0_8], %25 {strides = array<i32>} : memref<38x128xf32, #tpu.memory_space<vmem>>, vector<38x128xf32>,
    %c0_i32_9 = arith.constant 0 : i32
    %27 = arith.cmpi eq, %arg0, %c0_i32_9 : i32
    %28 = arith.extui %27 : i1 to i32
    %c0_i32_10 = arith.constant 0 : i32
    %29 = arith.cmpi ne, %28, %c0_i32_10 : i32
    scf.if %29 {
      %c0_11 = arith.constant 0 : index
      %c0_12 = arith.constant 0 : index
      %30 = vector.load %arg6[%c0_11, %c0_12] : memref<38x128xf32, #tpu.memory_space<vmem>>, vector<37x128xf32>
      %c37 = arith.constant 37 : index
      %c0_13 = arith.constant 0 : index
      %31 = vector.load %arg6[%c37, %c0_13] : memref<38x128xf32, #tpu.memory_space<vmem>>, vector<1x128xf32>
      %cst_14 = arith.constant 9.99999993E-9 : f32
      %32 = vector.broadcast %cst_14 : f32 to vector<1x128xf32>
      %33 = arith.addf %31, %32 : vector<1x128xf32>
      %34 = vector.broadcast %33 : vector<1x128xf32> to vector<37x128xf32>
      %35 = arith.divf %30, %34 : vector<37x128xf32>
      %c0_15 = arith.constant 0 : index
      %c0_16 = arith.constant 0 : index
      %36 = vector.load %arg3[%c0_15, %c0_16] : memref<2x37xf32, #tpu.memory_space<vmem>>, vector<2x37xf32>
      %cst_17 = arith.constant dense<0.000000e+00> : vector<2x128xf32>
      %37 = tpu.matmul %36, %35, %cst_17 {dimension_numbers = #tpu.dot_dimension_numbers<[1], [0], [0], [1], [0, 0, 1, 1], [], []>} : vector<2x37xf32>, vector<37x128xf32>, vector<2x128xf32> -> vector<2x128xf32>
      %c0_18 = arith.constant 0 : index
      %c0_19 = arith.constant 0 : index
      %38 = vector.load %arg4[%c0_18, %c0_19] : memref<2x1xf32, #tpu.memory_space<vmem>>, vector<2x1xf32>
      %39 = vector.broadcast %38 : vector<2x1xf32> to vector<2x128xf32>
      %40 = arith.addf %37, %39 : vector<2x128xf32>
      %c0_20 = arith.constant 0 : index
      %c0_21 = arith.constant 0 : index
      %41 = vector.load %arg5[%c0_20, %c0_21] : memref<2x128xf32, #tpu.memory_space<vmem>>, vector<2x128xf32>
      tpu.vector_store %arg5[%c0_20, %c0_21], %40 {strides = array<i32>} : memref<2x128xf32, #tpu.memory_space<vmem>>, vector<2x128xf32>,
    } else {
    }
    return
  }
  func.func @transform_0(%arg0: i32) -> (i32, i32) {
    %c0_i32 = arith.constant 0 : i32
    %c0_i32_0 = arith.constant 0 : i32
    return %c0_i32, %arg0 : i32, i32
  }
  func.func @transform_1(%arg0: i32) -> (i32, i32) {
    %c0_i32 = arith.constant 0 : i32
    %c0_i32_0 = arith.constant 0 : i32
    return %c0_i32, %arg0 : i32, i32
  }
  func.func @transform_2(%arg0: i32) -> (i32, i32) {
    %c0_i32 = arith.constant 0 : i32
    %c0_i32_0 = arith.constant 0 : i32
    %c0_i32_1 = arith.constant 0 : i32
    return %c0_i32, %c0_i32_0 : i32, i32
  }
  func.func @transform_3(%arg0: i32) -> (i32, i32) {
    %c0_i32 = arith.constant 0 : i32
    %c0_i32_0 = arith.constant 0 : i32
    %c0_i32_1 = arith.constant 0 : i32
    return %c0_i32, %c0_i32_0 : i32, i32
  }
  func.func @transform_4(%arg0: i32) -> (i32, i32) {
    %c0_i32 = arith.constant 0 : i32
    %c0_i32_0 = arith.constant 0 : i32
    %c0_i32_1 = arith.constant 0 : i32
    return %c0_i32, %c0_i32_0 : i32, i32
  }
}

</mosaic_0001>

<llo_original>
// kernel: bipartite_attention_forward.3
$region0: #{bipartite_attention_forward.3}
  #allocation0 [shape = 'u32[]', space=smem, size = 0x4, offset = 0x4, fixed_abs, tag = 'smem constant byte address 0x4 - core index']
  #allocation1 [shape = 'u32[144,128]{1,0:T(1,128)}', space=vmem, size = 0x12000, scoped, tag = 'internal scratch']
  #allocation2 [shape = 'f32[38,128]{1,0:T(8,128)}', space=vmem, size = 0x5000, scoped, tag = 'scratch operand']
  %s0 = inlined_call_operand.vmem [shape: f32[37,128], index: 0, kind: input, shape index: {}]
  %s1 = inlined_call_operand.vmem [shape: f32[1,128], index: 1, kind: input, shape index: {}]
  %s2 = inlined_call_operand.vmem [shape: f32[2,37], index: 2, kind: input, shape index: {}]
  %s3 = inlined_call_operand.vmem [shape: f32[2,1], index: 3, kind: input, shape index: {}]
  %s4 = inlined_call_operand.vmem [shape: f32[2,128], index: 4, kind: output, shape index: {}]
  %s5 = sld [smem:[#allocation0]]
  $region34: #{bipartite_attention_forward.3} parent=0
    _
  %s7 = ssub.s32 1, %s5
  %s8 = scalar_select 0, %s7, %s5
  // Predicated region
  $region2: #{bipartite_attention_forward.3} parent=0 // pred_check
    _
  $region3: #{bipartite_attention_forward.3} parent=0 // pred_check_branch
    %10 = sbr.rel (0) target = $region5
  $region4: #{bipartite_attention_forward.3} parent=0 // pred_region
    _
  $region5: #{bipartite_attention_forward.3} parent=0 // pred_fallthru
    _
  // Predicated region
  $region6: #{bipartite_attention_forward.3} parent=0 // pred_check
    _
  $region7: #{bipartite_attention_forward.3} parent=0 // pred_check_branch
    %12 = sbr.rel (0) target = $region9
  $region8: #{bipartite_attention_forward.3} parent=0 // pred_region
    _
  $region9: #{bipartite_attention_forward.3} parent=0 // pred_fallthru
    _
  // Predicated region
  $region10: #{bipartite_attention_forward.3} parent=0 // pred_check
    _
  $region11: #{bipartite_attention_forward.3} parent=0 // pred_check_branch
    %14 = sbr.rel (0) target = $region13
  $region12: #{bipartite_attention_forward.3} parent=0 // pred_region
    _
  $region13: #{bipartite_attention_forward.3} parent=0 // pred_fallthru
    _
  // Predicated region
  $region14: #{bipartite_attention_forward.3} parent=0 // pred_check
    _
  $region15: #{bipartite_attention_forward.3} parent=0 // pred_check_branch
    %16 = sbr.rel (0) target = $region17
  $region16: #{bipartite_attention_forward.3} parent=0 // pred_region
    _
  $region17: #{bipartite_attention_forward.3} parent=0 // pred_fallthru
    _
  %p17 = scmp.eq.s32.totalorder 0, 0
  // Predicated region
  $region18: #{bipartite_attention_forward.3} parent=0 // pred_check
    %p18 = pneg %p17
  $region19: #{bipartite_attention_forward.3} parent=0 // pred_check_branch
    %20 = sbr.rel (%p18) target = $region21
  $region20: #{bipartite_attention_forward.3} parent=0 // pred_region
    %21 = vst [vmem:[#allocation2] sm:$0xff] 0.0
    %22 = vst [vmem:[#allocation2 + $0x8] sm:$0xff] 0.0
    %23 = vst [vmem:[#allocation2 + $0x10] sm:$0xff] 0.0
    %24 = vst [vmem:[#allocation2 + $0x18] sm:$0xff] 0.0
    %25 = vst [vmem:[#allocation2 + $0x20] sm:$0x3f] 0.0
  $region21: #{bipartite_attention_forward.3} parent=0 // pred_fallthru
    _
  %v26 = vlaneseq
  %v27 = vshrl.u32 %v26, 7
  %v28 = vadd.s32 %v27, 8
  %v29 = vadd.s32 %v27, 16
  %v30 = vadd.s32 %v27, 24
  %v31 = vadd.s32 %v27, 32
  %v32 = vadd.s32 %v27, 40
  %v33 = vadd.s32 %v27, 48
  %v34 = vadd.s32 %v27, 56
  %v35 = vadd.s32 %v27, 64
  %v36 = vadd.s32 %v27, 72
  %v37 = vadd.s32 %v27, 80
  %v38 = vadd.s32 %v27, 88
  %v39 = vadd.s32 %v27, 96
  %v40 = vadd.s32 %v27, 104
  %v41 = vadd.s32 %v27, 112
  %v42 = vadd.s32 %v27, 120
  %s43 = smul.u32 0, 128
  %v44 = vstv %s43
  %v45 = vadd.s32 %v27, %v44
  %v46 = vadd.s32 %v28, %v44
  %v47 = vadd.s32 %v29, %v44
  %v48 = vadd.s32 %v30, %v44
  %v49 = vadd.s32 %v31, %v44
  %v50 = vadd.s32 %v32, %v44
  %v51 = vadd.s32 %v33, %v44
  %v52 = vadd.s32 %v34, %v44
  %v53 = vadd.s32 %v35, %v44
  %v54 = vadd.s32 %v36, %v44
  %v55 = vadd.s32 %v37, %v44
  %v56 = vadd.s32 %v38, %v44
  %v57 = vadd.s32 %v39, %v44
  %v58 = vadd.s32 %v40, %v44
  %v59 = vadd.s32 %v41, %v44
  %v60 = vadd.s32 %v42, %v44
  %v61 = vlaneseq
  %v62 = vand.u32 %v61, 127
  %v63 = vmul.u32 %v62, 8
  %vm64 = vcmp.ge.s32.totalorder %v45, %v63
  %vm65 = vcmp.ge.s32.totalorder %v46, %v63
  %vm66 = vcmp.ge.s32.totalorder %v47, %v63
  %vm67 = vcmp.ge.s32.totalorder %v48, %v63
  %vm68 = vcmp.ge.s32.totalorder %v49, %v63
  %vm69 = vcmp.ge.s32.totalorder %v50, %v63
  %vm70 = vcmp.ge.s32.totalorder %v51, %v63
  %vm71 = vcmp.ge.s32.totalorder %v52, %v63
  %vm72 = vcmp.ge.s32.totalorder %v53, %v63
  %vm73 = vcmp.ge.s32.totalorder %v54, %v63
  %vm74 = vcmp.ge.s32.totalorder %v55, %v63
  %vm75 = vcmp.ge.s32.totalorder %v56, %v63
  %vm76 = vcmp.ge.s32.totalorder %v57, %v63
  %vm77 = vcmp.ge.s32.totalorder %v58, %v63
  %vm78 = vcmp.ge.s32.totalorder %v59, %v63
  %vm79 = vcmp.ge.s32.totalorder %v60, %v63
  %v80 = vadd.s32 %v63, 8
  %vm81 = vcmp.lt.s32.totalorder %v45, %v80
  %vm82 = vcmp.lt.s32.totalorder %v46, %v80
  %vm83 = vcmp.lt.s32.totalorder %v47, %v80
  %vm84 = vcmp.lt.s32.totalorder %v48, %v80
  %vm85 = vcmp.lt.s32.totalorder %v49, %v80
  %vm86 = vcmp.lt.s32.totalorder %v50, %v80
  %vm87 = vcmp.lt.s32.totalorder %v51, %v80
  %vm88 = vcmp.lt.s32.totalorder %v52, %v80
  %vm89 = vcmp.lt.s32.totalorder %v53, %v80
  %vm90 = vcmp.lt.s32.totalorder %v54, %v80
  %vm91 = vcmp.lt.s32.totalorder %v55, %v80
  %vm92 = vcmp.lt.s32.totalorder %v56, %v80
  %vm93 = vcmp.lt.s32.totalorder %v57, %v80
  %vm94 = vcmp.lt.s32.totalorder %v58, %v80
  %vm95 = vcmp.lt.s32.totalorder %v59, %v80
  %vm96 = vcmp.lt.s32.totalorder %v60, %v80
  %vm97 = vmand %vm64, %vm81
  %vm98 = vmand %vm65, %vm82
  %vm99 = vmand %vm66, %vm83
  %vm100 = vmand %vm67, %vm84
  %vm101 = vmand %vm68, %vm85
  %vm102 = vmand %vm69, %vm86
  %vm103 = vmand %vm70, %vm87
  %vm104 = vmand %vm71, %vm88
  %vm105 = vmand %vm72, %vm89
  %vm106 = vmand %vm73, %vm90
  %vm107 = vmand %vm74, %vm91
  %vm108 = vmand %vm75, %vm92
  %vm109 = vmand %vm76, %vm93
  %vm110 = vmand %vm77, %vm94
  %vm111 = vmand %vm78, %vm95
  %vm112 = vmand %vm79, %vm96
  %vm113 = vcmp.lt.s32.totalorder %v45, 16
  %vm114 = vcmp.lt.s32.totalorder %v46, 16
  %vm115 = vcmp.lt.s32.totalorder %v47, 16
  %vm116 = vcmp.lt.s32.totalorder %v48, 16
  %vm117 = vcmp.lt.s32.totalorder %v49, 16
  %vm118 = vcmp.lt.s32.totalorder %v50, 16
  %vm119 = vcmp.lt.s32.totalorder %v51, 16
  %vm120 = vcmp.lt.s32.totalorder %v52, 16
  %vm121 = vcmp.lt.s32.totalorder %v53, 16
  %vm122 = vcmp.lt.s32.totalorder %v54, 16
  %vm123 = vcmp.lt.s32.totalorder %v55, 16
  %vm124 = vcmp.lt.s32.totalorder %v56, 16
  %vm125 = vcmp.lt.s32.totalorder %v57, 16
  %vm126 = vcmp.lt.s32.totalorder %v58, 16
  %vm127 = vcmp.lt.s32.totalorder %v59, 16
  %vm128 = vcmp.lt.s32.totalorder %v60, 16
  %vm129 = vmand %vm97, %vm113
  %vm130 = vmand %vm98, %vm114
  %vm131 = vmand %vm99, %vm115
  %vm132 = vmand %vm100, %vm116
  %vm133 = vmand %vm101, %vm117
  %vm134 = vmand %vm102, %vm118
  %vm135 = vmand %vm103, %vm119
  %vm136 = vmand %vm104, %vm120
  %vm137 = vmand %vm105, %vm121
  %vm138 = vmand %vm106, %vm122
  %vm139 = vmand %vm107, %vm123
  %vm140 = vmand %vm108, %vm124
  %vm141 = vmand %vm109, %vm125
  %vm142 = vmand %vm110, %vm126
  %vm143 = vmand %vm111, %vm127
  %vm144 = vmand %vm112, %vm128
  %v145 = vsel %vm129, 1, 0
  %v146 = vsel %vm130, 1, 0
  %v147 = vsel %vm131, 1, 0
  %v148 = vsel %vm132, 1, 0
  %v149 = vsel %vm133, 1, 0
  %v150 = vsel %vm134, 1, 0
  %v151 = vsel %vm135, 1, 0
  %v152 = vsel %vm136, 1, 0
  %v153 = vsel %vm137, 1, 0
  %v154 = vsel %vm138, 1, 0
  %v155 = vsel %vm139, 1, 0
  %v156 = vsel %vm140, 1, 0
  %v157 = vsel %vm141, 1, 0
  %v158 = vsel %vm142, 1, 0
  %v159 = vsel %vm143, 1, 0
  %v160 = vsel %vm144, 1, 0
  %v161 = vcvt.s32.f32 %v145
  %v162 = vcvt.s32.f32 %v146
  %v163 = vcvt.s32.f32 %v147
  %v164 = vcvt.s32.f32 %v148
  %v165 = vcvt.s32.f32 %v149
  %v166 = vcvt.s32.f32 %v150
  %v167 = vcvt.s32.f32 %v151
  %v168 = vcvt.s32.f32 %v152
  %v169 = vcvt.s32.f32 %v153
  %v170 = vcvt.s32.f32 %v154
  %v171 = vcvt.s32.f32 %v155
  %v172 = vcvt.s32.f32 %v156
  %v173 = vcvt.s32.f32 %v157
  %v174 = vcvt.s32.f32 %v158
  %v175 = vcvt.s32.f32 %v159
  %v176 = vcvt.s32.f32 %v160
  %v177 = vld [vmem:[%s0] sm:$0xff]
  %v178 = vld [vmem:[%s0 + $0x8] sm:$0xff]
  %v179 = vld [vmem:[%s0 + $0x10] sm:$0xff]
  %v180 = vld [vmem:[%s0 + $0x18] sm:$0xff]
  %v181 = vld [vmem:[%s0 + $0x20] sm:$0x1f]
  %v182 = vld [vmem:[%s1] sm:$0x1]
  %v184 = vlaneseq
  %v185 = vshrl.u32 %v184, 7
  %v186 = vsub.s32 0, %v185
  %v187 = vrot.slane %v182, %v186
  %vm189 = vcmask 1044480
  %v190 = vsel %vm189, %v181, %v187
  %v191 = vld [vmem:[#allocation2] sm:$0xff]
  %v192 = vld [vmem:[#allocation2 + $0x8] sm:$0xff]
  %v193 = vld [vmem:[#allocation2 + $0x10] sm:$0xff]
  %v194 = vld [vmem:[#allocation2 + $0x18] sm:$0xff]
  %v195 = vld [vmem:[#allocation2 + $0x20] sm:$0x3f]
  %196 = vmatprep.subr.mxu0 0.0
  %197 = vmatpush1.msra.mxu0 %v161
  %198 = vmatprep.subr.mxu0 0.0
  %199 = vmatpush1.msra.mxu0 %v162
  %200 = vmatprep.subr.mxu0 0.0
  %201 = vmatpush1.msra.mxu0 %v163
  %202 = vmatprep.subr.mxu0 0.0
  %203 = vmatpush1.msra.mxu0 %v164
  %204 = vmatprep.subr.mxu0 0.0
  %205 = vmatpush1.msra.mxu0 %v165
  %206 = vmatprep.subr.mxu0 0.0
  %207 = vmatpush1.msra.mxu0 %v166
  %208 = vmatprep.subr.mxu0 0.0
  %209 = vmatpush1.msra.mxu0 %v167
  %210 = vmatprep.subr.mxu0 0.0
  %211 = vmatpush1.msra.mxu0 %v168
  %212 = vmatprep.subr.mxu0 0.0
  %213 = vmatpush1.msra.mxu0 %v169
  %214 = vmatprep.subr.mxu0 0.0
  %215 = vmatpush1.msra.mxu0 %v170
  %216 = vmatprep.subr.mxu0 0.0
  %217 = vmatpush1.msra.mxu0 %v171
  %218 = vmatprep.subr.mxu0 0.0
  %219 = vmatpush1.msra.mxu0 %v172
  %220 = vmatprep.subr.mxu0 0.0
  %221 = vmatpush1.msra.mxu0 %v173
  %222 = vmatprep.subr.mxu0 0.0
  %223 = vmatpush1.msra.mxu0 %v174
  %224 = vmatprep.subr.mxu0 0.0
  %225 = vmatpush1.msra.mxu0 %v175
  %226 = vmatprep.subr.mxu0 0.0
  %227 = vmatpush1.msra.mxu0 %v176
  %228 = vmatprep.subr.mxu0 0.0
  %229 = vmatpush1.msra.mxu0 0.0
  %230 = vmatprep.subr.mxu0 0.0
  %231 = vmatpush1.msra.mxu0 0.0
  %232 = vmatprep.subr.mxu0 0.0
  %233 = vmatpush1.msra.mxu0 0.0
  %234 = vmatprep.subr.mxu0 0.0
  %235 = vmatpush1.msra.mxu0 0.0
  %236 = vmatprep.subr.mxu0 0.0
  %237 = vmatpush1.msra.mxu0 0.0
  %238 = vmatprep.subr.mxu0 0.0
  %239 = vmatpush1.msra.mxu0 0.0
  %240 = vmatprep.subr.mxu0 0.0
  %241 = vmatpush1.msra.mxu0 0.0
  %242 = vmatprep.subr.mxu0 0.0
  %243 = vmatpush1.msra.mxu0 0.0
  %244 = vmatprep.subr.mxu0 0.0
  %245 = vmatpush1.msra.mxu0 0.0
  %246 = vmatprep.subr.mxu0 0.0
  %247 = vmatpush1.msra.mxu0 0.0
  %248 = vmatprep.subr.mxu0 0.0
  %249 = vmatpush1.msra.mxu0 0.0
  %250 = vmatprep.subr.mxu0 0.0
  %251 = vmatpush1.msra.mxu0 0.0
  %252 = vmatprep.subr.mxu0 0.0
  %253 = vmatpush1.msra.mxu0 0.0
  %254 = vmatprep.subr.mxu0 0.0
  %255 = vmatpush1.msra.mxu0 0.0
  %256 = vmatprep.subr.mxu0 0.0
  %257 = vmatpush1.msra.mxu0 0.0
  %258 = vmatprep.subr.mxu0 0.0
  %259 = vmatpush1.msra.mxu0 0.0
  %260 = vmatprep.mubr.f32.mxu0 0.0
  %261 = vmatmul.mubr.f32.gmra.mrb[0].mxu0 %v177
  %v262 = vpop.f32.mrb[0].mxu0
  %v263 = vadd.f32 0.0, %v262
  %v264 = vpop.f32.mrb[0].mxu0
  %265 = vmatprep.mubr.f32.mxu0 0.0
  %266 = vmatmul.mubr.f32.gmra.mrb[0].mxu0 %v178
  %v267 = vpop.f32.mrb[0].mxu0
  %v268 = vadd.f32 0.0, %v267
  %v269 = vpop.f32.mrb[0].mxu0
  %270 = vmatprep.mubr.f32.mxu0 0.0
  %271 = vmatmul.mubr.f32.gmra.mrb[0].mxu0 %v179
  %v272 = vpop.f32.mrb[0].mxu0
  %v273 = vadd.f32 0.0, %v272
  %v274 = vpop.f32.mrb[0].mxu0
  %275 = vmatprep.mubr.f32.mxu0 0.0
  %276 = vmatmul.mubr.f32.gmra.mrb[0].mxu0 %v180
  %v277 = vpop.f32.mrb[0].mxu0
  %v278 = vadd.f32 0.0, %v277
  %v279 = vpop.f32.mrb[0].mxu0
  %280 = vmatprep.mubr.f32.mxu0 0.0
  %281 = vmatmul.mubr.f32.gmra.mrb[0].mxu0 %v190
  %v282 = vpop.f32.mrb[0].mxu0
  %v283 = vadd.f32 0.0, %v282
  %v284 = vpop.f32.mrb[0].mxu0
  %285 = vdwg.mxu0
  %v286 = vadd.f32 %v191, %v263
  %v287 = vadd.f32 %v192, %v268
  %v288 = vadd.f32 %v193, %v273
  %v289 = vadd.f32 %v194, %v278
  %v290 = vadd.f32 %v195, %v283
  %291 = vst [vmem:[#allocation2] sm:$0xff] %v286
  %292 = vst [vmem:[#allocation2 + $0x8] sm:$0xff] %v287
  %293 = vst [vmem:[#allocation2 + $0x10] sm:$0xff] %v288
  %294 = vst [vmem:[#allocation2 + $0x18] sm:$0xff] %v289
  %295 = vst [vmem:[#allocation2 + $0x20] sm:$0x3f] %v290
  // Predicated region
  $region22: #{bipartite_attention_forward.3} parent=0 // pred_check
    %p296 = pneg %p17
  $region23: #{bipartite_attention_forward.3} parent=0 // pred_check_branch
    %298 = sbr.rel (%p296) target = $region25
  $region24: #{bipartite_attention_forward.3} parent=0 // pred_region
    %v299 = vld [vmem:[#allocation2] sm:$0xff]
    %v300 = vld [vmem:[#allocation2 + $0x8] sm:$0xff]
    %v301 = vld [vmem:[#allocation2 + $0x10] sm:$0xff]
    %v302 = vld [vmem:[#allocation2 + $0x18] sm:$0xff]
    %v303 = vld [vmem:[#allocation2 + $0x20] sm:$0x1f]
    %v304 = vld [vmem:[#allocation2 + $0x25] sm:$0x1]
    %v305 = vadd.f32 %v304, 1e-08
    %v306 = vlaneseq
    %v307 = vshrl.u32 %v306, 7
    %v308 = vsub.s32 0, %v307
    %v309 = vrot.slane %v305, %v308
    %v310 = vrcp.pop %v309
    %v311 = vmul.f32 %v299, %v310
    %v312 = vmul.f32 %v300, %v310
    %v313 = vmul.f32 %v301, %v310
    %v314 = vmul.f32 %v302, %v310
    %v315 = vmul.f32 %v303, %v310
    %v316 = vld [vmem:[%s2] sm:$0x3]
    %v317 = vld [vmem:[%s3] sm:$0x3]
    %319 = vset.pattern.permute.xlu0 0
    %320 = vperm.xlu0 %319, %v317
    %v321 = vpop.permute.xlu0 %320
    %vm323 = vcmask 302080
    %v325 = vsel %vm323, %v316, 0
    %v328 = vsel %vm189, %v315, 0
    %330 = vmatprep.subr.mxu0 0.0
    %331 = vmatpush1.msra.mxu0 %v311
    %332 = vmatprep.subr.mxu0 0.0
    %333 = vmatpush1.msra.mxu0 %v312
    %334 = vmatprep.subr.mxu0 0.0
    %335 = vmatpush1.msra.mxu0 %v313
    %336 = vmatprep.subr.mxu0 0.0
    %337 = vmatpush1.msra.mxu0 %v314
    %338 = vmatprep.subr.mxu0 0.0
    %339 = vmatpush1.msra.mxu0 %v328
    %340 = vmatprep.subr.mxu0 0.0
    %341 = vmatpush1.msra.mxu0 0.0
    %342 = vmatprep.subr.mxu0 0.0
    %343 = vmatpush1.msra.mxu0 0.0
    %344 = vmatprep.subr.mxu0 0.0
    %345 = vmatpush1.msra.mxu0 0.0
    %346 = vmatprep.subr.mxu0 0.0
    %347 = vmatpush1.msra.mxu0 0.0
    %348 = vmatprep.subr.mxu0 0.0
    %349 = vmatpush1.msra.mxu0 0.0
    %350 = vmatprep.subr.mxu0 0.0
    %351 = vmatpush1.msra.mxu0 0.0
    %352 = vmatprep.subr.mxu0 0.0
    %353 = vmatpush1.msra.mxu0 0.0
    %354 = vmatprep.subr.mxu0 0.0
    %355 = vmatpush1.msra.mxu0 0.0
    %356 = vmatprep.subr.mxu0 0.0
    %357 = vmatpush1.msra.mxu0 0.0
    %358 = vmatprep.subr.mxu0 0.0
    %359 = vmatpush1.msra.mxu0 0.0
    %360 = vmatprep.subr.mxu0 0.0
    %361 = vmatpush1.msra.mxu0 0.0
    %362 = vmatprep.subr.mxu0 0.0
    %363 = vmatpush1.msra.mxu0 0.0
    %364 = vmatprep.subr.mxu0 0.0
    %365 = vmatpush1.msra.mxu0 0.0
    %366 = vmatprep.subr.mxu0 0.0
    %367 = vmatpush1.msra.mxu0 0.0
    %368 = vmatprep.subr.mxu0 0.0
    %369 = vmatpush1.msra.mxu0 0.0
    %370 = vmatprep.subr.mxu0 0.0
    %371 = vmatpush1.msra.mxu0 0.0
    %372 = vmatprep.subr.mxu0 0.0
    %373 = vmatpush1.msra.mxu0 0.0
    %374 = vmatprep.subr.mxu0 0.0
    %375 = vmatpush1.msra.mxu0 0.0
    %376 = vmatprep.subr.mxu0 0.0
    %377 = vmatpush1.msra.mxu0 0.0
    %378 = vmatprep.subr.mxu0 0.0
    %379 = vmatpush1.msra.mxu0 0.0
    %380 = vmatprep.subr.mxu0 0.0
    %381 = vmatpush1.msra.mxu0 0.0
    %382 = vmatprep.subr.mxu0 0.0
    %383 = vmatpush1.msra.mxu0 0.0
    %384 = vmatprep.subr.mxu0 0.0
    %385 = vmatpush1.msra.mxu0 0.0
    %386 = vmatprep.subr.mxu0 0.0
    %387 = vmatpush1.msra.mxu0 0.0
    %388 = vmatprep.subr.mxu0 0.0
    %389 = vmatpush1.msra.mxu0 0.0
    %390 = vmatprep.subr.mxu0 0.0
    %391 = vmatpush1.msra.mxu0 0.0
    %392 = vmatprep.subr.mxu0 0.0
    %393 = vmatpush1.msra.mxu0 0.0
    %394 = vmatprep.mubr.f32.mxu0 0.0
    %395 = vmatmul.mubr.f32.gmra.mrb[0].mxu0 %v325
    %v396 = vpop.f32.mrb[0].mxu0
    %v397 = vadd.f32 %v321, %v396
    %v398 = vpop.f32.mrb[0].mxu0
    %399 = vdwg.mxu0
    %400 = vst [vmem:[%s4] sm:$0x3] %v397
  $region25: #{bipartite_attention_forward.3} parent=0 // pred_fallthru
    _
  // Predicated region
  $region26: #{bipartite_attention_forward.3} parent=0 // pred_check
    _
  $region27: #{bipartite_attention_forward.3} parent=0 // pred_check_branch
    %402 = sbr.rel (0) target = $region29
  $region28: #{bipartite_attention_forward.3} parent=0 // pred_region
    _
  $region29: #{bipartite_attention_forward.3} parent=0 // pred_fallthru
    _
  // Predicated region
  $region30: #{bipartite_attention_forward.3} parent=0 // pred_check
    _
  $region31: #{bipartite_attention_forward.3} parent=0 // pred_check_branch
    %404 = sbr.rel (0) target = $region33
  $region32: #{bipartite_attention_forward.3} parent=0 // pred_region
    _
  $region33: #{bipartite_attention_forward.3} parent=0 // pred_fallthru
    _

// kernel: bipartite_attention_forward.2
$region0: #{bipartite_attention_forward.2}
  #allocation0 [shape = 'u32[]', space=smem, size = 0x4, offset = 0x4, fixed_abs, tag = 'smem constant byte address 0x4 - core index']
  #allocation1 [shape = 'u32[144,128]{1,0:T(1,128)}', space=vmem, size = 0x12000, scoped, tag = 'internal scratch']
  %s0 = inlined_call_operand.vmem [shape: f32[20,128], index: 0, kind: input, shape index: {}]
  %s1 = inlined_call_operand.vmem [shape: f32[1,128], index: 1, kind: input, shape index: {}]
  %s2 = inlined_call_operand.vmem [shape: f32[15,128], index: 2, kind: input, shape index: {}]
  %s3 = inlined_call_operand.vmem [shape: f32[15,128], index: 3, kind: input, shape index: {}]
  %s4 = inlined_call_operand.vmem [shape: f32[64,20], index: 4, kind: input, shape index: {}]
  %s5 = inlined_call_operand.vmem [shape: f32[64,1], index: 5, kind: input, shape index: {}]
  %s6 = inlined_call_operand.vmem [shape: f32[64,64], index: 6, kind: input, shape index: {}]
  %s7 = inlined_call_operand.vmem [shape: f32[64,1], index: 7, kind: input, shape index: {}]
  %s8 = inlined_call_operand.vmem [shape: f32[64,64], index: 8, kind: input, shape index: {}]
  %s9 = inlined_call_operand.vmem [shape: f32[64,1], index: 9, kind: input, shape index: {}]
  %s10 = inlined_call_operand.vmem [shape: f32[55,64], index: 10, kind: input, shape index: {}]
  %s11 = inlined_call_operand.vmem [shape: f32[55,1], index: 11, kind: input, shape index: {}]
  %s12 = inlined_call_operand.vmem [shape: f32[37,128], index: 12, kind: output, shape index: {0}]
  %s13 = inlined_call_operand.vmem [shape: f32[45,128], index: 13, kind: output, shape index: {1}]
  %s14 = inlined_call_operand.vmem [shape: f32[5,128], index: 14, kind: output, shape index: {2}]
  %15 = xla_tuple %s12, %s13, %s14
  %s16 = sld [smem:[#allocation0]]
  $region74: #{bipartite_attention_forward.2} parent=0
    _
  %s18 = ssub.s32 1, %s16
  %s19 = scalar_select 0, %s18, %s16
  // Predicated region
  $region2: #{bipartite_attention_forward.2} parent=0 // pred_check
    _
  $region3: #{bipartite_attention_forward.2} parent=0 // pred_check_branch
    %21 = sbr.rel (0) target = $region5
  $region4: #{bipartite_attention_forward.2} parent=0 // pred_region
    _
  $region5: #{bipartite_attention_forward.2} parent=0 // pred_fallthru
    _
  // Predicated region
  $region6: #{bipartite_attention_forward.2} parent=0 // pred_check
    _
  $region7: #{bipartite_attention_forward.2} parent=0 // pred_check_branch
    %23 = sbr.rel (0) target = $region9
  $region8: #{bipartite_attention_forward.2} parent=0 // pred_region
    _
  $region9: #{bipartite_attention_forward.2} parent=0 // pred_fallthru
    _
  // Predicated region
  $region10: #{bipartite_attention_forward.2} parent=0 // pred_check
    _
  $region11: #{bipartite_attention_forward.2} parent=0 // pred_check_branch
    %25 = sbr.rel (0) target = $region13
  $region12: #{bipartite_attention_forward.2} parent=0 // pred_region
    _
  $region13: #{bipartite_attention_forward.2} parent=0 // pred_fallthru
    _
  // Predicated region
  $region14: #{bipartite_attention_forward.2} parent=0 // pred_check
    _
  $region15: #{bipartite_attention_forward.2} parent=0 // pred_check_branch
    %27 = sbr.rel (0) target = $region17
  $region16: #{bipartite_attention_forward.2} parent=0 // pred_region
    _
  $region17: #{bipartite_attention_forward.2} parent=0 // pred_fallthru
    _
  // Predicated region
  $region18: #{bipartite_attention_forward.2} parent=0 // pred_check
    _
  $region19: #{bipartite_attention_forward.2} parent=0 // pred_check_branch
    %29 = sbr.rel (0) target = $region21
  $region20: #{bipartite_attention_forward.2} parent=0 // pred_region
    _
  $region21: #{bipartite_attention_forward.2} parent=0 // pred_fallthru
    _
  // Predicated region
  $region22: #{bipartite_attention_forward.2} parent=0 // pred_check
    _
  $region23: #{bipartite_attention_forward.2} parent=0 // pred_check_branch
    %31 = sbr.rel (0) target = $region25
  $region24: #{bipartite_attention_forward.2} parent=0 // pred_region
    _
  $region25: #{bipartite_attention_forward.2} parent=0 // pred_fallthru
    _
  // Predicated region
  $region26: #{bipartite_attention_forward.2} parent=0 // pred_check
    _
  $region27: #{bipartite_attention_forward.2} parent=0 // pred_check_branch
    %33 = sbr.rel (0) target = $region29
  $region28: #{bipartite_attention_forward.2} parent=0 // pred_region
    _
  $region29: #{bipartite_attention_forward.2} parent=0 // pred_fallthru
    _
  // Predicated region
  $region30: #{bipartite_attention_forward.2} parent=0 // pred_check
    _
  $region31: #{bipartite_attention_forward.2} parent=0 // pred_check_branch
    %35 = sbr.rel (0) target = $region33
  $region32: #{bipartite_attention_forward.2} parent=0 // pred_region
    _
  $region33: #{bipartite_attention_forward.2} parent=0 // pred_fallthru
    _
  // Predicated region
  $region34: #{bipartite_attention_forward.2} parent=0 // pred_check
    _
  $region35: #{bipartite_attention_forward.2} parent=0 // pred_check_branch
    %37 = sbr.rel (0) target = $region37
  $region36: #{bipartite_attention_forward.2} parent=0 // pred_region
    _
  $region37: #{bipartite_attention_forward.2} parent=0 // pred_fallthru
    _
  // Predicated region
  $region38: #{bipartite_attention_forward.2} parent=0 // pred_check
    _
  $region39: #{bipartite_attention_forward.2} parent=0 // pred_check_branch
    %39 = sbr.rel (0) target = $region41
  $region40: #{bipartite_attention_forward.2} parent=0 // pred_region
    _
  $region41: #{bipartite_attention_forward.2} parent=0 // pred_fallthru
    _
  // Predicated region
  $region42: #{bipartite_attention_forward.2} parent=0 // pred_check
    _
  $region43: #{bipartite_attention_forward.2} parent=0 // pred_check_branch
    %41 = sbr.rel (0) target = $region45
  $region44: #{bipartite_attention_forward.2} parent=0 // pred_region
    _
  $region45: #{bipartite_attention_forward.2} parent=0 // pred_fallthru
    _
  // Predicated region
  $region46: #{bipartite_attention_forward.2} parent=0 // pred_check
    _
  $region47: #{bipartite_attention_forward.2} parent=0 // pred_check_branch
    %43 = sbr.rel (0) target = $region49
  $region48: #{bipartite_attention_forward.2} parent=0 // pred_region
    _
  $region49: #{bipartite_attention_forward.2} parent=0 // pred_fallthru
    _
  %v44 = vld [vmem:[%s0] sm:$0xff]
  %v45 = vld [vmem:[%s0 + $0x8] sm:$0xff]
  %v46 = vld [vmem:[%s0 + $0x10] sm:$0xf]
  %v47 = vld [vmem:[%s1] sm:$0x1]
  %v48 = vld [vmem:[%s4] sm:$0xff]
  %v49 = vld [vmem:[%s4 + $0x8] sm:$0xff]
  %v50 = vld [vmem:[%s4 + $0x10] sm:$0xff]
  %v51 = vld [vmem:[%s4 + $0x18] sm:$0xff]
  %v52 = vld [vmem:[%s4 + $0x20] sm:$0xff]
  %v53 = vld [vmem:[%s4 + $0x28] sm:$0xff]
  %v54 = vld [vmem:[%s4 + $0x30] sm:$0xff]
  %v55 = vld [vmem:[%s4 + $0x38] sm:$0xff]
  %v56 = vld [vmem:[%s5] sm:$0xff]
  %v57 = vld [vmem:[%s5 + $0x8] sm:$0xff]
  %v58 = vld [vmem:[%s5 + $0x10] sm:$0xff]
  %v59 = vld [vmem:[%s5 + $0x18] sm:$0xff]
  %v60 = vld [vmem:[%s5 + $0x20] sm:$0xff]
  %v61 = vld [vmem:[%s5 + $0x28] sm:$0xff]
  %v62 = vld [vmem:[%s5 + $0x30] sm:$0xff]
  %v63 = vld [vmem:[%s5 + $0x38] sm:$0xff]
  %65 = vset.pattern.permute.xlu0 0
  %66 = vperm.xlu0 %65, %v56
  %v67 = vpop.permute.xlu0 %66
  %70 = vset.pattern.permute.xlu0 0
  %71 = vperm.xlu0 %70, %v57
  %v72 = vpop.permute.xlu0 %71
  %75 = vset.pattern.permute.xlu0 0
  %76 = vperm.xlu0 %75, %v58
  %v77 = vpop.permute.xlu0 %76
  %80 = vset.pattern.permute.xlu0 0
  %81 = vperm.xlu0 %80, %v59
  %v82 = vpop.permute.xlu0 %81
  %85 = vset.pattern.permute.xlu0 0
  %86 = vperm.xlu0 %85, %v60
  %v87 = vpop.permute.xlu0 %86
  %90 = vset.pattern.permute.xlu0 0
  %91 = vperm.xlu0 %90, %v61
  %v92 = vpop.permute.xlu0 %91
  %95 = vset.pattern.permute.xlu0 0
  %96 = vperm.xlu0 %95, %v62
  %v97 = vpop.permute.xlu0 %96
  %100 = vset.pattern.permute.xlu0 0
  %101 = vperm.xlu0 %100, %v63
  %v102 = vpop.permute.xlu0 %101
  %vm104 = vcmask 162816
  %v106 = vsel %vm104, %v48, 0
  %v109 = vsel %vm104, %v49, 0
  %v112 = vsel %vm104, %v50, 0
  %v115 = vsel %vm104, %v51, 0
  %v118 = vsel %vm104, %v52, 0
  %v121 = vsel %vm104, %v53, 0
  %v124 = vsel %vm104, %v54, 0
  %v127 = vsel %vm104, %v55, 0
  %vm129 = vcmask 1043456
  %v131 = vsel %vm129, %v46, 0
  %133 = vmatprep.subr.mxu0 0.0
  %134 = vmatpush1.msra.mxu0 %v44
  %135 = vmatprep.subr.mxu0 0.0
  %136 = vmatpush1.msra.mxu0 %v45
  %137 = vmatprep.subr.mxu0 0.0
  %138 = vmatpush1.msra.mxu0 %v131
  %139 = vmatprep.subr.mxu0 0.0
  %140 = vmatpush1.msra.mxu0 0.0
  %141 = vmatprep.subr.mxu0 0.0
  %142 = vmatpush1.msra.mxu0 0.0
  %143 = vmatprep.subr.mxu0 0.0
  %144 = vmatpush1.msra.mxu0 0.0
  %145 = vmatprep.subr.mxu0 0.0
  %146 = vmatpush1.msra.mxu0 0.0
  %147 = vmatprep.subr.mxu0 0.0
  %148 = vmatpush1.msra.mxu0 0.0
  %149 = vmatprep.subr.mxu0 0.0
  %150 = vmatpush1.msra.mxu0 0.0
  %151 = vmatprep.subr.mxu0 0.0
  %152 = vmatpush1.msra.mxu0 0.0
  %153 = vmatprep.subr.mxu0 0.0
  %154 = vmatpush1.msra.mxu0 0.0
  %155 = vmatprep.subr.mxu0 0.0
  %156 = vmatpush1.msra.mxu0 0.0
  %157 = vmatprep.subr.mxu0 0.0
  %158 = vmatpush1.msra.mxu0 0.0
  %159 = vmatprep.subr.mxu0 0.0
  %160 = vmatpush1.msra.mxu0 0.0
  %161 = vmatprep.subr.mxu0 0.0
  %162 = vmatpush1.msra.mxu0 0.0
  %163 = vmatprep.subr.mxu0 0.0
  %164 = vmatpush1.msra.mxu0 0.0
  %165 = vmatprep.subr.mxu0 0.0
  %166 = vmatpush1.msra.mxu0 0.0
  %167 = vmatprep.subr.mxu0 0.0
  %168 = vmatpush1.msra.mxu0 0.0
  %169 = vmatprep.subr.mxu0 0.0
  %170 = vmatpush1.msra.mxu0 0.0
  %171 = vmatprep.subr.mxu0 0.0
  %172 = vmatpush1.msra.mxu0 0.0
  %173 = vmatprep.subr.mxu0 0.0
  %174 = vmatpush1.msra.mxu0 0.0
  %175 = vmatprep.subr.mxu0 0.0
  %176 = vmatpush1.msra.mxu0 0.0
  %177 = vmatprep.subr.mxu0 0.0
  %178 = vmatpush1.msra.mxu0 0.0
  %179 = vmatprep.subr.mxu0 0.0
  %180 = vmatpush1.msra.mxu0 0.0
  %181 = vmatprep.subr.mxu0 0.0
  %182 = vmatpush1.msra.mxu0 0.0
  %183 = vmatprep.subr.mxu0 0.0
  %184 = vmatpush1.msra.mxu0 0.0
  %185 = vmatprep.subr.mxu0 0.0
  %186 = vmatpush1.msra.mxu0 0.0
  %187 = vmatprep.subr.mxu0 0.0
  %188 = vmatpush1.msra.mxu0 0.0
  %189 = vmatprep.subr.mxu0 0.0
  %190 = vmatpush1.msra.mxu0 0.0
  %191 = vmatprep.subr.mxu0 0.0
  %192 = vmatpush1.msra.mxu0 0.0
  %193 = vmatprep.subr.mxu0 0.0
  %194 = vmatpush1.msra.mxu0 0.0
  %195 = vmatprep.subr.mxu0 0.0
  %196 = vmatpush1.msra.mxu0 0.0
  %197 = vmatprep.mubr.f32.mxu0 0.0
  %198 = vmatmul.mubr.f32.gmra.mrb[0].mxu0 %v106
  %v199 = vpop.f32.mrb[0].mxu0
  %v200 = vadd.f32 %v67, %v199
  %v201 = vpop.f32.mrb[0].mxu0
  %202 = vmatprep.mubr.f32.mxu0 0.0
  %203 = vmatmul.mubr.f32.gmra.mrb[0].mxu0 %v109
  %v204 = vpop.f32.mrb[0].mxu0
  %v205 = vadd.f32 %v72, %v204
  %v206 = vpop.f32.mrb[0].mxu0
  %207 = vmatprep.mubr.f32.mxu0 0.0
  %208 = vmatmul.mubr.f32.gmra.mrb[0].mxu0 %v112
  %v209 = vpop.f32.mrb[0].mxu0
  %v210 = vadd.f32 %v77, %v209
  %v211 = vpop.f32.mrb[0].mxu0
  %212 = vmatprep.mubr.f32.mxu0 0.0
  %213 = vmatmul.mubr.f32.gmra.mrb[0].mxu0 %v115
  %v214 = vpop.f32.mrb[0].mxu0
  %v215 = vadd.f32 %v82, %v214
  %v216 = vpop.f32.mrb[0].mxu0
  %217 = vmatprep.mubr.f32.mxu0 0.0
  %218 = vmatmul.mubr.f32.gmra.mrb[0].mxu0 %v118
  %v219 = vpop.f32.mrb[0].mxu0
  %v220 = vadd.f32 %v87, %v219
  %v221 = vpop.f32.mrb[0].mxu0
  %222 = vmatprep.mubr.f32.mxu0 0.0
  %223 = vmatmul.mubr.f32.gmra.mrb[0].mxu0 %v121
  %v224 = vpop.f32.mrb[0].mxu0
  %v225 = vadd.f32 %v92, %v224
  %v226 = vpop.f32.mrb[0].mxu0
  %227 = vmatprep.mubr.f32.mxu0 0.0
  %228 = vmatmul.mubr.f32.gmra.mrb[0].mxu0 %v124
  %v229 = vpop.f32.mrb[0].mxu0
  %v230 = vadd.f32 %v97, %v229
  %v231 = vpop.f32.mrb[0].mxu0
  %232 = vmatprep.mubr.f32.mxu0 0.0
  %233 = vmatmul.mubr.f32.gmra.mrb[0].mxu0 %v127
  %v234 = vpop.f32.mrb[0].mxu0
  %v235 = vadd.f32 %v102, %v234
  %v236 = vpop.f32.mrb[0].mxu0
  %237 = vdwg.mxu0
  %v238 = vtanh.pop %v200
  %v239 = vtanh.pop %v205
  %v240 = vtanh.pop %v210
  %v241 = vtanh.pop %v215
  %v242 = vtanh.pop %v220
  %v243 = vtanh.pop %v225
  %v244 = vtanh.pop %v230
  %v245 = vtanh.pop %v235
  %v246 = vld [vmem:[%s6] sm:$0xff]
  %v247 = vld [vmem:[%s6 + $0x8] sm:$0xff]
  %v248 = vld [vmem:[%s6 + $0x10] sm:$0xff]
  %v249 = vld [vmem:[%s6 + $0x18] sm:$0xff]
  %v250 = vld [vmem:[%s6 + $0x20] sm:$0xff]
  %v251 = vld [vmem:[%s6 + $0x28] sm:$0xff]
  %v252 = vld [vmem:[%s6 + $0x30] sm:$0xff]
  %v253 = vld [vmem:[%s6 + $0x38] sm:$0xff]
  %v254 = vld [vmem:[%s7] sm:$0xff]
  %v255 = vld [vmem:[%s7 + $0x8] sm:$0xff]
  %v256 = vld [vmem:[%s7 + $0x10] sm:$0xff]
  %v257 = vld [vmem:[%s7 + $0x18] sm:$0xff]
  %v258 = vld [vmem:[%s7 + $0x20] sm:$0xff]
  %v259 = vld [vmem:[%s7 + $0x28] sm:$0xff]
  %v260 = vld [vmem:[%s7 + $0x30] sm:$0xff]
  %v261 = vld [vmem:[%s7 + $0x38] sm:$0xff]
  %263 = vset.pattern.permute.xlu0 0
  %264 = vperm.xlu0 %263, %v254
  %v265 = vpop.permute.xlu0 %264
  %268 = vset.pattern.permute.xlu0 0
  %269 = vperm.xlu0 %268, %v255
  %v270 = vpop.permute.xlu0 %269
  %273 = vset.pattern.permute.xlu0 0
  %274 = vperm.xlu0 %273, %v256
  %v275 = vpop.permute.xlu0 %274
  %278 = vset.pattern.permute.xlu0 0
  %279 = vperm.xlu0 %278, %v257
  %v280 = vpop.permute.xlu0 %279
  %283 = vset.pattern.permute.xlu0 0
  %284 = vperm.xlu0 %283, %v258
  %v285 = vpop.permute.xlu0 %284
  %288 = vset.pattern.permute.xlu0 0
  %289 = vperm.xlu0 %288, %v259
  %v290 = vpop.permute.xlu0 %289
  %293 = vset.pattern.permute.xlu0 0
  %294 = vperm.xlu0 %293, %v260
  %v295 = vpop.permute.xlu0 %294
  %298 = vset.pattern.permute.xlu0 0
  %299 = vperm.xlu0 %298, %v261
  %v300 = vpop.permute.xlu0 %299
  %vm302 = vcmask 523264
  %v304 = vsel %vm302, %v246, 0
  %v307 = vsel %vm302, %v247, 0
  %v310 = vsel %vm302, %v248, 0
  %v313 = vsel %vm302, %v249, 0
  %v316 = vsel %vm302, %v250, 0
  %v319 = vsel %vm302, %v251, 0
  %v322 = vsel %vm302, %v252, 0
  %v325 = vsel %vm302, %v253, 0
  %327 = vmatprep.subr.mxu0 0.0
  %328 = vmatpush1.msra.mxu0 %v238
  %329 = vmatprep.subr.mxu0 0.0
  %330 = vmatpush1.msra.mxu0 %v239
  %331 = vmatprep.subr.mxu0 0.0
  %332 = vmatpush1.msra.mxu0 %v240
  %333 = vmatprep.subr.mxu0 0.0
  %334 = vmatpush1.msra.mxu0 %v241
  %335 = vmatprep.subr.mxu0 0.0
  %336 = vmatpush1.msra.mxu0 %v242
  %337 = vmatprep.subr.mxu0 0.0
  %338 = vmatpush1.msra.mxu0 %v243
  %339 = vmatprep.subr.mxu0 0.0
  %340 = vmatpush1.msra.mxu0 %v244
  %341 = vmatprep.subr.mxu0 0.0
  %342 = vmatpush1.msra.mxu0 %v245
  %343 = vmatprep.subr.mxu0 0.0
  %344 = vmatpush1.msra.mxu0 0.0
  %345 = vmatprep.subr.mxu0 0.0
  %346 = vmatpush1.msra.mxu0 0.0
  %347 = vmatprep.subr.mxu0 0.0
  %348 = vmatpush1.msra.mxu0 0.0
  %349 = vmatprep.subr.mxu0 0.0
  %350 = vmatpush1.msra.mxu0 0.0
  %351 = vmatprep.subr.mxu0 0.0
  %352 = vmatpush1.msra.mxu0 0.0
  %353 = vmatprep.subr.mxu0 0.0
  %354 = vmatpush1.msra.mxu0 0.0
  %355 = vmatprep.subr.mxu0 0.0
  %356 = vmatpush1.msra.mxu0 0.0
  %357 = vmatprep.subr.mxu0 0.0
  %358 = vmatpush1.msra.mxu0 0.0
  %359 = vmatprep.subr.mxu0 0.0
  %360 = vmatpush1.msra.mxu0 0.0
  %361 = vmatprep.subr.mxu0 0.0
  %362 = vmatpush1.msra.mxu0 0.0
  %363 = vmatprep.subr.mxu0 0.0
  %364 = vmatpush1.msra.mxu0 0.0
  %365 = vmatprep.subr.mxu0 0.0
  %366 = vmatpush1.msra.mxu0 0.0
  %367 = vmatprep.subr.mxu0 0.0
  %368 = vmatpush1.msra.mxu0 0.0
  %369 = vmatprep.subr.mxu0 0.0
  %370 = vmatpush1.msra.mxu0 0.0
  %371 = vmatprep.subr.mxu0 0.0
  %372 = vmatpush1.msra.mxu0 0.0
  %373 = vmatprep.subr.mxu0 0.0
  %374 = vmatpush1.msra.mxu0 0.0
  %375 = vmatprep.subr.mxu0 0.0
  %376 = vmatpush1.msra.mxu0 0.0
  %377 = vmatprep.subr.mxu0 0.0
  %378 = vmatpush1.msra.mxu0 0.0
  %379 = vmatprep.subr.mxu0 0.0
  %380 = vmatpush1.msra.mxu0 0.0
  %381 = vmatprep.subr.mxu0 0.0
  %382 = vmatpush1.msra.mxu0 0.0
  %383 = vmatprep.subr.mxu0 0.0
  %384 = vmatpush1.msra.mxu0 0.0
  %385 = vmatprep.subr.mxu0 0.0
  %386 = vmatpush1.msra.mxu0 0.0
  %387 = vmatprep.subr.mxu0 0.0
  %388 = vmatpush1.msra.mxu0 0.0
  %389 = vmatprep.subr.mxu0 0.0
  %390 = vmatpush1.msra.mxu0 0.0
  %391 = vmatprep.mubr.f32.mxu0 0.0
  %392 = vmatmul.mubr.f32.gmra.mrb[0].mxu0 %v304
  %v393 = vpop.f32.mrb[0].mxu0
  %v394 = vadd.f32 %v265, %v393
  %v395 = vpop.f32.mrb[0].mxu0
  %396 = vmatprep.mubr.f32.mxu0 0.0
  %397 = vmatmul.mubr.f32.gmra.mrb[0].mxu0 %v307
  %v398 = vpop.f32.mrb[0].mxu0
  %v399 = vadd.f32 %v270, %v398
  %v400 = vpop.f32.mrb[0].mxu0
  %401 = vmatprep.mubr.f32.mxu0 0.0
  %402 = vmatmul.mubr.f32.gmra.mrb[0].mxu0 %v310
  %v403 = vpop.f32.mrb[0].mxu0
  %v404 = vadd.f32 %v275, %v403
  %v405 = vpop.f32.mrb[0].mxu0
  %406 = vmatprep.mubr.f32.mxu0 0.0
  %407 = vmatmul.mubr.f32.gmra.mrb[0].mxu0 %v313
  %v408 = vpop.f32.mrb[0].mxu0
  %v409 = vadd.f32 %v280, %v408
  %v410 = vpop.f32.mrb[0].mxu0
  %411 = vmatprep.mubr.f32.mxu0 0.0
  %412 = vmatmul.mubr.f32.gmra.mrb[0].mxu0 %v316
  %v413 = vpop.f32.mrb[0].mxu0
  %v414 = vadd.f32 %v285, %v413
  %v415 = vpop.f32.mrb[0].mxu0
  %416 = vmatprep.mubr.f32.mxu0 0.0
  %417 = vmatmul.mubr.f32.gmra.mrb[0].mxu0 %v319
  %v418 = vpop.f32.mrb[0].mxu0
  %v419 = vadd.f32 %v290, %v418
  %v420 = vpop.f32.mrb[0].mxu0
  %421 = vmatprep.mubr.f32.mxu0 0.0
  %422 = vmatmul.mubr.f32.gmra.mrb[0].mxu0 %v322
  %v423 = vpop.f32.mrb[0].mxu0
  %v424 = vadd.f32 %v295, %v423
  %v425 = vpop.f32.mrb[0].mxu0
  %426 = vmatprep.mubr.f32.mxu0 0.0
  %427 = vmatmul.mubr.f32.gmra.mrb[0].mxu0 %v325
  %v428 = vpop.f32.mrb[0].mxu0
  %v429 = vadd.f32 %v300, %v428
  %v430 = vpop.f32.mrb[0].mxu0
  %431 = vdwg.mxu0
  %v432 = vtanh.pop %v394
  %v433 = vtanh.pop %v399
  %v434 = vtanh.pop %v404
  %v435 = vtanh.pop %v409
  %v436 = vtanh.pop %v414
  %v437 = vtanh.pop %v419
  %v438 = vtanh.pop %v424
  %v439 = vtanh.pop %v429
  %v440 = vld [vmem:[%s8] sm:$0xff]
  %v441 = vld [vmem:[%s8 + $0x8] sm:$0xff]
  %v442 = vld [vmem:[%s8 + $0x10] sm:$0xff]
  %v443 = vld [vmem:[%s8 + $0x18] sm:$0xff]
  %v444 = vld [vmem:[%s8 + $0x20] sm:$0xff]
  %v445 = vld [vmem:[%s8 + $0x28] sm:$0xff]
  %v446 = vld [vmem:[%s8 + $0x30] sm:$0xff]
  %v447 = vld [vmem:[%s8 + $0x38] sm:$0xff]
  %v448 = vld [vmem:[%s9] sm:$0xff]
  %v449 = vld [vmem:[%s9 + $0x8] sm:$0xff]
  %v450 = vld [vmem:[%s9 + $0x10] sm:$0xff]
  %v451 = vld [vmem:[%s9 + $0x18] sm:$0xff]
  %v452 = vld [vmem:[%s9 + $0x20] sm:$0xff]
  %v453 = vld [vmem:[%s9 + $0x28] sm:$0xff]
  %v454 = vld [vmem:[%s9 + $0x30] sm:$0xff]
  %v455 = vld [vmem:[%s9 + $0x38] sm:$0xff]
  %457 = vset.pattern.permute.xlu0 0
  %458 = vperm.xlu0 %457, %v448
  %v459 = vpop.permute.xlu0 %458
  %462 = vset.pattern.permute.xlu0 0
  %463 = vperm.xlu0 %462, %v449
  %v464 = vpop.permute.xlu0 %463
  %467 = vset.pattern.permute.xlu0 0
  %468 = vperm.xlu0 %467, %v450
  %v469 = vpop.permute.xlu0 %468
  %472 = vset.pattern.permute.xlu0 0
  %473 = vperm.xlu0 %472, %v451
  %v474 = vpop.permute.xlu0 %473
  %477 = vset.pattern.permute.xlu0 0
  %478 = vperm.xlu0 %477, %v452
  %v479 = vpop.permute.xlu0 %478
  %482 = vset.pattern.permute.xlu0 0
  %483 = vperm.xlu0 %482, %v453
  %v484 = vpop.permute.xlu0 %483
  %487 = vset.pattern.permute.xlu0 0
  %488 = vperm.xlu0 %487, %v454
  %v489 = vpop.permute.xlu0 %488
  %492 = vset.pattern.permute.xlu0 0
  %493 = vperm.xlu0 %492, %v455
  %v494 = vpop.permute.xlu0 %493
  %v497 = vsel %vm302, %v440, 0
  %v500 = vsel %vm302, %v441, 0
  %v503 = vsel %vm302, %v442, 0
  %v506 = vsel %vm302, %v443, 0
  %v509 = vsel %vm302, %v444, 0
  %v512 = vsel %vm302, %v445, 0
  %v515 = vsel %vm302, %v446, 0
  %v518 = vsel %vm302, %v447, 0
  %520 = vmatprep.subr.mxu0 0.0
  %521 = vmatpush1.msra.mxu0 %v432
  %522 = vmatprep.subr.mxu0 0.0
  %523 = vmatpush1.msra.mxu0 %v433
  %524 = vmatprep.subr.mxu0 0.0
  %525 = vmatpush1.msra.mxu0 %v434
  %526 = vmatprep.subr.mxu0 0.0
  %527 = vmatpush1.msra.mxu0 %v435
  %528 = vmatprep.subr.mxu0 0.0
  %529 = vmatpush1.msra.mxu0 %v436
  %530 = vmatprep.subr.mxu0 0.0
  %531 = vmatpush1.msra.mxu0 %v437
  %532 = vmatprep.subr.mxu0 0.0
  %533 = vmatpush1.msra.mxu0 %v438
  %534 = vmatprep.subr.mxu0 0.0
  %535 = vmatpush1.msra.mxu0 %v439
  %536 = vmatprep.subr.mxu0 0.0
  %537 = vmatpush1.msra.mxu0 0.0
  %538 = vmatprep.subr.mxu0 0.0
  %539 = vmatpush1.msra.mxu0 0.0
  %540 = vmatprep.subr.mxu0 0.0
  %541 = vmatpush1.msra.mxu0 0.0
  %542 = vmatprep.subr.mxu0 0.0
  %543 = vmatpush1.msra.mxu0 0.0
  %544 = vmatprep.subr.mxu0 0.0
  %545 = vmatpush1.msra.mxu0 0.0
  %546 = vmatprep.subr.mxu0 0.0
  %547 = vmatpush1.msra.mxu0 0.0
  %548 = vmatprep.subr.mxu0 0.0
  %549 = vmatpush1.msra.mxu0 0.0
  %550 = vmatprep.subr.mxu0 0.0
  %551 = vmatpush1.msra.mxu0 0.0
  %552 = vmatprep.subr.mxu0 0.0
  %553 = vmatpush1.msra.mxu0 0.0
  %554 = vmatprep.subr.mxu0 0.0
  %555 = vmatpush1.msra.mxu0 0.0
  %556 = vmatprep.subr.mxu0 0.0
  %557 = vmatpush1.msra.mxu0 0.0
  %558 = vmatprep.subr.mxu0 0.0
  %559 = vmatpush1.msra.mxu0 0.0
  %560 = vmatprep.subr.mxu0 0.0
  %561 = vmatpush1.msra.mxu0 0.0
  %562 = vmatprep.subr.mxu0 0.0
  %563 = vmatpush1.msra.mxu0 0.0
  %564 = vmatprep.subr.mxu0 0.0
  %565 = vmatpush1.msra.mxu0 0.0
  %566 = vmatprep.subr.mxu0 0.0
  %567 = vmatpush1.msra.mxu0 0.0
  %568 = vmatprep.subr.mxu0 0.0
  %569 = vmatpush1.msra.mxu0 0.0
  %570 = vmatprep.subr.mxu0 0.0
  %571 = vmatpush1.msra.mxu0 0.0
  %572 = vmatprep.subr.mxu0 0.0
  %573 = vmatpush1.msra.mxu0 0.0
  %574 = vmatprep.subr.mxu0 0.0
  %575 = vmatpush1.msra.mxu0 0.0
  %576 = vmatprep.subr.mxu0 0.0
  %577 = vmatpush1.msra.mxu0 0.0
  %578 = vmatprep.subr.mxu0 0.0
  %579 = vmatpush1.msra.mxu0 0.0
  %580 = vmatprep.subr.mxu0 0.0
  %581 = vmatpush1.msra.mxu0 0.0
  %582 = vmatprep.subr.mxu0 0.0
  %583 = vmatpush1.msra.mxu0 0.0
  %584 = vmatprep.mubr.f32.mxu0 0.0
  %585 = vmatmul.mubr.f32.gmra.mrb[0].mxu0 %v497
  %v586 = vpop.f32.mrb[0].mxu0
  %v587 = vadd.f32 %v459, %v586
  %v588 = vpop.f32.mrb[0].mxu0
  %589 = vmatprep.mubr.f32.mxu0 0.0
  %590 = vmatmul.mubr.f32.gmra.mrb[0].mxu0 %v500
  %v591 = vpop.f32.mrb[0].mxu0
  %v592 = vadd.f32 %v464, %v591
  %v593 = vpop.f32.mrb[0].mxu0
  %594 = vmatprep.mubr.f32.mxu0 0.0
  %595 = vmatmul.mubr.f32.gmra.mrb[0].mxu0 %v503
  %v596 = vpop.f32.mrb[0].mxu0
  %v597 = vadd.f32 %v469, %v596
  %v598 = vpop.f32.mrb[0].mxu0
  %599 = vmatprep.mubr.f32.mxu0 0.0
  %600 = vmatmul.mubr.f32.gmra.mrb[0].mxu0 %v506
  %v601 = vpop.f32.mrb[0].mxu0
  %v602 = vadd.f32 %v474, %v601
  %v603 = vpop.f32.mrb[0].mxu0
  %604 = vmatprep.mubr.f32.mxu0 0.0
  %605 = vmatmul.mubr.f32.gmra.mrb[0].mxu0 %v509
  %v606 = vpop.f32.mrb[0].mxu0
  %v607 = vadd.f32 %v479, %v606
  %v608 = vpop.f32.mrb[0].mxu0
  %609 = vmatprep.mubr.f32.mxu0 0.0
  %610 = vmatmul.mubr.f32.gmra.mrb[0].mxu0 %v512
  %v611 = vpop.f32.mrb[0].mxu0
  %v612 = vadd.f32 %v484, %v611
  %v613 = vpop.f32.mrb[0].mxu0
  %614 = vmatprep.mubr.f32.mxu0 0.0
  %615 = vmatmul.mubr.f32.gmra.mrb[0].mxu0 %v515
  %v616 = vpop.f32.mrb[0].mxu0
  %v617 = vadd.f32 %v489, %v616
  %v618 = vpop.f32.mrb[0].mxu0
  %619 = vmatprep.mubr.f32.mxu0 0.0
  %620 = vmatmul.mubr.f32.gmra.mrb[0].mxu0 %v518
  %v621 = vpop.f32.mrb[0].mxu0
  %v622 = vadd.f32 %v494, %v621
  %v623 = vpop.f32.mrb[0].mxu0
  %624 = vdwg.mxu0
  %v625 = vtanh.pop %v587
  %v626 = vtanh.pop %v592
  %v627 = vtanh.pop %v597
  %v628 = vtanh.pop %v602
  %v629 = vtanh.pop %v607
  %v630 = vtanh.pop %v612
  %v631 = vtanh.pop %v617
  %v632 = vtanh.pop %v622
  %v633 = vld [vmem:[%s10] sm:$0xff]
  %v634 = vld [vmem:[%s10 + $0x8] sm:$0xff]
  %v635 = vld [vmem:[%s10 + $0x10] sm:$0xff]
  %v636 = vld [vmem:[%s10 + $0x18] sm:$0xff]
  %v637 = vld [vmem:[%s10 + $0x20] sm:$0xff]
  %v638 = vld [vmem:[%s10 + $0x28] sm:$0xff]
  %v639 = vld [vmem:[%s10 + $0x30] sm:$0x7f]
  %v640 = vld [vmem:[%s11] sm:$0xff]
  %v641 = vld [vmem:[%s11 + $0x8] sm:$0xff]
  %v642 = vld [vmem:[%s11 + $0x10] sm:$0xff]
  %v643 = vld [vmem:[%s11 + $0x18] sm:$0xff]
  %v644 = vld [vmem:[%s11 + $0x20] sm:$0xff]
  %v645 = vld [vmem:[%s11 + $0x28] sm:$0xff]
  %v646 = vld [vmem:[%s11 + $0x30] sm:$0x7f]
  %648 = vset.pattern.permute.xlu0 0
  %649 = vperm.xlu0 %648, %v640
  %v650 = vpop.permute.xlu0 %649
  %653 = vset.pattern.permute.xlu0 0
  %654 = vperm.xlu0 %653, %v641
  %v655 = vpop.permute.xlu0 %654
  %658 = vset.pattern.permute.xlu0 0
  %659 = vperm.xlu0 %658, %v642
  %v660 = vpop.permute.xlu0 %659
  %663 = vset.pattern.permute.xlu0 0
  %664 = vperm.xlu0 %663, %v643
  %v665 = vpop.permute.xlu0 %664
  %668 = vset.pattern.permute.xlu0 0
  %669 = vperm.xlu0 %668, %v644
  %v670 = vpop.permute.xlu0 %669
  %673 = vset.pattern.permute.xlu0 0
  %674 = vperm.xlu0 %673, %v645
  %v675 = vpop.permute.xlu0 %674
  %678 = vset.pattern.permute.xlu0 0
  %679 = vperm.xlu0 %678, %v646
  %v680 = vpop.permute.xlu0 %679
  %v683 = vsel %vm302, %v633, 0
  %v686 = vsel %vm302, %v634, 0
  %v689 = vsel %vm302, %v635, 0
  %v692 = vsel %vm302, %v636, 0
  %v695 = vsel %vm302, %v637, 0
  %v698 = vsel %vm302, %v638, 0
  %v701 = vsel %vm302, %v639, 0
  %703 = vmatprep.subr.mxu0 0.0
  %704 = vmatpush1.msra.mxu0 %v625
  %705 = vmatprep.subr.mxu0 0.0
  %706 = vmatpush1.msra.mxu0 %v626
  %707 = vmatprep.subr.mxu0 0.0
  %708 = vmatpush1.msra.mxu0 %v627
  %709 = vmatprep.subr.mxu0 0.0
  %710 = vmatpush1.msra.mxu0 %v628
  %711 = vmatprep.subr.mxu0 0.0
  %712 = vmatpush1.msra.mxu0 %v629
  %713 = vmatprep.subr.mxu0 0.0
  %714 = vmatpush1.msra.mxu0 %v630
  %715 = vmatprep.subr.mxu0 0.0
  %716 = vmatpush1.msra.mxu0 %v631
  %717 = vmatprep.subr.mxu0 0.0
  %718 = vmatpush1.msra.mxu0 %v632
  %719 = vmatprep.subr.mxu0 0.0
  %720 = vmatpush1.msra.mxu0 0.0
  %721 = vmatprep.subr.mxu0 0.0
  %722 = vmatpush1.msra.mxu0 0.0
  %723 = vmatprep.subr.mxu0 0.0
  %724 = vmatpush1.msra.mxu0 0.0
  %725 = vmatprep.subr.mxu0 0.0
  %726 = vmatpush1.msra.mxu0 0.0
  %727 = vmatprep.subr.mxu0 0.0
  %728 = vmatpush1.msra.mxu0 0.0
  %729 = vmatprep.subr.mxu0 0.0
  %730 = vmatpush1.msra.mxu0 0.0
  %731 = vmatprep.subr.mxu0 0.0
  %732 = vmatpush1.msra.mxu0 0.0
  %733 = vmatprep.subr.mxu0 0.0
  %734 = vmatpush1.msra.mxu0 0.0
  %735 = vmatprep.subr.mxu0 0.0
  %736 = vmatpush1.msra.mxu0 0.0
  %737 = vmatprep.subr.mxu0 0.0
  %738 = vmatpush1.msra.mxu0 0.0
  %739 = vmatprep.subr.mxu0 0.0
  %740 = vmatpush1.msra.mxu0 0.0
  %741 = vmatprep.subr.mxu0 0.0
  %742 = vmatpush1.msra.mxu0 0.0
  %743 = vmatprep.subr.mxu0 0.0
  %744 = vmatpush1.msra.mxu0 0.0
  %745 = vmatprep.subr.mxu0 0.0
  %746 = vmatpush1.msra.mxu0 0.0
  %747 = vmatprep.subr.mxu0 0.0
  %748 = vmatpush1.msra.mxu0 0.0
  %749 = vmatprep.subr.mxu0 0.0
  %750 = vmatpush1.msra.mxu0 0.0
  %751 = vmatprep.subr.mxu0 0.0
  %752 = vmatpush1.msra.mxu0 0.0
  %753 = vmatprep.subr.mxu0 0.0
  %754 = vmatpush1.msra.mxu0 0.0
  %755 = vmatprep.subr.mxu0 0.0
  %756 = vmatpush1.msra.mxu0 0.0
  %757 = vmatprep.subr.mxu0 0.0
  %758 = vmatpush1.msra.mxu0 0.0
  %759 = vmatprep.subr.mxu0 0.0
  %760 = vmatpush1.msra.mxu0 0.0
  %761 = vmatprep.subr.mxu0 0.0
  %762 = vmatpush1.msra.mxu0 0.0
  %763 = vmatprep.subr.mxu0 0.0
  %764 = vmatpush1.msra.mxu0 0.0
  %765 = vmatprep.subr.mxu0 0.0
  %766 = vmatpush1.msra.mxu0 0.0
  %767 = vmatprep.mubr.f32.mxu0 0.0
  %768 = vmatmul.mubr.f32.gmra.mrb[0].mxu0 %v683
  %v769 = vpop.f32.mrb[0].mxu0
  %v770 = vadd.f32 %v650, %v769
  %v771 = vpop.f32.mrb[0].mxu0
  %772 = vmatprep.mubr.f32.mxu0 0.0
  %773 = vmatmul.mubr.f32.gmra.mrb[0].mxu0 %v686
  %v774 = vpop.f32.mrb[0].mxu0
  %v775 = vadd.f32 %v655, %v774
  %v776 = vpop.f32.mrb[0].mxu0
  %777 = vmatprep.mubr.f32.mxu0 0.0
  %778 = vmatmul.mubr.f32.gmra.mrb[0].mxu0 %v689
  %v779 = vpop.f32.mrb[0].mxu0
  %v780 = vadd.f32 %v660, %v779
  %v781 = vpop.f32.mrb[0].mxu0
  %782 = vmatprep.mubr.f32.mxu0 0.0
  %783 = vmatmul.mubr.f32.gmra.mrb[0].mxu0 %v692
  %v784 = vpop.f32.mrb[0].mxu0
  %v785 = vadd.f32 %v665, %v784
  %v786 = vpop.f32.mrb[0].mxu0
  %787 = vmatprep.mubr.f32.mxu0 0.0
  %788 = vmatmul.mubr.f32.gmra.mrb[0].mxu0 %v695
  %v789 = vpop.f32.mrb[0].mxu0
  %v790 = vadd.f32 %v670, %v789
  %v791 = vpop.f32.mrb[0].mxu0
  %792 = vmatprep.mubr.f32.mxu0 0.0
  %793 = vmatmul.mubr.f32.gmra.mrb[0].mxu0 %v698
  %v794 = vpop.f32.mrb[0].mxu0
  %v795 = vadd.f32 %v675, %v794
  %v796 = vpop.f32.mrb[0].mxu0
  %797 = vmatprep.mubr.f32.mxu0 0.0
  %798 = vmatmul.mubr.f32.gmra.mrb[0].mxu0 %v701
  %v799 = vpop.f32.mrb[0].mxu0
  %v800 = vadd.f32 %v680, %v799
  %v801 = vpop.f32.mrb[0].mxu0
  %802 = vdwg.mxu0
  %v804 = vlaneseq
  %v805 = vshrl.u32 %v804, 7
  %v806 = vsub.s32 0, %v805
  %v807 = vrot.slane %v47, %v806
  %v809 = vmul.f32 %v770, %v807
  %v810 = vmul.f32 %v775, %v807
  %v811 = vmul.f32 %v780, %v807
  %v812 = vmul.f32 %v785, %v807
  %v813 = vmul.f32 %v790, %v807
  %v814 = vmul.f32 %v795, %v807
  %v815 = vmul.f32 %v800, %v807
  %v816 = vmax.f32 %v814, 0.0
  %v817 = vmax.f32 %v815, 0.0
  %v818 = vand.u32 2147483647, %v814
  %v819 = vand.u32 2147483647, %v815
  %v820 = vsub.f32 0.0, %v818
  %v821 = vsub.f32 0.0, %v819
  %v822 = vmul.f32 %v820, 1.442695
  %v823 = vpow.pop %v822
  %v824 = vmul.f32 %v821, 1.442695
  %v825 = vpow.pop %v824
  %v826 = vadd.f32 %v823, 1.0
  %v827 = vadd.f32 %v825, 1.0
  %v828 = vlog2.pop %v826
  %v829 = vmul.f32 %v828, 0.6931472
  %v830 = vlog2.pop %v827
  %v831 = vmul.f32 %v830, 0.6931472
  %v832 = vadd.f32 %v816, %v829
  %v833 = vadd.f32 %v817, %v831
  %v834 = vmax.f32 %v832, 1e-06
  %v835 = vmax.f32 %v833, 1e-06
  %v836 = vmin.f32 %v834, 1000000.0
  %v837 = vmin.f32 %v835, 1000000.0
  %v838 = vrsqrt.pop %v836
  %v839 = vmul.f32 %v836, %v838
  %vm840 = vcmp.eq.f32.partialorder %v836, inf
  %v841 = vsel %vm840, %v836, %v839
  %vm842 = vcmp.eq.f32.partialorder %v836, 0.0
  %v843 = vand.u32 %v836, 2147483648
  %v844 = vsel %vm842, %v843, %v841
  %v845 = vrsqrt.pop %v837
  %v846 = vmul.f32 %v837, %v845
  %vm847 = vcmp.eq.f32.partialorder %v837, inf
  %v848 = vsel %vm847, %v837, %v846
  %vm849 = vcmp.eq.f32.partialorder %v837, 0.0
  %v850 = vand.u32 %v837, 2147483648
  %v851 = vsel %vm849, %v850, %v848
  %v852 = vmul.f32 %v809, %v809
  %v853 = vmul.f32 %v810, %v810
  %vm856 = vcmask 1042432
  %v857 = vrot.slane %v852, 5
  %v858 = vrot.slane %v853, 5
  %v859 = vsel %vm856, %v857, %v858
  %v861 = vadd.f32 %v852, %v859
  %v862 = vrot.slane %v853, 2
  %v864 = vadd.f32 %v861, %v862
  %v866 = vrot.slane %v864, 3
  %v868 = vmul.f32 %v836, %v866
  %v869 = vmul.f32 %v837, %v866
  %v871 = vrot.slane %v837, 5
  %v873 = vadd.f32 %v868, %v871
  %v874 = vadd.f32 %v869, %v871
  %875 = vst [vmem:[%s13 - $0x5] sm:$0xe0] %v873
  %876 = vst [vmem:[%s13 + $0x3] sm:$0x3] %v874
  %vm879 = vcmask 1040384
  %v880 = vrot.slane %v810, 7
  %v881 = vrot.slane %v811, 7
  %v882 = vsel %vm879, %v880, %v881
  %v884 = vmul.f32 %v809, %v882
  %v886 = vrot.slane %v812, 7
  %v887 = vsel %vm879, %v881, %v886
  %v890 = vmul.f32 %v809, %v881
  %v891 = vmul.f32 %v810, %v887
  %v894 = vrot.slane %v890, 5
  %v895 = vrot.slane %v891, 5
  %v896 = vsel %vm856, %v894, %v895
  %v898 = vadd.f32 %v884, %v896
  %v900 = vmul.f32 %v810, %v886
  %v902 = vrot.slane %v900, 2
  %v904 = vadd.f32 %v898, %v902
  %v906 = vrot.slane %v904, 3
  %v908 = vmul.f32 %v836, %v906
  %v909 = vmul.f32 %v837, %v906
  %910 = vst [vmem:[%s13] sm:$0xe0] %v908
  %911 = vst [vmem:[%s13 + $0x8] sm:$0x3] %v909
  %912 = vst [vmem:[%s13 + $0xa] sm:$0xe0] %v908
  %913 = vst [vmem:[%s13 + $0x12] sm:$0x3] %v909
  %vm915 = vcmask 1041408
  %v916 = vrot.slane %v812, 6
  %v917 = vrot.slane %v813, 6
  %v918 = vsel %vm915, %v916, %v917
  %v920 = vmul.f32 %v809, %v918
  %v922 = vmul.f32 %v809, %v917
  %v923 = vmul.f32 %v810, %v917
  %v926 = vrot.slane %v922, 5
  %v927 = vrot.slane %v923, 5
  %v928 = vsel %vm856, %v926, %v927
  %v930 = vadd.f32 %v920, %v928
  %v932 = vrot.slane %v814, 6
  %v934 = vmul.f32 %v810, %v932
  %v936 = vrot.slane %v934, 2
  %v938 = vadd.f32 %v930, %v936
  %v940 = vrot.slane %v938, 3
  %v942 = vmul.f32 %v836, %v940
  %v943 = vmul.f32 %v837, %v940
  %944 = vst [vmem:[%s13 + $0x5] sm:$0xe0] %v942
  %945 = vst [vmem:[%s13 + $0xd] sm:$0x3] %v943
  %946 = vst [vmem:[%s13 + $0x19] sm:$0xe0] %v942
  %947 = vst [vmem:[%s13 + $0x21] sm:$0x3] %v943
  %v948 = vmul.f32 %v811, %v811
  %v949 = vmul.f32 %v812, %v812
  %v952 = vrot.slane %v948, 5
  %v953 = vrot.slane %v949, 5
  %v954 = vsel %vm856, %v952, %v953
  %v957 = vadd.f32 %v853, %v952
  %v958 = vadd.f32 %v948, %v954
  %v959 = vrot.slane %v949, 2
  %v961 = vadd.f32 %v957, %v959
  %v962 = vadd.f32 %v958, %v959
  %vm965 = vcmask 1045504
  %v966 = vrot.slane %v961, 2
  %v967 = vrot.slane %v962, 2
  %v968 = vsel %vm965, %v966, %v967
  %v971 = vmul.f32 %v836, %v968
  %v972 = vmul.f32 %v837, %v967
  %v973 = vadd.f32 %v971, %v871
  %v974 = vadd.f32 %v972, %v871
  %975 = vst [vmem:[%s13 + $0xf] sm:$0xe0] %v973
  %976 = vst [vmem:[%s13 + $0x17] sm:$0x3] %v974
  %v977 = vrot.slane %v813, 7
  %v978 = vsel %vm879, %v886, %v977
  %v980 = vmul.f32 %v811, %v978
  %v982 = vmul.f32 %v811, %v977
  %v983 = vmul.f32 %v812, %v977
  %v986 = vrot.slane %v982, 5
  %v987 = vrot.slane %v983, 5
  %v988 = vsel %vm856, %v986, %v987
  %v991 = vadd.f32 %v900, %v986
  %v992 = vadd.f32 %v980, %v988
  %v993 = vrot.slane %v814, 7
  %v995 = vmul.f32 %v812, %v993
  %v997 = vrot.slane %v995, 2
  %v999 = vadd.f32 %v991, %v997
  %v1000 = vadd.f32 %v992, %v997
  %v1003 = vrot.slane %v999, 2
  %v1004 = vrot.slane %v1000, 2
  %v1005 = vsel %vm965, %v1003, %v1004
  %v1008 = vmul.f32 %v836, %v1005
  %v1009 = vmul.f32 %v837, %v1004
  %1010 = vst [vmem:[%s13 + $0x14] sm:$0xe0] %v1008
  %1011 = vst [vmem:[%s13 + $0x1c] sm:$0x3] %v1009
  %1012 = vst [vmem:[%s13 + $0x1e] sm:$0xe0] %v1008
  %1013 = vst [vmem:[%s13 + $0x26] sm:$0x3] %v1009
  %v1014 = vmul.f32 %v813, %v813
  %v1016 = vrot.slane %v1014, 5
  %v1018 = vadd.f32 %v949, %v1016
  %v1019 = vadd.f32 %v1014, %v1016
  %v1020 = vmul.f32 %v814, %v814
  %v1022 = vrot.slane %v1020, 2
  %v1024 = vadd.f32 %v1018, %v1022
  %v1025 = vadd.f32 %v1019, %v1022
  %vm1028 = vcmask 1046528
  %v1029 = vrot.slane %v1024, 1
  %v1030 = vrot.slane %v1025, 1
  %v1031 = vsel %vm1028, %v1029, %v1030
  %v1034 = vmul.f32 %v836, %v1031
  %v1035 = vmul.f32 %v837, %v1030
  %v1036 = vadd.f32 %v1034, %v871
  %v1037 = vadd.f32 %v1035, %v871
  %1038 = vst [vmem:[%s13 + $0x23] sm:$0xe0] %v1036
  %1039 = vst [vmem:[%s13 + $0x2b] sm:$0x3] %v1037
  %v1040 = vld [vmem:[%s2] sm:$0x1f]
  %v1041 = vld [vmem:[%s2 + $0x5] sm:$0x1f]
  %v1042 = vld [vmem:[%s2 + $0xa] sm:$0x1f]
  %v1043 = vld [vmem:[%s3] sm:$0x1f]
  %v1044 = vld [vmem:[%s3 + $0x5] sm:$0x1f]
  %v1045 = vld [vmem:[%s3 + $0xa] sm:$0x1f]
  %v1046 = vmul.f32 %v809, %v1040
  %v1048 = vrot.slane %v1041, 3
  %v1050 = vmul.f32 %v809, %v1048
  %v1051 = vmul.f32 %v810, %v1048
  %v1054 = vrot.slane %v1050, 5
  %v1055 = vrot.slane %v1051, 5
  %v1056 = vsel %vm856, %v1054, %v1055
  %v1058 = vadd.f32 %v1046, %v1056
  %v1060 = vrot.slane %v1042, 6
  %v1062 = vmul.f32 %v810, %v1060
  %v1064 = vrot.slane %v1062, 2
  %v1066 = vadd.f32 %v1058, %v1064
  %v1068 = vrot.slane %v1066, 3
  %v1070 = vmul.f32 %v844, %v1068
  %v1071 = vmul.f32 %v851, %v1068
  %v1073 = vrot.slane %v1043, 6
  %v1075 = vmul.f32 %v851, %v1073
  %v1077 = vrot.slane %v1075, 5
  %v1079 = vadd.f32 %v1070, %v1077
  %v1080 = vadd.f32 %v1071, %v1077
  %v1082 = vrot.slane %v1040, 1
  %v1084 = vmul.f32 %v810, %v1082
  %v1085 = vmul.f32 %v811, %v1082
  %v1086 = vrot.slane %v1041, 4
  %v1088 = vmul.f32 %v811, %v1086
  %v1089 = vmul.f32 %v812, %v1086
  %v1092 = vrot.slane %v1088, 5
  %v1093 = vrot.slane %v1089, 5
  %v1094 = vsel %vm856, %v1092, %v1093
  %v1097 = vadd.f32 %v1084, %v1092
  %v1098 = vadd.f32 %v1085, %v1094
  %v1099 = vrot.slane %v1042, 7
  %v1101 = vmul.f32 %v812, %v1099
  %v1103 = vrot.slane %v1101, 2
  %v1105 = vadd.f32 %v1097, %v1103
  %v1106 = vadd.f32 %v1098, %v1103
  %v1109 = vrot.slane %v1105, 2
  %v1110 = vrot.slane %v1106, 2
  %v1111 = vsel %vm965, %v1109, %v1110
  %v1114 = vmul.f32 %v844, %v1111
  %v1115 = vmul.f32 %v851, %v1110
  %v1117 = vrot.slane %v1044, 6
  %v1119 = vmul.f32 %v851, %v1117
  %v1121 = vrot.slane %v1119, 5
  %v1123 = vadd.f32 %v1114, %v1121
  %v1124 = vadd.f32 %v1115, %v1121
  %v1125 = vrot.slane %v1040, 2
  %v1127 = vmul.f32 %v812, %v1125
  %v1128 = vmul.f32 %v813, %v1125
  %v1129 = vrot.slane %v1041, 5
  %v1131 = vmul.f32 %v813, %v1129
  %v1133 = vrot.slane %v1131, 5
  %v1135 = vadd.f32 %v1127, %v1133
  %v1136 = vadd.f32 %v1128, %v1133
  %v1137 = vmul.f32 %v814, %v1042
  %v1139 = vrot.slane %v1137, 2
  %v1141 = vadd.f32 %v1135, %v1139
  %v1142 = vadd.f32 %v1136, %v1139
  %v1145 = vrot.slane %v1141, 1
  %v1146 = vrot.slane %v1142, 1
  %v1147 = vsel %vm1028, %v1145, %v1146
  %v1150 = vmul.f32 %v844, %v1147
  %v1151 = vmul.f32 %v851, %v1146
  %v1153 = vrot.slane %v1045, 6
  %v1155 = vmul.f32 %v851, %v1153
  %v1157 = vrot.slane %v1155, 5
  %v1159 = vadd.f32 %v1150, %v1157
  %v1160 = vadd.f32 %v1151, %v1157
  %vm1161 = vcmp.ne.f32.partialorder %v44, 0.0
  %vm1162 = vcmp.ne.f32.partialorder %v45, 0.0
  %v1163 = vsel %vm1161, 1, 0
  %v1164 = vsel %vm1162, 1, 0
  %v1165 = vrot.slane %v1163, 5
  %v1166 = vrot.slane %v1164, 5
  %v1167 = vsel %vm856, %v1165, %v1166
  %vm1168 = vcmp.ne.s32.totalorder %v1167, 0
  %vm1169 = vmor %vm1161, %vm1168
  %v1170 = vrot.slane %v1164, 2
  %vm1171 = vcmp.ne.s32.totalorder %v1170, 0
  %vm1172 = vmor %vm1169, %vm1171
  %v1173 = vsel %vm1172, 1, 0
  %v1174 = vcvt.s32.f32 %v1173
  %v1177 = vrot.slane %v1079, 5
  %v1178 = vrot.slane %v1080, 5
  %v1179 = vsel %vm856, %v1177, %v1178
  %v1181 = vadd.f32 %v44, %v1179
  %v1182 = vmul.f32 %v1181, %v1174
  %v1183 = vadd.f32 %v44, %v1123
  %v1184 = vadd.f32 %v45, %v1124
  %v1186 = vrot.slane %v1174, 3
  %v1188 = vmul.f32 %v1183, %v1186
  %v1189 = vmul.f32 %v1184, %v1186
  %vm1192 = vcmask 1044480
  %v1193 = vrot.slane %v1159, 3
  %v1194 = vrot.slane %v1160, 3
  %v1195 = vsel %vm1192, %v1193, %v1194
  %v1197 = vadd.f32 %v45, %v1195
  %v1198 = vrot.slane %v1174, 6
  %v1200 = vmul.f32 %v1197, %v1198
  %1201 = vst [vmem:[%s14] sm:$0x1f] %v1174
  %v1202 = vmul.f32 %v1182, %v807
  %1203 = vst [vmem:[%s12] sm:$0x1f] %v1202
  %v1204 = vmul.f32 %v1188, %v807
  %v1205 = vmul.f32 %v1189, %v807
  %1206 = vst [vmem:[%s12] sm:$0xe0] %v1204
  %1207 = vst [vmem:[%s12 + $0x8] sm:$0x3] %v1205
  %v1208 = vmul.f32 %v1200, %v807
  %1209 = vst [vmem:[%s12 + $0x8] sm:$0x7c] %v1208
  %v1211 = vrot.slane %v1182, 7
  %v1213 = vsub.f32 %v1182, %v1211
  %v1216 = vrot.slane %v1188, 7
  %v1217 = vrot.slane %v1189, 7
  %v1218 = vsel %vm879, %v1216, %v1217
  %v1221 = vsub.f32 %v1188, %v1216
  %v1222 = vsub.f32 %v1189, %v1218
  %v1224 = vrot.slane %v1200, 7
  %v1226 = vsub.f32 %v1200, %v1224
  %v1227 = vmul.f32 %v1213, %v1213
  %v1228 = vmul.f32 %v1221, %v1221
  %v1229 = vmul.f32 %v1222, %v1222
  %v1232 = vrot.slane %v1228, 5
  %v1233 = vrot.slane %v1229, 5
  %v1234 = vsel %vm856, %v1232, %v1233
  %v1236 = vadd.f32 %v1227, %v1234
  %v1237 = vmul.f32 %v1226, %v1226
  %v1239 = vrot.slane %v1237, 2
  %v1241 = vadd.f32 %v1236, %v1239
  %v1242 = vrsqrt.pop %v1241
  %v1243 = vmul.f32 %v1241, %v1242
  %vm1244 = vcmp.eq.f32.partialorder %v1241, inf
  %v1245 = vsel %vm1244, %v1241, %v1243
  %vm1246 = vcmp.eq.f32.partialorder %v1241, 0.0
  %v1247 = vand.u32 %v1241, 2147483648
  %v1248 = vsel %vm1246, %v1247, %v1245
  %v1249 = vrot.slane %v1182, 4
  %v1251 = vsub.f32 %v1182, %v1249
  %v1252 = vmul.f32 %v1251, %v1251
  %v1253 = vrot.slane %v1188, 4
  %v1255 = vsub.f32 %v1189, %v1253
  %v1256 = vmul.f32 %v1255, %v1255
  %v1258 = vrot.slane %v1256, 5
  %v1260 = vadd.f32 %v1252, %v1258
  %v1261 = vrot.slane %v1200, 4
  %v1263 = vsub.f32 %v1200, %v1261
  %v1264 = vmul.f32 %v1263, %v1263
  %v1266 = vrot.slane %v1264, 2
  %v1268 = vadd.f32 %v1260, %v1266
  %v1269 = vrsqrt.pop %v1268
  %v1270 = vmul.f32 %v1268, %v1269
  %vm1271 = vcmp.eq.f32.partialorder %v1268, inf
  %v1272 = vsel %vm1271, %v1268, %v1270
  %vm1273 = vcmp.eq.f32.partialorder %v1268, 0.0
  %v1274 = vand.u32 %v1268, 2147483648
  %v1275 = vsel %vm1273, %v1274, %v1272
  %v1277 = vrot.slane %v1248, 1
  %v1280 = vrot.slane %v1275, 7
  %v1282 = vsel %vm129, %v1277, 0.0
  %v1283 = vsel %vm1192, %v1282, %v1280
  %v1284 = vmul.f32 %v1283, %v807
  %1285 = vst [vmem:[%s12 + $0xf] sm:$0x3f] %v1284
  %vm1286 = vcmp.eq.f32.partialorder %v1182, 0.0
  %v1287 = vand.u32 2147483647, %v1188
  %v1288 = vand.u32 2147483647, %v1189
  %vm1289 = vcmp.gt.f32.partialorder %v1287, 2.4142137
  %vm1290 = vcmp.gt.f32.partialorder %v1288, 2.4142137
  %vm1291 = vcmp.gt.f32.partialorder %v1287, 0.41421357
  %vm1292 = vcmp.gt.f32.partialorder %v1288, 0.41421357
  %v1293 = vrcp.pop %v1287
  %v1294 = vmul.f32 -1.0, %v1293
  %v1295 = vrcp.pop %v1288
  %v1296 = vmul.f32 -1.0, %v1295
  %v1297 = vsub.f32 %v1287, 1.0
  %v1298 = vsub.f32 %v1288, 1.0
  %v1299 = vadd.f32 %v1287, 1.0
  %v1300 = vadd.f32 %v1288, 1.0
  %v1301 = vrcp.pop %v1299
  %v1302 = vmul.f32 %v1297, %v1301
  %v1303 = vrcp.pop %v1300
  %v1304 = vmul.f32 %v1298, %v1303
  %v1305 = vsel %vm1291, %v1302, %v1287
  %v1306 = vsel %vm1292, %v1304, %v1288
  %v1307 = vsel %vm1289, %v1294, %v1305
  %v1308 = vsel %vm1290, %v1296, %v1306
  %v1309 = vsel %vm1291, 0.7853982, 0.0
  %v1310 = vsel %vm1292, 0.7853982, 0.0
  %v1311 = vsel %vm1289, 1.5707964, %v1309
  %v1312 = vsel %vm1290, 1.5707964, %v1310
  %v1313 = vmul.f32 %v1307, %v1307
  %v1314 = vmul.f32 %v1308, %v1308
  %v1315 = vmul.f32 %v1313, 0.080537446
  %v1316 = vmul.f32 %v1314, 0.080537446
  %v1317 = vsub.f32 %v1315, 0.13877685
  %v1318 = vsub.f32 %v1316, 0.13877685
  %v1319 = vmul.f32 %v1317, %v1313
  %v1320 = vmul.f32 %v1318, %v1314
  %v1321 = vadd.f32 %v1319, 0.19977711
  %v1322 = vadd.f32 %v1320, 0.19977711
  %v1323 = vmul.f32 %v1321, %v1313
  %v1324 = vmul.f32 %v1322, %v1314
  %v1325 = vsub.f32 %v1323, 0.3333295
  %v1326 = vsub.f32 %v1324, 0.3333295
  %v1327 = vmul.f32 %v1325, %v1313
  %v1328 = vmul.f32 %v1326, %v1314
  %v1329 = vmul.f32 %v1327, %v1307
  %v1330 = vmul.f32 %v1328, %v1308
  %v1331 = vadd.f32 %v1329, %v1307
  %v1332 = vadd.f32 %v1330, %v1308
  %v1333 = vadd.f32 %v1311, %v1331
  %v1334 = vadd.f32 %v1312, %v1332
  %vm1335 = vcmp.lt.f32.partialorder %v1188, 0.0
  %vm1336 = vcmp.lt.f32.partialorder %v1189, 0.0
  %v1337 = vsub.f32 0.0, %v1333
  %v1338 = vsub.f32 0.0, %v1334
  %v1339 = vsel %vm1335, %v1337, %v1333
  %v1340 = vsel %vm1336, %v1338, %v1334
  %vm1341 = vcmp.gt.f32.partialorder %v1188, 0.0
  %vm1342 = vcmp.gt.f32.partialorder %v1189, 0.0
  %v1343 = vsel %vm1335, -1.5707964, 0.0
  %v1344 = vsel %vm1336, -1.5707964, 0.0
  %v1345 = vsel %vm1341, 1.5707964, %v1343
  %v1346 = vsel %vm1342, 1.5707964, %v1344
  %v1349 = vrot.slane %v1339, 5
  %v1350 = vrot.slane %v1340, 5
  %v1351 = vsel %vm856, %v1349, %v1350
  %v1355 = vrot.slane %v1345, 5
  %v1356 = vrot.slane %v1346, 5
  %v1357 = vsel %vm856, %v1355, %v1356
  %v1359 = vsel %vm1286, %v1351, %v1357
  %v1361 = vrot.slane %v1359, 7
  %v1363 = vsub.f32 %v1359, %v1361
  %v1364 = vmul.f32 %v1363, %v807
  %1365 = vst [vmem:[%s12 + $0x14] sm:$0x1e] %v1364
  %1366 = vst [vmem:[%s12 + $0x19] sm:$0x7] 0.0
  %v1367 = vsel %vm1192, %v1174, 0.0
  %v1368 = vrot.slane %v1367, 4
  %v1369 = vadd.f32 %v1367, %v1368
  %v1370 = vrot.slane %v1369, 2
  %v1371 = vadd.f32 %v1369, %v1370
  %v1372 = vrot.slane %v1371, 1
  %v1373 = vadd.f32 %v1371, %v1372
  %v1374 = vmul.f32 %v1182, %v1182
  %v1375 = vsel %vm1192, %v1374, 0.0
  %v1376 = vrot.slane %v1375, 4
  %v1377 = vadd.f32 %v1375, %v1376
  %v1378 = vrot.slane %v1377, 2
  %v1379 = vadd.f32 %v1377, %v1378
  %v1380 = vrot.slane %v1379, 1
  %v1381 = vadd.f32 %v1379, %v1380
  %v1382 = vrot.slane %v1188, 5
  %v1383 = vrot.slane %v1189, 5
  %v1384 = vsel %vm856, %v1382, %v1383
  %v1386 = vmul.f32 %v1182, %v1384
  %v1387 = vsel %vm1192, %v1386, 0.0
  %v1388 = vrot.slane %v1387, 4
  %v1389 = vadd.f32 %v1387, %v1388
  %v1390 = vrot.slane %v1389, 2
  %v1391 = vadd.f32 %v1389, %v1390
  %v1392 = vrot.slane %v1391, 1
  %v1393 = vadd.f32 %v1391, %v1392
  %v1394 = vmul.f32 %v1188, %v1188
  %v1395 = vmul.f32 %v1189, %v1189
  %v1398 = vrot.slane %v1394, 5
  %v1399 = vrot.slane %v1395, 5
  %v1400 = vsel %vm856, %v1398, %v1399
  %v1402 = vsel %vm1192, %v1400, 0.0
  %v1403 = vrot.slane %v1402, 4
  %v1404 = vadd.f32 %v1402, %v1403
  %v1405 = vrot.slane %v1404, 2
  %v1406 = vadd.f32 %v1404, %v1405
  %v1407 = vrot.slane %v1406, 1
  %v1408 = vadd.f32 %v1406, %v1407
  %v1409 = vsel %vm1192, %v1182, 0.0
  %v1410 = vrot.slane %v1409, 4
  %v1411 = vadd.f32 %v1409, %v1410
  %v1412 = vrot.slane %v1411, 2
  %v1413 = vadd.f32 %v1411, %v1412
  %v1414 = vrot.slane %v1413, 1
  %v1415 = vadd.f32 %v1413, %v1414
  %v1416 = vsel %vm1192, %v1384, 0.0
  %v1417 = vrot.slane %v1416, 4
  %v1418 = vadd.f32 %v1416, %v1417
  %v1419 = vrot.slane %v1418, 2
  %v1420 = vadd.f32 %v1418, %v1419
  %v1421 = vrot.slane %v1420, 1
  %v1422 = vadd.f32 %v1420, %v1421
  %v1423 = vadd.f32 %v1374, %v1400
  %v1424 = vmul.f32 %v1182, %v1423
  %v1425 = vsel %vm1192, %v1424, 0.0
  %v1426 = vrot.slane %v1425, 4
  %v1427 = vadd.f32 %v1425, %v1426
  %v1428 = vrot.slane %v1427, 2
  %v1429 = vadd.f32 %v1427, %v1428
  %v1430 = vrot.slane %v1429, 1
  %v1431 = vadd.f32 %v1429, %v1430
  %v1432 = vsub.f32 0.0, %v1431
  %v1434 = vrot.slane %v1423, 3
  %v1436 = vmul.f32 %v1188, %v1434
  %v1437 = vmul.f32 %v1189, %v1434
  %v1440 = vrot.slane %v1436, 5
  %v1441 = vrot.slane %v1437, 5
  %v1442 = vsel %vm856, %v1440, %v1441
  %v1444 = vsel %vm1192, %v1442, 0.0
  %v1445 = vrot.slane %v1444, 4
  %v1446 = vadd.f32 %v1444, %v1445
  %v1447 = vrot.slane %v1446, 2
  %v1448 = vadd.f32 %v1446, %v1447
  %v1449 = vrot.slane %v1448, 1
  %v1450 = vadd.f32 %v1448, %v1449
  %v1451 = vsub.f32 0.0, %v1450
  %v1452 = vsel %vm1192, %v1423, 0.0
  %v1453 = vrot.slane %v1452, 4
  %v1454 = vadd.f32 %v1452, %v1453
  %v1455 = vrot.slane %v1454, 2
  %v1456 = vadd.f32 %v1454, %v1455
  %v1457 = vrot.slane %v1456, 1
  %v1458 = vadd.f32 %v1456, %v1457
  %v1459 = vsub.f32 0.0, %v1458
  %v1460 = vmul.f32 %v1408, %v1373
  %v1461 = vmul.f32 %v1422, %v1422
  %v1462 = vsub.f32 %v1460, %v1461
  %v1463 = vmul.f32 %v1381, %v1462
  %v1464 = vmul.f32 %v1393, %v1373
  %v1465 = vmul.f32 %v1422, %v1415
  %v1466 = vsub.f32 %v1464, %v1465
  %v1467 = vmul.f32 %v1393, %v1466
  %v1468 = vsub.f32 %v1463, %v1467
  %v1469 = vmul.f32 %v1393, %v1422
  %v1470 = vmul.f32 %v1408, %v1415
  %v1471 = vsub.f32 %v1469, %v1470
  %v1472 = vmul.f32 %v1415, %v1471
  %v1473 = vadd.f32 %v1468, %v1472
  %vm1474 = vcmp.ge.f32.partialorder %v1373, 3.0
  %v1475 = vand.u32 2147483647, %v1473
  %vm1476 = vcmp.gt.f32.partialorder %v1475, 1e-12
  %vm1477 = vmand %vm1474, %vm1476
  %v1478 = vsel %vm1477, 1, 0
  %v1479 = vcvt.s32.f32 %v1478
  %v1480 = vsel %vm1477, %v1473, 1.0
  %v1481 = vrcp.pop %v1480
  %v1482 = vmul.f32 1.0, %v1481
  %v1483 = vsub.f32 %v1465, %v1464
  %v1484 = vmul.f32 %v1381, %v1373
  %v1485 = vmul.f32 %v1415, %v1415
  %v1486 = vsub.f32 %v1484, %v1485
  %v1487 = vmul.f32 %v1415, %v1393
  %v1488 = vmul.f32 %v1381, %v1422
  %v1489 = vsub.f32 %v1487, %v1488
  %v1490 = vmul.f32 %v1381, %v1408
  %v1491 = vmul.f32 %v1393, %v1393
  %v1492 = vsub.f32 %v1490, %v1491
  %v1493 = vmul.f32 %v1462, %v1432
  %v1494 = vmul.f32 %v1483, %v1451
  %v1495 = vadd.f32 %v1493, %v1494
  %v1496 = vmul.f32 %v1471, %v1459
  %v1497 = vadd.f32 %v1495, %v1496
  %v1498 = vmul.f32 %v1479, %v1497
  %v1499 = vmul.f32 %v1498, %v1482
  %v1500 = vmul.f32 %v1483, %v1432
  %v1501 = vmul.f32 %v1486, %v1451
  %v1502 = vadd.f32 %v1500, %v1501
  %v1503 = vmul.f32 %v1489, %v1459
  %v1504 = vadd.f32 %v1502, %v1503
  %v1505 = vmul.f32 %v1479, %v1504
  %v1506 = vmul.f32 %v1505, %v1482
  %v1507 = vmul.f32 %v1471, %v1432
  %v1508 = vmul.f32 %v1489, %v1451
  %v1509 = vadd.f32 %v1507, %v1508
  %v1510 = vmul.f32 %v1492, %v1459
  %v1511 = vadd.f32 %v1509, %v1510
  %v1512 = vmul.f32 %v1479, %v1511
  %v1513 = vmul.f32 %v1512, %v1482
  %v1514 = vmul.f32 %v1499, %v1499
  %v1515 = vmul.f32 %v1506, %v1506
  %v1516 = vadd.f32 %v1514, %v1515
  %v1517 = vmul.f32 %v1513, 4.0
  %v1518 = vsub.f32 %v1516, %v1517
  %v1519 = vmax.f32 %v1518, 0.0
  %v1520 = vrsqrt.pop %v1519
  %v1521 = vmul.f32 %v1519, %v1520
  %vm1522 = vcmp.eq.f32.partialorder %v1519, inf
  %v1523 = vsel %vm1522, %v1519, %v1521
  %vm1524 = vcmp.eq.f32.partialorder %v1519, 0.0
  %v1525 = vand.u32 %v1519, 2147483648
  %v1526 = vsel %vm1524, %v1525, %v1523
  %v1527 = vrcp.pop 200.0
  %v1528 = vmul.f32 %v1526, %v1527
  %vm1529 = vcmp.gt.f32.partialorder %v1174, 0.0
  %v1530 = vsel %vm1529, %v1182, %v1249
  %v1532 = vrot.slane %v1188, 1
  %v1534 = vsel %vm1529, %v1383, %v1532
  %v1535 = vrot.slane %v1200, 2
  %v1537 = vrot.slane %v1200, 6
  %v1539 = vsel %vm1529, %v1535, %v1537
  %v1541 = vrot.slane %v1530, 1
  %v1543 = vsel %vm1529, %v1182, %v1541
  %v1545 = vrot.slane %v1534, 1
  %v1547 = vsel %vm1529, %v1383, %v1545
  %v1549 = vrot.slane %v1539, 1
  %v1551 = vsel %vm1529, %v1535, %v1549
  %v1553 = vrot.slane %v1543, 1
  %v1555 = vsel %vm1529, %v1182, %v1553
  %v1558 = vrot.slane %v1547, 1
  %v1560 = vsel %vm1529, %v1382, %v1558
  %v1562 = vrot.slane %v1551, 1
  %v1564 = vsel %vm1529, %v1535, %v1562
  %v1566 = vrot.slane %v1555, 1
  %v1568 = vsel %vm1529, %v1182, %v1566
  %v1570 = vrot.slane %v1560, 1
  %v1572 = vsel %vm1529, %v1382, %v1570
  %v1574 = vrot.slane %v1564, 1
  %v1576 = vsel %vm1529, %v1535, %v1574
  %v1578 = vrot.slane %v1568, 1
  %v1580 = vsel %vm1529, %v1182, %v1578
  %v1582 = vrot.slane %v1572, 1
  %v1584 = vsel %vm1529, %v1382, %v1582
  %v1586 = vrot.slane %v1576, 1
  %v1588 = vsel %vm1529, %v1535, %v1586
  %v1589 = vrot.slane %v1189, 1
  %v1591 = vsel %vm1529, %v1382, %v1589
  %v1592 = vrot.slane %v1530, 7
  %v1594 = vsel %vm1529, %v1182, %v1592
  %v1596 = vrot.slane %v1591, 7
  %v1598 = vsel %vm1529, %v1382, %v1596
  %v1599 = vrot.slane %v1539, 7
  %v1601 = vsel %vm1529, %v1535, %v1599
  %v1603 = vrot.slane %v1594, 7
  %v1605 = vsel %vm1529, %v1182, %v1603
  %v1607 = vrot.slane %v1598, 7
  %v1609 = vsel %vm1529, %v1382, %v1607
  %v1611 = vrot.slane %v1601, 7
  %v1613 = vsel %vm1529, %v1535, %v1611
  %v1615 = vrot.slane %v1605, 7
  %v1617 = vsel %vm1529, %v1182, %v1615
  %v1619 = vrot.slane %v1609, 7
  %v1621 = vsel %vm1529, %v1383, %v1619
  %v1623 = vrot.slane %v1613, 7
  %v1625 = vsel %vm1529, %v1535, %v1623
  %v1627 = vrot.slane %v1617, 7
  %v1629 = vsel %vm1529, %v1182, %v1627
  %v1631 = vrot.slane %v1621, 7
  %v1633 = vsel %vm1529, %v1383, %v1631
  %v1635 = vrot.slane %v1625, 7
  %v1637 = vsel %vm1529, %v1535, %v1635
  %v1639 = vrot.slane %v1588, 4
  %v1641 = vsub.f32 %v1637, %v1639
  %v1642 = vrcp.pop 100.0
  %v1643 = vmul.f32 %v1641, %v1642
  %v1645 = vrot.slane %v1580, 4
  %v1647 = vsub.f32 %v1629, %v1645
  %v1648 = vmul.f32 %v1647, %v1647
  %v1650 = vrot.slane %v1584, 4
  %v1652 = vsub.f32 %v1633, %v1650
  %v1653 = vmul.f32 %v1652, %v1652
  %v1654 = vadd.f32 %v1648, %v1653
  %v1655 = vrcp.pop 10000.0
  %v1656 = vmul.f32 %v1654, %v1655
  %v1657 = vmul.f32 %v1528, 2.0
  %v1658 = vmul.f32 %v1657, %v1528
  %v1659 = vsub.f32 %v1658, %v1656
  %v1660 = vadd.f32 %v1658, 1e-08
  %v1661 = vrcp.pop %v1660
  %v1662 = vmul.f32 %v1659, %v1661
  %v1663 = vmax.f32 %v1662, -0.999999
  %v1664 = vmin.f32 %v1663, 0.999999
  %v1665 = vmul.f32 %v1664, %v1664
  %v1666 = vsub.f32 1.0, %v1665
  %v1667 = vmax.f32 %v1666, 1e-12
  %v1668 = vrsqrt.pop %v1667
  %v1669 = vmul.f32 %v1667, %v1668
  %vm1670 = vcmp.eq.f32.partialorder %v1667, inf
  %v1671 = vsel %vm1670, %v1667, %v1669
  %vm1672 = vcmp.eq.f32.partialorder %v1667, 0.0
  %v1673 = vand.u32 %v1667, 2147483648
  %v1674 = vsel %vm1672, %v1673, %v1671
  %v1675 = vrcp.pop %v1674
  %v1676 = vmul.f32 %v1664, %v1675
  %v1677 = vand.u32 2147483647, %v1676
  %vm1678 = vcmp.gt.f32.partialorder %v1677, 2.4142137
  %vm1679 = vcmp.gt.f32.partialorder %v1677, 0.41421357
  %v1680 = vrcp.pop %v1677
  %v1681 = vmul.f32 -1.0, %v1680
  %v1682 = vsub.f32 %v1677, 1.0
  %v1683 = vadd.f32 %v1677, 1.0
  %v1684 = vrcp.pop %v1683
  %v1685 = vmul.f32 %v1682, %v1684
  %v1686 = vsel %vm1679, %v1685, %v1677
  %v1687 = vsel %vm1678, %v1681, %v1686
  %v1688 = vsel %vm1679, 0.7853982, 0.0
  %v1689 = vsel %vm1678, 1.5707964, %v1688
  %v1690 = vmul.f32 %v1687, %v1687
  %v1691 = vmul.f32 %v1690, 0.080537446
  %v1692 = vsub.f32 %v1691, 0.13877685
  %v1693 = vmul.f32 %v1692, %v1690
  %v1694 = vadd.f32 %v1693, 0.19977711
  %v1695 = vmul.f32 %v1694, %v1690
  %v1696 = vsub.f32 %v1695, 0.3333295
  %v1697 = vmul.f32 %v1696, %v1690
  %v1698 = vmul.f32 %v1697, %v1687
  %v1699 = vadd.f32 %v1698, %v1687
  %v1700 = vadd.f32 %v1689, %v1699
  %vm1701 = vcmp.lt.f32.partialorder %v1676, 0.0
  %v1702 = vsub.f32 0.0, %v1700
  %v1703 = vsel %vm1701, %v1702, %v1700
  %v1704 = vsub.f32 1.5707964, %v1703
  %v1705 = vrcp.pop %v1704
  %v1706 = vmul.f32 %v1643, %v1705
  %v1707 = vsub.f32 0.0, %v1499
  %v1708 = vrcp.pop 2.0
  %v1709 = vmul.f32 %v1707, %v1708
  %v1710 = vsub.f32 0.0, %v1506
  %v1711 = vmul.f32 %v1710, %v1708
  %v1713 = vrot.slane %v1706, 1
  %v1715 = vsel %vm879, %v1528, %v1709
  %v1716 = vsel %vm915, %v1715, %v1711
  %v1717 = vsel %vm856, %v1716, %v1713
  %v1718 = vmul.f32 %v1717, %v807
  %1719 = vst [vmem:[%s12 + $0x1c] sm:$0xf] %v1718
  %v1720 = vmul.f32 %v45, %v807
  %v1721 = vmul.f32 %v46, %v807
  %1722 = vst [vmem:[%s12 + $0x19] sm:$0x80] %v1720
  %1723 = vst [vmem:[%s12 + $0x21] sm:$0xf] %v1721
  // Predicated region
  $region50: #{bipartite_attention_forward.2} parent=0 // pred_check
    _
  $region51: #{bipartite_attention_forward.2} parent=0 // pred_check_branch
    %1725 = sbr.rel (0) target = $region53
  $region52: #{bipartite_attention_forward.2} parent=0 // pred_region
    _
  $region53: #{bipartite_attention_forward.2} parent=0 // pred_fallthru
    _
  // Predicated region
  $region54: #{bipartite_attention_forward.2} parent=0 // pred_check
    _
  $region55: #{bipartite_attention_forward.2} parent=0 // pred_check_branch
    %1727 = sbr.rel (0) target = $region57
  $region56: #{bipartite_attention_forward.2} parent=0 // pred_region
    _
  $region57: #{bipartite_attention_forward.2} parent=0 // pred_fallthru
    _
  // Predicated region
  $region58: #{bipartite_attention_forward.2} parent=0 // pred_check
    _
  $region59: #{bipartite_attention_forward.2} parent=0 // pred_check_branch
    %1729 = sbr.rel (0) target = $region61
  $region60: #{bipartite_attention_forward.2} parent=0 // pred_region
    _
  $region61: #{bipartite_attention_forward.2} parent=0 // pred_fallthru
    _
  // Predicated region
  $region62: #{bipartite_attention_forward.2} parent=0 // pred_check
    _
  $region63: #{bipartite_attention_forward.2} parent=0 // pred_check_branch
    %1731 = sbr.rel (0) target = $region65
  $region64: #{bipartite_attention_forward.2} parent=0 // pred_region
    _
  $region65: #{bipartite_attention_forward.2} parent=0 // pred_fallthru
    _
  // Predicated region
  $region66: #{bipartite_attention_forward.2} parent=0 // pred_check
    _
  $region67: #{bipartite_attention_forward.2} parent=0 // pred_check_branch
    %1733 = sbr.rel (0) target = $region69
  $region68: #{bipartite_attention_forward.2} parent=0 // pred_region
    _
  $region69: #{bipartite_attention_forward.2} parent=0 // pred_fallthru
    _
  // Predicated region
  $region70: #{bipartite_attention_forward.2} parent=0 // pred_check
    _
  $region71: #{bipartite_attention_forward.2} parent=0 // pred_check_branch
    %1735 = sbr.rel (0) target = $region73
  $region72: #{bipartite_attention_forward.2} parent=0 // pred_region
    _
  $region73: #{bipartite_attention_forward.2} parent=0 // pred_fallthru
    _

</llo_original>
